<compile_context>
chip_gen: v7x
topology: tpu7x:2x2x1
jax: 0.10.0
libtpu: 0.0.40
codegen_flags: <defaults>
</compile_context>

<pallas_src>
import math
import functools

import jax
import jax.numpy as jnp
from jax.experimental import pallas as pl
from jax.experimental.pallas import tpu as pltpu


# ----------------------------- helpers -----------------------------------------

def _layernorm(x, gamma, beta, eps=1e-5):
    # f32 statistics (x is f32); gamma/beta are (1, D) and broadcast.
    mu = jnp.mean(x, axis=-1, keepdims=True)
    var = jnp.mean(jnp.square(x - mu), axis=-1, keepdims=True)
    return (x - mu) * jax.lax.rsqrt(var + eps) * gamma + beta


LAYER_PARAM_ORDER = [
    "wq", "bq", "wk", "bk", "wv", "bv", "wo", "bo",
    "cwq", "cbq", "cwk", "cbk", "cwv", "cbv", "cwo", "cbo",
    "g1", "be1", "g2", "be2", "g3", "be3",
    "w1", "b1", "w2", "b2",
]

# matmul operands -> bf16 (MXU); biases / LN params stay f32
_MATRIX_NAMES = {"wq", "wk", "wv", "wo", "cwq", "cwk", "cwv", "cwo", "w1", "w2"}


# ----------------------------- Pallas kernels ----------------------------------

def fused_decoder_kernel(x0_ref, mask_ref,
                         wq, bq, wk, bk, wv, bv, wo, bo,
                         cwq, cbq, cwk, cbk, cwv, cbv, cwo, cbo,
                         g1, be1, g2, be2, g3, be3,
                         w1, b1, w2, b2,
                         o_ref, *, n_heads):
    """One grid step == one TransformerDecoderLayer; the residual stream is resident in o_ref."""
    layer = pl.program_id(0)

    # Initialize residual stream from the pos-encoded embeddings on the first layer.
    @pl.when(layer == 0)
    def _():
        o_ref[...] = x0_ref[...]

    B, S, D = o_ref.shape
    BS = B * S
    H = n_heads
    dh = D // H
    scale = 1.0 / math.sqrt(dh)

    x = o_ref[...].reshape(BS, D)          # (B*S, D) f32 — residual after `layer` layers
    mem = x0_ref[...].reshape(BS, D)       # memory == pos-encoded embeddings (fixed across layers)
    mask = mask_ref[...]                   # (S, S) additive causal mask (0 / -inf)

    def mha(q_in, kv_in, Wq_r, Bq_r, Wk_r, Bk_r, Wv_r, Bv_r, Wo_r, Bo_r, use_mask):
        Wq, Wk, Wv, Wo = Wq_r[0], Wk_r[0], Wv_r[0], Wo_r[0]        # (D, D) bf16
        Bq, Bk, Bv, Bo = Bq_r[0], Bk_r[0], Bv_r[0], Bo_r[0]        # (1, D) f32
        # Projections at M = B*S, bf16 operands, f32 accumulation.
        q = jnp.dot(q_in.astype(jnp.bfloat16), Wq, preferred_element_type=jnp.float32) + Bq
        k = jnp.dot(kv_in.astype(jnp.bfloat16), Wk, preferred_element_type=jnp.float32) + Bk
        v = jnp.dot(kv_in.astype(jnp.bfloat16), Wv, preferred_element_type=jnp.float32) + Bv
        q3 = q.reshape(B, S, D)
        k3 = k.reshape(B, S, D)
        v3 = v.reshape(B, S, D)

        out = Bo                            # (1, D) f32, broadcasts on first accumulate
        for h in range(H):                  # static unroll; per-head output-proj accumulation
            lo = h * dh
            qh = q3[:, :, lo:lo + dh].astype(jnp.bfloat16)
            kh = k3[:, :, lo:lo + dh].astype(jnp.bfloat16)
            vh = v3[:, :, lo:lo + dh].astype(jnp.bfloat16)
            # batched (over b) score matmul
            s = jnp.einsum('bqd,bkd->bqk', qh, kh,
                           preferred_element_type=jnp.float32) * scale      # (B, S, S) f32
            if use_mask:
                s = s + mask                                                # broadcast over b
            s = s - jnp.max(s, axis=-1, keepdims=True)
            p = jnp.exp(s)
            p = p * pl.reciprocal(jnp.sum(p, axis=-1, keepdims=True), approx=True)
            pv = jnp.einsum('bqk,bkd->bqd', p.astype(jnp.bfloat16), vh,
                            preferred_element_type=jnp.float32)             # (B, S, dh) f32
            # accumulate output projection for this head (no concat of 32-lane slices)
            out = out + jnp.dot(pv.reshape(BS, dh).astype(jnp.bfloat16),
                                Wo[lo:lo + dh, :],
                                preferred_element_type=jnp.float32)
        return out                                                          # (B*S, D) f32

    # ---- self-attention (causal) + add & norm (post-LN) ----
    sa = mha(x, x, wq, bq, wk, bk, wv, bv, wo, bo, True)
    x = _layernorm(x + sa, g1[0], be1[0])
    # ---- cross-attention to memory (no mask) + add & norm ----
    ca = mha(x, mem, cwq, cbq, cwk, cbk, cwv, cbv, cwo, cbo, False)
    x = _layernorm(x + ca, g2[0], be2[0])
    # ---- feed-forward (ReLU) + add & norm ----
    hdn = jnp.maximum(
        jnp.dot(x.astype(jnp.bfloat16), w1[0], preferred_element_type=jnp.float32) + b1[0], 0.0)
    ff = jnp.dot(hdn.astype(jnp.bfloat16), w2[0], preferred_element_type=jnp.float32) + b2[0]
    x = _layernorm(x + ff, g3[0], be3[0])

    o_ref[...] = x.reshape(B, S, D)


def fc_out_kernel(x_ref, w_ref, b_ref, o_ref):
    """Vocab-tiled final projection; batch folded into M."""
    B, S, D = x_ref.shape
    x2 = x_ref[...].reshape(B * S, D).astype(jnp.bfloat16)
    y = jnp.dot(x2, w_ref[...], preferred_element_type=jnp.float32) + b_ref[...]
    o_ref[...] = y.reshape(B, S, -1)


# ----------------------------- wrappers -----------------------------------------

def stack_layer_params(layers):
    """Stack per-layer params along a leading L axis; matmul weights -> bf16."""
    stacked = {}
    for name in LAYER_PARAM_ORDER:
        w = jnp.stack([lp[name] for lp in layers], axis=0)
        if name in _MATRIX_NAMES:
            w = w.astype(jnp.bfloat16)
        stacked[name] = w
    return stacked


def run_fused_decoder(x0, mask, stacked, n_heads, n_layers):
    B, S, D = x0.shape
    weights = [stacked[name] for name in LAYER_PARAM_ORDER]
    in_specs = [
        pl.BlockSpec((B, S, D), lambda l: (0, 0, 0)),   # pos-encoded embeddings / memory
        pl.BlockSpec((S, S), lambda l: (0, 0)),         # causal mask (precomputed)
    ]
    # layer-stacked weights, indexed by the grid step -> pipeline prefetches next layer's set
    in_specs += [pl.BlockSpec((1,) + w.shape[1:], lambda l: (l, 0, 0)) for w in weights]
    return pl.pallas_call(
        functools.partial(fused_decoder_kernel, n_heads=n_heads),
        out_shape=jax.ShapeDtypeStruct((B, S, D), jnp.float32),
        grid=(n_layers,),
        in_specs=in_specs,
        # same block every step -> residual stream stays resident in VMEM across layers
        out_specs=pl.BlockSpec((B, S, D), lambda l: (0, 0, 0)),
        compiler_params=pltpu.CompilerParams(dimension_semantics=("arbitrary",)),
    )(x0, mask, *weights)


def run_fc_out(x, w, b, *, tile_v=2048):
    B, S, D = x.shape
    V = w.shape[1]
    TV = min(tile_v, V)           # lane-dense vocab tiles (multiple of 128 for realistic V)
    nv = pl.cdiv(V, TV)
    return pl.pallas_call(
        fc_out_kernel,
        out_shape=jax.ShapeDtypeStruct((B, S, V), jnp.float32),
        grid=(nv,),
        in_specs=[pl.BlockSpec((B, S, D), lambda j: (0, 0, 0)),
                  pl.BlockSpec((D, TV), lambda j: (0, j)),
                  pl.BlockSpec((1, TV), lambda j: (0, j))],
        out_specs=pl.BlockSpec((B, S, TV), lambda j: (0, 0, j)),
        compiler_params=pltpu.CompilerParams(dimension_semantics=("parallel",)),
    )(x, w.astype(jnp.bfloat16), b)


def positional_encoding(S, D):
    pos = jnp.arange(S, dtype=jnp.float32)[:, None]
    div = jnp.exp(jnp.arange(0, D, 2, dtype=jnp.float32) * (-math.log(10000.0) / D))
    pe = jnp.zeros((S, D), jnp.float32)
    pe = pe.at[:, 0::2].set(jnp.sin(pos * div))
    pe = pe.at[:, 1::2].set(jnp.cos(pos * div))
    return pe


def causal_mask(S):
    # matches nn.Transformer.generate_square_subsequent_mask: 0 on/below diag, -inf above
    row = jnp.arange(S)[:, None]
    col = jnp.arange(S)[None, :]
    return jnp.where(col <= row, 0.0, -jnp.inf).astype(jnp.float32)


def simple_transformer_forward(tokens, params, *, n_heads, n_layers):
    B, S = tokens.shape
    D = params["embedding"].shape[1]
    # glue: embedding gather + scale + positional encoding (plain JAX)
    x = jnp.take(params["embedding"], tokens, axis=0) * math.sqrt(D)   # (B, S, D) f32
    x = x + positional_encoding(S, D)[None, :, :]
    mask = causal_mask(S)
    stacked = stack_layer_params(params["layers"])
    x = run_fused_decoder(x.astype(jnp.float32), mask, stacked, n_heads, n_layers)
    return run_fc_out(x, params["fc_w"], params["fc_b"])               # (B, S, vocab)


# ----------------------------- parameter init ----------------------------------

def init_params(key, vocab, D, n_heads, n_layers, Dff):
    keys = jax.random.split(key, 2 + n_layers)

    def nrm(k, shape):
        return jax.random.normal(k, shape, jnp.float32) * 0.02

    params = {
        "embedding": nrm(keys[0], (vocab, D)),
        "fc_w": nrm(keys[1], (D, vocab)),
        "fc_b": jnp.zeros((1, vocab), jnp.float32),
        "layers": [],
    }
    for l in range(n_layers):
        lk = jax.random.split(keys[2 + l], 10)
        zD = jnp.zeros((1, D), jnp.float32)
        layer = dict(
            wq=nrm(lk[0], (D, D)), bq=zD, wk=nrm(lk[1], (D, D)), bk=zD,
            wv=nrm(lk[2], (D, D)), bv=zD, wo=nrm(lk[3], (D, D)), bo=zD,
            cwq=nrm(lk[4], (D, D)), cbq=zD, cwk=nrm(lk[5], (D, D)), cbk=zD,
            cwv=nrm(lk[6], (D, D)), cbv=zD, cwo=nrm(lk[7], (D, D)), cbo=zD,
            g1=jnp.ones((1, D), jnp.float32), be1=zD,
            g2=jnp.ones((1, D), jnp.float32), be2=zD,
            g3=jnp.ones((1, D), jnp.float32), be3=zD,
            w1=nrm(lk[8], (D, Dff)), b1=jnp.zeros((1, Dff), jnp.float32),
            w2=nrm(lk[9], (Dff, D)), b2=zD,
        )
        params["layers"].append(layer)
    return params


# ----------------------------- main ---------------------------------------------

if __name__ == "__main__":
    # small shapes consistent with the module (module defaults: d_model=256, n_heads=8,
    # n_layers=4, d_ff=1024, max_seq_len=128) — shrunk for a quick smoke test.
    VOCAB, D, HEADS, LAYERS, DFF = 256, 128, 4, 2, 256
    B, S = 2, 8

    key = jax.random.PRNGKey(0)
    pkey, tkey = jax.random.split(key)
    params = init_params(pkey, VOCAB, D, HEADS, LAYERS, DFF)
    tokens = jax.random.randint(tkey, (B, S), 0, VOCAB, dtype=jnp.int32)

    logits = simple_transformer_forward(tokens, params, n_heads=HEADS, n_layers=LAYERS)
    logits = jax.block_until_ready(logits)

    assert logits.shape == (B, S, VOCAB), logits.shape
    assert bool(jnp.all(jnp.isfinite(logits))), "non-finite logits"
    print("KERNEL_OK")
</pallas_src>

<mosaic_0001>
module attributes {stable_mosaic.version = 11 : i64} {
  func.func @fused_decoder_kernel(%arg0: i32, %arg1: memref<2x8x128xf32, #tpu.memory_space<vmem>>, %arg2: memref<8x8xf32, #tpu.memory_space<vmem>>, %arg3: memref<1x128x128xbf16, #tpu.memory_space<vmem>>, %arg4: memref<1x1x128xf32, #tpu.memory_space<vmem>>, %arg5: memref<1x128x128xbf16, #tpu.memory_space<vmem>>, %arg6: memref<1x1x128xf32, #tpu.memory_space<vmem>>, %arg7: memref<1x128x128xbf16, #tpu.memory_space<vmem>>, %arg8: memref<1x1x128xf32, #tpu.memory_space<vmem>>, %arg9: memref<1x128x128xbf16, #tpu.memory_space<vmem>>, %arg10: memref<1x1x128xf32, #tpu.memory_space<vmem>>, %arg11: memref<1x128x128xbf16, #tpu.memory_space<vmem>>, %arg12: memref<1x1x128xf32, #tpu.memory_space<vmem>>, %arg13: memref<1x128x128xbf16, #tpu.memory_space<vmem>>, %arg14: memref<1x1x128xf32, #tpu.memory_space<vmem>>, %arg15: memref<1x128x128xbf16, #tpu.memory_space<vmem>>, %arg16: memref<1x1x128xf32, #tpu.memory_space<vmem>>, %arg17: memref<1x128x128xbf16, #tpu.memory_space<vmem>>, %arg18: memref<1x1x128xf32, #tpu.memory_space<vmem>>, %arg19: memref<1x1x128xf32, #tpu.memory_space<vmem>>, %arg20: memref<1x1x128xf32, #tpu.memory_space<vmem>>, %arg21: memref<1x1x128xf32, #tpu.memory_space<vmem>>, %arg22: memref<1x1x128xf32, #tpu.memory_space<vmem>>, %arg23: memref<1x1x128xf32, #tpu.memory_space<vmem>>, %arg24: memref<1x1x128xf32, #tpu.memory_space<vmem>>, %arg25: memref<1x128x256xbf16, #tpu.memory_space<vmem>>, %arg26: memref<1x1x256xf32, #tpu.memory_space<vmem>>, %arg27: memref<1x256x128xbf16, #tpu.memory_space<vmem>>, %arg28: memref<1x1x128xf32, #tpu.memory_space<vmem>>, %arg29: memref<2x8x128xf32, #tpu.memory_space<vmem>>) attributes {dimension_semantics = [#tpu.dimension_semantics<arbitrary>], iteration_bounds = array<i64: 2>, scalar_prefetch = 0 : i64, scratch_operands = 0 : i64, tpu.core_type = #tpu.core_type<tc>, window_params = [{pipeline_mode = #tpu.pipeline_mode<synchronous>, transform_indices = @transform_0, window_bounds = array<i64: 2, 8, 128>}, {pipeline_mode = #tpu.pipeline_mode<synchronous>, transform_indices = @transform_1, window_bounds = array<i64: 8, 8>}, {transform_indices = @transform_2, window_bounds = array<i64: 1, 128, 128>}, {transform_indices = @transform_3, window_bounds = array<i64: 1, 1, 128>}, {transform_indices = @transform_4, window_bounds = array<i64: 1, 128, 128>}, {transform_indices = @transform_5, window_bounds = array<i64: 1, 1, 128>}, {transform_indices = @transform_6, window_bounds = array<i64: 1, 128, 128>}, {transform_indices = @transform_7, window_bounds = array<i64: 1, 1, 128>}, {transform_indices = @transform_8, window_bounds = array<i64: 1, 128, 128>}, {transform_indices = @transform_9, window_bounds = array<i64: 1, 1, 128>}, {transform_indices = @transform_10, window_bounds = array<i64: 1, 128, 128>}, {transform_indices = @transform_11, window_bounds = array<i64: 1, 1, 128>}, {transform_indices = @transform_12, window_bounds = array<i64: 1, 128, 128>}, {transform_indices = @transform_13, window_bounds = array<i64: 1, 1, 128>}, {transform_indices = @transform_14, window_bounds = array<i64: 1, 128, 128>}, {transform_indices = @transform_15, window_bounds = array<i64: 1, 1, 128>}, {transform_indices = @transform_16, window_bounds = array<i64: 1, 128, 128>}, {transform_indices = @transform_17, window_bounds = array<i64: 1, 1, 128>}, {transform_indices = @transform_18, window_bounds = array<i64: 1, 1, 128>}, {transform_indices = @transform_19, window_bounds = array<i64: 1, 1, 128>}, {transform_indices = @transform_20, window_bounds = array<i64: 1, 1, 128>}, {transform_indices = @transform_21, window_bounds = array<i64: 1, 1, 128>}, {transform_indices = @transform_22, window_bounds = array<i64: 1, 1, 128>}, {transform_indices = @transform_23, window_bounds = array<i64: 1, 1, 128>}, {transform_indices = @transform_24, window_bounds = array<i64: 1, 128, 256>}, {transform_indices = @transform_25, window_bounds = array<i64: 1, 1, 256>}, {transform_indices = @transform_26, window_bounds = array<i64: 1, 256, 128>}, {transform_indices = @transform_27, window_bounds = array<i64: 1, 1, 128>}, {pipeline_mode = #tpu.pipeline_mode<synchronous>, transform_indices = @transform_28, window_bounds = array<i64: 2, 8, 128>}]} {
    %c0_i32 = arith.constant 0 : i32
    %0 = arith.cmpi eq, %arg0, %c0_i32 : i32
    %1 = arith.extui %0 : i1 to i32
    %c0_i32_0 = arith.constant 0 : i32
    %2 = arith.cmpi ne, %1, %c0_i32_0 : i32
    scf.if %2 {
      %c0_160 = arith.constant 0 : index
      %c0_161 = arith.constant 0 : index
      %c0_162 = arith.constant 0 : index
      %393 = vector.load %arg1[%c0_160, %c0_161, %c0_162] : memref<2x8x128xf32, #tpu.memory_space<vmem>>, vector<2x8x128xf32>
      %c0_163 = arith.constant 0 : index
      %c0_164 = arith.constant 0 : index
      %c0_165 = arith.constant 0 : index
      %394 = vector.load %arg29[%c0_163, %c0_164, %c0_165] : memref<2x8x128xf32, #tpu.memory_space<vmem>>, vector<2x8x128xf32>
      tpu.vector_store %arg29[%c0_163, %c0_164, %c0_165], %393 {strides = array<i32>} : memref<2x8x128xf32, #tpu.memory_space<vmem>>, vector<2x8x128xf32>,
    } else {
    }
    %c0 = arith.constant 0 : index
    %c0_1 = arith.constant 0 : index
    %c0_2 = arith.constant 0 : index
    %3 = vector.load %arg29[%c0, %c0_1, %c0_2] : memref<2x8x128xf32, #tpu.memory_space<vmem>>, vector<2x8x128xf32>
    %4 = vector.shape_cast %3 : vector<2x8x128xf32> to vector<16x128xf32>
    %c0_3 = arith.constant 0 : index
    %c0_4 = arith.constant 0 : index
    %c0_5 = arith.constant 0 : index
    %5 = vector.load %arg1[%c0_3, %c0_4, %c0_5] : memref<2x8x128xf32, #tpu.memory_space<vmem>>, vector<2x8x128xf32>
    %6 = vector.shape_cast %5 : vector<2x8x128xf32> to vector<16x128xf32>
    %c0_6 = arith.constant 0 : index
    %c0_7 = arith.constant 0 : index
    %7 = vector.load %arg2[%c0_6, %c0_7] : memref<8x8xf32, #tpu.memory_space<vmem>>, vector<8x8xf32>
    %c0_8 = arith.constant 0 : index
    %c0_9 = arith.constant 0 : index
    %c0_10 = arith.constant 0 : index
    %8 = vector.load %arg3[%c0_8, %c0_9, %c0_10] : memref<1x128x128xbf16, #tpu.memory_space<vmem>>, vector<1x128x128xbf16>
    %9 = vector.shape_cast %8 : vector<1x128x128xbf16> to vector<128x128xbf16>
    %c0_11 = arith.constant 0 : index
    %c0_12 = arith.constant 0 : index
    %c0_13 = arith.constant 0 : index
    %10 = vector.load %arg5[%c0_11, %c0_12, %c0_13] : memref<1x128x128xbf16, #tpu.memory_space<vmem>>, vector<1x128x128xbf16>
    %11 = vector.shape_cast %10 : vector<1x128x128xbf16> to vector<128x128xbf16>
    %c0_14 = arith.constant 0 : index
    %c0_15 = arith.constant 0 : index
    %c0_16 = arith.constant 0 : index
    %12 = vector.load %arg7[%c0_14, %c0_15, %c0_16] : memref<1x128x128xbf16, #tpu.memory_space<vmem>>, vector<1x128x128xbf16>
    %13 = vector.shape_cast %12 : vector<1x128x128xbf16> to vector<128x128xbf16>
    %c0_17 = arith.constant 0 : index
    %c0_18 = arith.constant 0 : index
    %c0_19 = arith.constant 0 : index
    %14 = vector.load %arg9[%c0_17, %c0_18, %c0_19] : memref<1x128x128xbf16, #tpu.memory_space<vmem>>, vector<1x128x128xbf16>
    %15 = vector.shape_cast %14 : vector<1x128x128xbf16> to vector<128x128xbf16>
    %c0_20 = arith.constant 0 : index
    %c0_21 = arith.constant 0 : index
    %c0_22 = arith.constant 0 : index
    %16 = vector.load %arg4[%c0_20, %c0_21, %c0_22] : memref<1x1x128xf32, #tpu.memory_space<vmem>>, vector<1x1x128xf32>
    %17 = vector.shape_cast %16 : vector<1x1x128xf32> to vector<1x128xf32>
    %c0_23 = arith.constant 0 : index
    %c0_24 = arith.constant 0 : index
    %c0_25 = arith.constant 0 : index
    %18 = vector.load %arg6[%c0_23, %c0_24, %c0_25] : memref<1x1x128xf32, #tpu.memory_space<vmem>>, vector<1x1x128xf32>
    %19 = vector.shape_cast %18 : vector<1x1x128xf32> to vector<1x128xf32>
    %c0_26 = arith.constant 0 : index
    %c0_27 = arith.constant 0 : index
    %c0_28 = arith.constant 0 : index
    %20 = vector.load %arg8[%c0_26, %c0_27, %c0_28] : memref<1x1x128xf32, #tpu.memory_space<vmem>>, vector<1x1x128xf32>
    %21 = vector.shape_cast %20 : vector<1x1x128xf32> to vector<1x128xf32>
    %c0_29 = arith.constant 0 : index
    %c0_30 = arith.constant 0 : index
    %c0_31 = arith.constant 0 : index
    %22 = vector.load %arg10[%c0_29, %c0_30, %c0_31] : memref<1x1x128xf32, #tpu.memory_space<vmem>>, vector<1x1x128xf32>
    %23 = vector.shape_cast %22 : vector<1x1x128xf32> to vector<1x128xf32>
    %24 = arith.truncf %4 : vector<16x128xf32> to vector<16x128xbf16>
    %cst = arith.constant dense<0.000000e+00> : vector<16x128xf32>
    %25 = tpu.matmul %24, %9, %cst {dimension_numbers = #tpu.dot_dimension_numbers<[1], [0], [0], [1], [0, 0, 1, 1], [], []>} : vector<16x128xbf16>, vector<128x128xbf16>, vector<16x128xf32> -> vector<16x128xf32>
    %26 = vector.broadcast %17 : vector<1x128xf32> to vector<16x128xf32>
    %27 = arith.addf %25, %26 : vector<16x128xf32>
    %28 = arith.truncf %4 : vector<16x128xf32> to vector<16x128xbf16>
    %cst_32 = arith.constant dense<0.000000e+00> : vector<16x128xf32>
    %29 = tpu.matmul %28, %11, %cst_32 {dimension_numbers = #tpu.dot_dimension_numbers<[1], [0], [0], [1], [0, 0, 1, 1], [], []>} : vector<16x128xbf16>, vector<128x128xbf16>, vector<16x128xf32> -> vector<16x128xf32>
    %30 = vector.broadcast %19 : vector<1x128xf32> to vector<16x128xf32>
    %31 = arith.addf %29, %30 : vector<16x128xf32>
    %32 = arith.truncf %4 : vector<16x128xf32> to vector<16x128xbf16>
    %cst_33 = arith.constant dense<0.000000e+00> : vector<16x128xf32>
    %33 = tpu.matmul %32, %13, %cst_33 {dimension_numbers = #tpu.dot_dimension_numbers<[1], [0], [0], [1], [0, 0, 1, 1], [], []>} : vector<16x128xbf16>, vector<128x128xbf16>, vector<16x128xf32> -> vector<16x128xf32>
    %34 = vector.broadcast %21 : vector<1x128xf32> to vector<16x128xf32>
    %35 = arith.addf %33, %34 : vector<16x128xf32>
    %36 = vector.shape_cast %27 : vector<16x128xf32> to vector<2x8x128xf32>
    %37 = vector.shape_cast %31 : vector<16x128xf32> to vector<2x8x128xf32>
    %38 = vector.shape_cast %35 : vector<16x128xf32> to vector<2x8x128xf32>
    %39 = vector.extract_strided_slice %36 {offsets = [0, 0, 0], sizes = [2, 8, 32], strides = [1, 1, 1]} : vector<2x8x128xf32> to vector<2x8x32xf32>
    %40 = arith.truncf %39 : vector<2x8x32xf32> to vector<2x8x32xbf16>
    %41 = vector.extract_strided_slice %37 {offsets = [0, 0, 0], sizes = [2, 8, 32], strides = [1, 1, 1]} : vector<2x8x128xf32> to vector<2x8x32xf32>
    %42 = arith.truncf %41 : vector<2x8x32xf32> to vector<2x8x32xbf16>
    %43 = vector.extract_strided_slice %38 {offsets = [0, 0, 0], sizes = [2, 8, 32], strides = [1, 1, 1]} : vector<2x8x128xf32> to vector<2x8x32xf32>
    %44 = arith.truncf %43 : vector<2x8x32xf32> to vector<2x8x32xbf16>
    "tpu.trace_start"() <{level = 10 : i32, message = "bqd,bkd->bqk"}> : () -> ()
    %cst_34 = arith.constant dense<0.000000e+00> : vector<2x8x8xf32>
    %45 = tpu.matmul %40, %42, %cst_34 {dimension_numbers = #tpu.dot_dimension_numbers<[2], [2], [1], [1], [0, 0, 0, 1, 1, 1], [0], [0]>} : vector<2x8x32xbf16>, vector<2x8x32xbf16>, vector<2x8x8xf32> -> vector<2x8x8xf32>
    "tpu.trace_stop"() : () -> ()
    %cst_35 = arith.constant 0.176776692 : f32
    %46 = vector.broadcast %cst_35 : f32 to vector<2x8x8xf32>
    %47 = arith.mulf %45, %46 : vector<2x8x8xf32>
    %48 = vector.shape_cast %7 : vector<8x8xf32> to vector<1x8x8xf32>
    %49 = vector.broadcast %48 : vector<1x8x8xf32> to vector<2x8x8xf32>
    %50 = arith.addf %47, %49 : vector<2x8x8xf32>
    %cst_36 = arith.constant dense<0xFF800000> : vector<2x8xf32>
    %51 = vector.multi_reduction <maximumf>, %50, %cst_36 [2] : vector<2x8x8xf32> to vector<2x8xf32>
    %52 = vector.shape_cast %51 : vector<2x8xf32> to vector<2x8x1xf32>
    %53 = vector.broadcast %52 : vector<2x8x1xf32> to vector<2x8x8xf32>
    %54 = arith.subf %50, %53 : vector<2x8x8xf32>
    %55 = math.exp %54 : vector<2x8x8xf32>
    %cst_37 = arith.constant dense<0.000000e+00> : vector<2x8xf32>
    %56 = vector.multi_reduction <add>, %55, %cst_37 [2] : vector<2x8x8xf32> to vector<2x8xf32>
    %57 = vector.shape_cast %56 : vector<2x8xf32> to vector<2x8x1xf32>
    %58 = tpu.reciprocal %57 {approx = true} : vector<2x8x1xf32> -> vector<2x8x1xf32>
    %59 = vector.broadcast %58 : vector<2x8x1xf32> to vector<2x8x8xf32>
    %60 = arith.mulf %55, %59 : vector<2x8x8xf32>
    %61 = arith.truncf %60 : vector<2x8x8xf32> to vector<2x8x8xbf16>
    "tpu.trace_start"() <{level = 10 : i32, message = "bqk,bkd->bqd"}> : () -> ()
    %cst_38 = arith.constant dense<0.000000e+00> : vector<2x8x32xf32>
    %62 = tpu.matmul %61, %44, %cst_38 {dimension_numbers = #tpu.dot_dimension_numbers<[2], [1], [1], [2], [0, 0, 0, 1, 1, 2], [0], [0]>} : vector<2x8x8xbf16>, vector<2x8x32xbf16>, vector<2x8x32xf32> -> vector<2x8x32xf32>
    "tpu.trace_stop"() : () -> ()
    %63 = vector.shape_cast %62 : vector<2x8x32xf32> to vector<16x32xf32>
    %64 = arith.truncf %63 : vector<16x32xf32> to vector<16x32xbf16>
    %65 = vector.extract_strided_slice %15 {offsets = [0, 0], sizes = [32, 128], strides = [1, 1]} : vector<128x128xbf16> to vector<32x128xbf16>
    %cst_39 = arith.constant dense<0.000000e+00> : vector<16x128xf32>
    %66 = tpu.matmul %64, %65, %cst_39 {dimension_numbers = #tpu.dot_dimension_numbers<[1], [0], [0], [1], [0, 0, 1, 1], [], []>} : vector<16x32xbf16>, vector<32x128xbf16>, vector<16x128xf32> -> vector<16x128xf32>
    %67 = vector.broadcast %23 : vector<1x128xf32> to vector<16x128xf32>
    %68 = arith.addf %67, %66 : vector<16x128xf32>
    %69 = vector.extract_strided_slice %36 {offsets = [0, 0, 32], sizes = [2, 8, 32], strides = [1, 1, 1]} : vector<2x8x128xf32> to vector<2x8x32xf32>
    %70 = arith.truncf %69 : vector<2x8x32xf32> to vector<2x8x32xbf16>
    %71 = vector.extract_strided_slice %37 {offsets = [0, 0, 32], sizes = [2, 8, 32], strides = [1, 1, 1]} : vector<2x8x128xf32> to vector<2x8x32xf32>
    %72 = arith.truncf %71 : vector<2x8x32xf32> to vector<2x8x32xbf16>
    %73 = vector.extract_strided_slice %38 {offsets = [0, 0, 32], sizes = [2, 8, 32], strides = [1, 1, 1]} : vector<2x8x128xf32> to vector<2x8x32xf32>
    %74 = arith.truncf %73 : vector<2x8x32xf32> to vector<2x8x32xbf16>
    "tpu.trace_start"() <{level = 10 : i32, message = "bqd,bkd->bqk"}> : () -> ()
    %cst_40 = arith.constant dense<0.000000e+00> : vector<2x8x8xf32>
    %75 = tpu.matmul %70, %72, %cst_40 {dimension_numbers = #tpu.dot_dimension_numbers<[2], [2], [1], [1], [0, 0, 0, 1, 1, 1], [0], [0]>} : vector<2x8x32xbf16>, vector<2x8x32xbf16>, vector<2x8x8xf32> -> vector<2x8x8xf32>
    "tpu.trace_stop"() : () -> ()
    %cst_41 = arith.constant 0.176776692 : f32
    %76 = vector.broadcast %cst_41 : f32 to vector<2x8x8xf32>
    %77 = arith.mulf %75, %76 : vector<2x8x8xf32>
    %78 = vector.shape_cast %7 : vector<8x8xf32> to vector<1x8x8xf32>
    %79 = vector.broadcast %78 : vector<1x8x8xf32> to vector<2x8x8xf32>
    %80 = arith.addf %77, %79 : vector<2x8x8xf32>
    %cst_42 = arith.constant dense<0xFF800000> : vector<2x8xf32>
    %81 = vector.multi_reduction <maximumf>, %80, %cst_42 [2] : vector<2x8x8xf32> to vector<2x8xf32>
    %82 = vector.shape_cast %81 : vector<2x8xf32> to vector<2x8x1xf32>
    %83 = vector.broadcast %82 : vector<2x8x1xf32> to vector<2x8x8xf32>
    %84 = arith.subf %80, %83 : vector<2x8x8xf32>
    %85 = math.exp %84 : vector<2x8x8xf32>
    %cst_43 = arith.constant dense<0.000000e+00> : vector<2x8xf32>
    %86 = vector.multi_reduction <add>, %85, %cst_43 [2] : vector<2x8x8xf32> to vector<2x8xf32>
    %87 = vector.shape_cast %86 : vector<2x8xf32> to vector<2x8x1xf32>
    %88 = tpu.reciprocal %87 {approx = true} : vector<2x8x1xf32> -> vector<2x8x1xf32>
    %89 = vector.broadcast %88 : vector<2x8x1xf32> to vector<2x8x8xf32>
    %90 = arith.mulf %85, %89 : vector<2x8x8xf32>
    %91 = arith.truncf %90 : vector<2x8x8xf32> to vector<2x8x8xbf16>
    "tpu.trace_start"() <{level = 10 : i32, message = "bqk,bkd->bqd"}> : () -> ()
    %cst_44 = arith.constant dense<0.000000e+00> : vector<2x8x32xf32>
    %92 = tpu.matmul %91, %74, %cst_44 {dimension_numbers = #tpu.dot_dimension_numbers<[2], [1], [1], [2], [0, 0, 0, 1, 1, 2], [0], [0]>} : vector<2x8x8xbf16>, vector<2x8x32xbf16>, vector<2x8x32xf32> -> vector<2x8x32xf32>
    "tpu.trace_stop"() : () -> ()
    %93 = vector.shape_cast %92 : vector<2x8x32xf32> to vector<16x32xf32>
    %94 = arith.truncf %93 : vector<16x32xf32> to vector<16x32xbf16>
    %95 = vector.extract_strided_slice %15 {offsets = [32, 0], sizes = [32, 128], strides = [1, 1]} : vector<128x128xbf16> to vector<32x128xbf16>
    %cst_45 = arith.constant dense<0.000000e+00> : vector<16x128xf32>
    %96 = tpu.matmul %94, %95, %cst_45 {dimension_numbers = #tpu.dot_dimension_numbers<[1], [0], [0], [1], [0, 0, 1, 1], [], []>} : vector<16x32xbf16>, vector<32x128xbf16>, vector<16x128xf32> -> vector<16x128xf32>
    %97 = arith.addf %68, %96 : vector<16x128xf32>
    %98 = vector.extract_strided_slice %36 {offsets = [0, 0, 64], sizes = [2, 8, 32], strides = [1, 1, 1]} : vector<2x8x128xf32> to vector<2x8x32xf32>
    %99 = arith.truncf %98 : vector<2x8x32xf32> to vector<2x8x32xbf16>
    %100 = vector.extract_strided_slice %37 {offsets = [0, 0, 64], sizes = [2, 8, 32], strides = [1, 1, 1]} : vector<2x8x128xf32> to vector<2x8x32xf32>
    %101 = arith.truncf %100 : vector<2x8x32xf32> to vector<2x8x32xbf16>
    %102 = vector.extract_strided_slice %38 {offsets = [0, 0, 64], sizes = [2, 8, 32], strides = [1, 1, 1]} : vector<2x8x128xf32> to vector<2x8x32xf32>
    %103 = arith.truncf %102 : vector<2x8x32xf32> to vector<2x8x32xbf16>
    "tpu.trace_start"() <{level = 10 : i32, message = "bqd,bkd->bqk"}> : () -> ()
    %cst_46 = arith.constant dense<0.000000e+00> : vector<2x8x8xf32>
    %104 = tpu.matmul %99, %101, %cst_46 {dimension_numbers = #tpu.dot_dimension_numbers<[2], [2], [1], [1], [0, 0, 0, 1, 1, 1], [0], [0]>} : vector<2x8x32xbf16>, vector<2x8x32xbf16>, vector<2x8x8xf32> -> vector<2x8x8xf32>
    "tpu.trace_stop"() : () -> ()
    %cst_47 = arith.constant 0.176776692 : f32
    %105 = vector.broadcast %cst_47 : f32 to vector<2x8x8xf32>
    %106 = arith.mulf %104, %105 : vector<2x8x8xf32>
    %107 = vector.shape_cast %7 : vector<8x8xf32> to vector<1x8x8xf32>
    %108 = vector.broadcast %107 : vector<1x8x8xf32> to vector<2x8x8xf32>
    %109 = arith.addf %106, %108 : vector<2x8x8xf32>
    %cst_48 = arith.constant dense<0xFF800000> : vector<2x8xf32>
    %110 = vector.multi_reduction <maximumf>, %109, %cst_48 [2] : vector<2x8x8xf32> to vector<2x8xf32>
    %111 = vector.shape_cast %110 : vector<2x8xf32> to vector<2x8x1xf32>
    %112 = vector.broadcast %111 : vector<2x8x1xf32> to vector<2x8x8xf32>
    %113 = arith.subf %109, %112 : vector<2x8x8xf32>
    %114 = math.exp %113 : vector<2x8x8xf32>
    %cst_49 = arith.constant dense<0.000000e+00> : vector<2x8xf32>
    %115 = vector.multi_reduction <add>, %114, %cst_49 [2] : vector<2x8x8xf32> to vector<2x8xf32>
    %116 = vector.shape_cast %115 : vector<2x8xf32> to vector<2x8x1xf32>
    %117 = tpu.reciprocal %116 {approx = true} : vector<2x8x1xf32> -> vector<2x8x1xf32>
    %118 = vector.broadcast %117 : vector<2x8x1xf32> to vector<2x8x8xf32>
    %119 = arith.mulf %114, %118 : vector<2x8x8xf32>
    %120 = arith.truncf %119 : vector<2x8x8xf32> to vector<2x8x8xbf16>
    "tpu.trace_start"() <{level = 10 : i32, message = "bqk,bkd->bqd"}> : () -> ()
    %cst_50 = arith.constant dense<0.000000e+00> : vector<2x8x32xf32>
    %121 = tpu.matmul %120, %103, %cst_50 {dimension_numbers = #tpu.dot_dimension_numbers<[2], [1], [1], [2], [0, 0, 0, 1, 1, 2], [0], [0]>} : vector<2x8x8xbf16>, vector<2x8x32xbf16>, vector<2x8x32xf32> -> vector<2x8x32xf32>
    "tpu.trace_stop"() : () -> ()
    %122 = vector.shape_cast %121 : vector<2x8x32xf32> to vector<16x32xf32>
    %123 = arith.truncf %122 : vector<16x32xf32> to vector<16x32xbf16>
    %124 = vector.extract_strided_slice %15 {offsets = [64, 0], sizes = [32, 128], strides = [1, 1]} : vector<128x128xbf16> to vector<32x128xbf16>
    %cst_51 = arith.constant dense<0.000000e+00> : vector<16x128xf32>
    %125 = tpu.matmul %123, %124, %cst_51 {dimension_numbers = #tpu.dot_dimension_numbers<[1], [0], [0], [1], [0, 0, 1, 1], [], []>} : vector<16x32xbf16>, vector<32x128xbf16>, vector<16x128xf32> -> vector<16x128xf32>
    %126 = arith.addf %97, %125 : vector<16x128xf32>
    %127 = vector.extract_strided_slice %36 {offsets = [0, 0, 96], sizes = [2, 8, 32], strides = [1, 1, 1]} : vector<2x8x128xf32> to vector<2x8x32xf32>
    %128 = arith.truncf %127 : vector<2x8x32xf32> to vector<2x8x32xbf16>
    %129 = vector.extract_strided_slice %37 {offsets = [0, 0, 96], sizes = [2, 8, 32], strides = [1, 1, 1]} : vector<2x8x128xf32> to vector<2x8x32xf32>
    %130 = arith.truncf %129 : vector<2x8x32xf32> to vector<2x8x32xbf16>
    %131 = vector.extract_strided_slice %38 {offsets = [0, 0, 96], sizes = [2, 8, 32], strides = [1, 1, 1]} : vector<2x8x128xf32> to vector<2x8x32xf32>
    %132 = arith.truncf %131 : vector<2x8x32xf32> to vector<2x8x32xbf16>
    "tpu.trace_start"() <{level = 10 : i32, message = "bqd,bkd->bqk"}> : () -> ()
    %cst_52 = arith.constant dense<0.000000e+00> : vector<2x8x8xf32>
    %133 = tpu.matmul %128, %130, %cst_52 {dimension_numbers = #tpu.dot_dimension_numbers<[2], [2], [1], [1], [0, 0, 0, 1, 1, 1], [0], [0]>} : vector<2x8x32xbf16>, vector<2x8x32xbf16>, vector<2x8x8xf32> -> vector<2x8x8xf32>
    "tpu.trace_stop"() : () -> ()
    %cst_53 = arith.constant 0.176776692 : f32
    %134 = vector.broadcast %cst_53 : f32 to vector<2x8x8xf32>
    %135 = arith.mulf %133, %134 : vector<2x8x8xf32>
    %136 = vector.shape_cast %7 : vector<8x8xf32> to vector<1x8x8xf32>
    %137 = vector.broadcast %136 : vector<1x8x8xf32> to vector<2x8x8xf32>
    %138 = arith.addf %135, %137 : vector<2x8x8xf32>
    %cst_54 = arith.constant dense<0xFF800000> : vector<2x8xf32>
    %139 = vector.multi_reduction <maximumf>, %138, %cst_54 [2] : vector<2x8x8xf32> to vector<2x8xf32>
    %140 = vector.shape_cast %139 : vector<2x8xf32> to vector<2x8x1xf32>
    %141 = vector.broadcast %140 : vector<2x8x1xf32> to vector<2x8x8xf32>
    %142 = arith.subf %138, %141 : vector<2x8x8xf32>
    %143 = math.exp %142 : vector<2x8x8xf32>
    %cst_55 = arith.constant dense<0.000000e+00> : vector<2x8xf32>
    %144 = vector.multi_reduction <add>, %143, %cst_55 [2] : vector<2x8x8xf32> to vector<2x8xf32>
    %145 = vector.shape_cast %144 : vector<2x8xf32> to vector<2x8x1xf32>
    %146 = tpu.reciprocal %145 {approx = true} : vector<2x8x1xf32> -> vector<2x8x1xf32>
    %147 = vector.broadcast %146 : vector<2x8x1xf32> to vector<2x8x8xf32>
    %148 = arith.mulf %143, %147 : vector<2x8x8xf32>
    %149 = arith.truncf %148 : vector<2x8x8xf32> to vector<2x8x8xbf16>
    "tpu.trace_start"() <{level = 10 : i32, message = "bqk,bkd->bqd"}> : () -> ()
    %cst_56 = arith.constant dense<0.000000e+00> : vector<2x8x32xf32>
    %150 = tpu.matmul %149, %132, %cst_56 {dimension_numbers = #tpu.dot_dimension_numbers<[2], [1], [1], [2], [0, 0, 0, 1, 1, 2], [0], [0]>} : vector<2x8x8xbf16>, vector<2x8x32xbf16>, vector<2x8x32xf32> -> vector<2x8x32xf32>
    "tpu.trace_stop"() : () -> ()
    %151 = vector.shape_cast %150 : vector<2x8x32xf32> to vector<16x32xf32>
    %152 = arith.truncf %151 : vector<16x32xf32> to vector<16x32xbf16>
    %153 = vector.extract_strided_slice %15 {offsets = [96, 0], sizes = [32, 128], strides = [1, 1]} : vector<128x128xbf16> to vector<32x128xbf16>
    %cst_57 = arith.constant dense<0.000000e+00> : vector<16x128xf32>
    %154 = tpu.matmul %152, %153, %cst_57 {dimension_numbers = #tpu.dot_dimension_numbers<[1], [0], [0], [1], [0, 0, 1, 1], [], []>} : vector<16x32xbf16>, vector<32x128xbf16>, vector<16x128xf32> -> vector<16x128xf32>
    %155 = arith.addf %126, %154 : vector<16x128xf32>
    %156 = arith.addf %4, %155 : vector<16x128xf32>
    %c0_58 = arith.constant 0 : index
    %c0_59 = arith.constant 0 : index
    %c0_60 = arith.constant 0 : index
    %157 = vector.load %arg19[%c0_58, %c0_59, %c0_60] : memref<1x1x128xf32, #tpu.memory_space<vmem>>, vector<1x1x128xf32>
    %158 = vector.shape_cast %157 : vector<1x1x128xf32> to vector<1x128xf32>
    %c0_61 = arith.constant 0 : index
    %c0_62 = arith.constant 0 : index
    %c0_63 = arith.constant 0 : index
    %159 = vector.load %arg20[%c0_61, %c0_62, %c0_63] : memref<1x1x128xf32, #tpu.memory_space<vmem>>, vector<1x1x128xf32>
    %160 = vector.shape_cast %159 : vector<1x1x128xf32> to vector<1x128xf32>
    %cst_64 = arith.constant dense<0.000000e+00> : vector<16xf32>
    %161 = vector.multi_reduction <add>, %156, %cst_64 [1] : vector<16x128xf32> to vector<16xf32>
    %162 = vector.shape_cast %161 : vector<16xf32> to vector<16x1xf32>
    %cst_65 = arith.constant 1.280000e+02 : f32
    %163 = vector.broadcast %cst_65 : f32 to vector<16x1xf32>
    %164 = arith.divf %162, %163 : vector<16x1xf32>
    %165 = vector.broadcast %164 : vector<16x1xf32> to vector<16x128xf32>
    %166 = arith.subf %156, %165 : vector<16x128xf32>
    %167 = arith.mulf %166, %166 : vector<16x128xf32>
    %cst_66 = arith.constant dense<0.000000e+00> : vector<16xf32>
    %168 = vector.multi_reduction <add>, %167, %cst_66 [1] : vector<16x128xf32> to vector<16xf32>
    %169 = vector.shape_cast %168 : vector<16xf32> to vector<16x1xf32>
    %cst_67 = arith.constant 1.280000e+02 : f32
    %170 = vector.broadcast %cst_67 : f32 to vector<16x1xf32>
    %171 = arith.divf %169, %170 : vector<16x1xf32>
    %172 = vector.broadcast %164 : vector<16x1xf32> to vector<16x128xf32>
    %173 = arith.subf %156, %172 : vector<16x128xf32>
    %cst_68 = arith.constant 9.99999974E-6 : f32
    %174 = vector.broadcast %cst_68 : f32 to vector<16x1xf32>
    %175 = arith.addf %171, %174 : vector<16x1xf32>
    %176 = math.rsqrt %175 : vector<16x1xf32>
    %177 = vector.broadcast %176 : vector<16x1xf32> to vector<16x128xf32>
    %178 = arith.mulf %173, %177 : vector<16x128xf32>
    %179 = vector.broadcast %158 : vector<1x128xf32> to vector<16x128xf32>
    %180 = arith.mulf %178, %179 : vector<16x128xf32>
    %181 = vector.broadcast %160 : vector<1x128xf32> to vector<16x128xf32>
    %182 = arith.addf %180, %181 : vector<16x128xf32>
    %c0_69 = arith.constant 0 : index
    %c0_70 = arith.constant 0 : index
    %c0_71 = arith.constant 0 : index
    %183 = vector.load %arg11[%c0_69, %c0_70, %c0_71] : memref<1x128x128xbf16, #tpu.memory_space<vmem>>, vector<1x128x128xbf16>
    %184 = vector.shape_cast %183 : vector<1x128x128xbf16> to vector<128x128xbf16>
    %c0_72 = arith.constant 0 : index
    %c0_73 = arith.constant 0 : index
    %c0_74 = arith.constant 0 : index
    %185 = vector.load %arg13[%c0_72, %c0_73, %c0_74] : memref<1x128x128xbf16, #tpu.memory_space<vmem>>, vector<1x128x128xbf16>
    %186 = vector.shape_cast %185 : vector<1x128x128xbf16> to vector<128x128xbf16>
    %c0_75 = arith.constant 0 : index
    %c0_76 = arith.constant 0 : index
    %c0_77 = arith.constant 0 : index
    %187 = vector.load %arg15[%c0_75, %c0_76, %c0_77] : memref<1x128x128xbf16, #tpu.memory_space<vmem>>, vector<1x128x128xbf16>
    %188 = vector.shape_cast %187 : vector<1x128x128xbf16> to vector<128x128xbf16>
    %c0_78 = arith.constant 0 : index
    %c0_79 = arith.constant 0 : index
    %c0_80 = arith.constant 0 : index
    %189 = vector.load %arg17[%c0_78, %c0_79, %c0_80] : memref<1x128x128xbf16, #tpu.memory_space<vmem>>, vector<1x128x128xbf16>
    %190 = vector.shape_cast %189 : vector<1x128x128xbf16> to vector<128x128xbf16>
    %c0_81 = arith.constant 0 : index
    %c0_82 = arith.constant 0 : index
    %c0_83 = arith.constant 0 : index
    %191 = vector.load %arg12[%c0_81, %c0_82, %c0_83] : memref<1x1x128xf32, #tpu.memory_space<vmem>>, vector<1x1x128xf32>
    %192 = vector.shape_cast %191 : vector<1x1x128xf32> to vector<1x128xf32>
    %c0_84 = arith.constant 0 : index
    %c0_85 = arith.constant 0 : index
    %c0_86 = arith.constant 0 : index
    %193 = vector.load %arg14[%c0_84, %c0_85, %c0_86] : memref<1x1x128xf32, #tpu.memory_space<vmem>>, vector<1x1x128xf32>
    %194 = vector.shape_cast %193 : vector<1x1x128xf32> to vector<1x128xf32>
    %c0_87 = arith.constant 0 : index
    %c0_88 = arith.constant 0 : index
    %c0_89 = arith.constant 0 : index
    %195 = vector.load %arg16[%c0_87, %c0_88, %c0_89] : memref<1x1x128xf32, #tpu.memory_space<vmem>>, vector<1x1x128xf32>
    %196 = vector.shape_cast %195 : vector<1x1x128xf32> to vector<1x128xf32>
    %c0_90 = arith.constant 0 : index
    %c0_91 = arith.constant 0 : index
    %c0_92 = arith.constant 0 : index
    %197 = vector.load %arg18[%c0_90, %c0_91, %c0_92] : memref<1x1x128xf32, #tpu.memory_space<vmem>>, vector<1x1x128xf32>
    %198 = vector.shape_cast %197 : vector<1x1x128xf32> to vector<1x128xf32>
    %199 = arith.truncf %182 : vector<16x128xf32> to vector<16x128xbf16>
    %cst_93 = arith.constant dense<0.000000e+00> : vector<16x128xf32>
    %200 = tpu.matmul %199, %184, %cst_93 {dimension_numbers = #tpu.dot_dimension_numbers<[1], [0], [0], [1], [0, 0, 1, 1], [], []>} : vector<16x128xbf16>, vector<128x128xbf16>, vector<16x128xf32> -> vector<16x128xf32>
    %201 = vector.broadcast %192 : vector<1x128xf32> to vector<16x128xf32>
    %202 = arith.addf %200, %201 : vector<16x128xf32>
    %203 = arith.truncf %6 : vector<16x128xf32> to vector<16x128xbf16>
    %cst_94 = arith.constant dense<0.000000e+00> : vector<16x128xf32>
    %204 = tpu.matmul %203, %186, %cst_94 {dimension_numbers = #tpu.dot_dimension_numbers<[1], [0], [0], [1], [0, 0, 1, 1], [], []>} : vector<16x128xbf16>, vector<128x128xbf16>, vector<16x128xf32> -> vector<16x128xf32>
    %205 = vector.broadcast %194 : vector<1x128xf32> to vector<16x128xf32>
    %206 = arith.addf %204, %205 : vector<16x128xf32>
    %207 = arith.truncf %6 : vector<16x128xf32> to vector<16x128xbf16>
    %cst_95 = arith.constant dense<0.000000e+00> : vector<16x128xf32>
    %208 = tpu.matmul %207, %188, %cst_95 {dimension_numbers = #tpu.dot_dimension_numbers<[1], [0], [0], [1], [0, 0, 1, 1], [], []>} : vector<16x128xbf16>, vector<128x128xbf16>, vector<16x128xf32> -> vector<16x128xf32>
    %209 = vector.broadcast %196 : vector<1x128xf32> to vector<16x128xf32>
    %210 = arith.addf %208, %209 : vector<16x128xf32>
    %211 = vector.shape_cast %202 : vector<16x128xf32> to vector<2x8x128xf32>
    %212 = vector.shape_cast %206 : vector<16x128xf32> to vector<2x8x128xf32>
    %213 = vector.shape_cast %210 : vector<16x128xf32> to vector<2x8x128xf32>
    %214 = vector.extract_strided_slice %211 {offsets = [0, 0, 0], sizes = [2, 8, 32], strides = [1, 1, 1]} : vector<2x8x128xf32> to vector<2x8x32xf32>
    %215 = arith.truncf %214 : vector<2x8x32xf32> to vector<2x8x32xbf16>
    %216 = vector.extract_strided_slice %212 {offsets = [0, 0, 0], sizes = [2, 8, 32], strides = [1, 1, 1]} : vector<2x8x128xf32> to vector<2x8x32xf32>
    %217 = arith.truncf %216 : vector<2x8x32xf32> to vector<2x8x32xbf16>
    %218 = vector.extract_strided_slice %213 {offsets = [0, 0, 0], sizes = [2, 8, 32], strides = [1, 1, 1]} : vector<2x8x128xf32> to vector<2x8x32xf32>
    %219 = arith.truncf %218 : vector<2x8x32xf32> to vector<2x8x32xbf16>
    "tpu.trace_start"() <{level = 10 : i32, message = "bqd,bkd->bqk"}> : () -> ()
    %cst_96 = arith.constant dense<0.000000e+00> : vector<2x8x8xf32>
    %220 = tpu.matmul %215, %217, %cst_96 {dimension_numbers = #tpu.dot_dimension_numbers<[2], [2], [1], [1], [0, 0, 0, 1, 1, 1], [0], [0]>} : vector<2x8x32xbf16>, vector<2x8x32xbf16>, vector<2x8x8xf32> -> vector<2x8x8xf32>
    "tpu.trace_stop"() : () -> ()
    %cst_97 = arith.constant 0.176776692 : f32
    %221 = vector.broadcast %cst_97 : f32 to vector<2x8x8xf32>
    %222 = arith.mulf %220, %221 : vector<2x8x8xf32>
    %cst_98 = arith.constant dense<0xFF800000> : vector<2x8xf32>
    %223 = vector.multi_reduction <maximumf>, %222, %cst_98 [2] : vector<2x8x8xf32> to vector<2x8xf32>
    %224 = vector.shape_cast %223 : vector<2x8xf32> to vector<2x8x1xf32>
    %225 = vector.broadcast %224 : vector<2x8x1xf32> to vector<2x8x8xf32>
    %226 = arith.subf %222, %225 : vector<2x8x8xf32>
    %227 = math.exp %226 : vector<2x8x8xf32>
    %cst_99 = arith.constant dense<0.000000e+00> : vector<2x8xf32>
    %228 = vector.multi_reduction <add>, %227, %cst_99 [2] : vector<2x8x8xf32> to vector<2x8xf32>
    %229 = vector.shape_cast %228 : vector<2x8xf32> to vector<2x8x1xf32>
    %230 = tpu.reciprocal %229 {approx = true} : vector<2x8x1xf32> -> vector<2x8x1xf32>
    %231 = vector.broadcast %230 : vector<2x8x1xf32> to vector<2x8x8xf32>
    %232 = arith.mulf %227, %231 : vector<2x8x8xf32>
    %233 = arith.truncf %232 : vector<2x8x8xf32> to vector<2x8x8xbf16>
    "tpu.trace_start"() <{level = 10 : i32, message = "bqk,bkd->bqd"}> : () -> ()
    %cst_100 = arith.constant dense<0.000000e+00> : vector<2x8x32xf32>
    %234 = tpu.matmul %233, %219, %cst_100 {dimension_numbers = #tpu.dot_dimension_numbers<[2], [1], [1], [2], [0, 0, 0, 1, 1, 2], [0], [0]>} : vector<2x8x8xbf16>, vector<2x8x32xbf16>, vector<2x8x32xf32> -> vector<2x8x32xf32>
    "tpu.trace_stop"() : () -> ()
    %235 = vector.shape_cast %234 : vector<2x8x32xf32> to vector<16x32xf32>
    %236 = arith.truncf %235 : vector<16x32xf32> to vector<16x32xbf16>
    %237 = vector.extract_strided_slice %190 {offsets = [0, 0], sizes = [32, 128], strides = [1, 1]} : vector<128x128xbf16> to vector<32x128xbf16>
    %cst_101 = arith.constant dense<0.000000e+00> : vector<16x128xf32>
    %238 = tpu.matmul %236, %237, %cst_101 {dimension_numbers = #tpu.dot_dimension_numbers<[1], [0], [0], [1], [0, 0, 1, 1], [], []>} : vector<16x32xbf16>, vector<32x128xbf16>, vector<16x128xf32> -> vector<16x128xf32>
    %239 = vector.broadcast %198 : vector<1x128xf32> to vector<16x128xf32>
    %240 = arith.addf %239, %238 : vector<16x128xf32>
    %241 = vector.extract_strided_slice %211 {offsets = [0, 0, 32], sizes = [2, 8, 32], strides = [1, 1, 1]} : vector<2x8x128xf32> to vector<2x8x32xf32>
    %242 = arith.truncf %241 : vector<2x8x32xf32> to vector<2x8x32xbf16>
    %243 = vector.extract_strided_slice %212 {offsets = [0, 0, 32], sizes = [2, 8, 32], strides = [1, 1, 1]} : vector<2x8x128xf32> to vector<2x8x32xf32>
    %244 = arith.truncf %243 : vector<2x8x32xf32> to vector<2x8x32xbf16>
    %245 = vector.extract_strided_slice %213 {offsets = [0, 0, 32], sizes = [2, 8, 32], strides = [1, 1, 1]} : vector<2x8x128xf32> to vector<2x8x32xf32>
    %246 = arith.truncf %245 : vector<2x8x32xf32> to vector<2x8x32xbf16>
    "tpu.trace_start"() <{level = 10 : i32, message = "bqd,bkd->bqk"}> : () -> ()
    %cst_102 = arith.constant dense<0.000000e+00> : vector<2x8x8xf32>
    %247 = tpu.matmul %242, %244, %cst_102 {dimension_numbers = #tpu.dot_dimension_numbers<[2], [2], [1], [1], [0, 0, 0, 1, 1, 1], [0], [0]>} : vector<2x8x32xbf16>, vector<2x8x32xbf16>, vector<2x8x8xf32> -> vector<2x8x8xf32>
    "tpu.trace_stop"() : () -> ()
    %cst_103 = arith.constant 0.176776692 : f32
    %248 = vector.broadcast %cst_103 : f32 to vector<2x8x8xf32>
    %249 = arith.mulf %247, %248 : vector<2x8x8xf32>
    %cst_104 = arith.constant dense<0xFF800000> : vector<2x8xf32>
    %250 = vector.multi_reduction <maximumf>, %249, %cst_104 [2] : vector<2x8x8xf32> to vector<2x8xf32>
    %251 = vector.shape_cast %250 : vector<2x8xf32> to vector<2x8x1xf32>
    %252 = vector.broadcast %251 : vector<2x8x1xf32> to vector<2x8x8xf32>
    %253 = arith.subf %249, %252 : vector<2x8x8xf32>
    %254 = math.exp %253 : vector<2x8x8xf32>
    %cst_105 = arith.constant dense<0.000000e+00> : vector<2x8xf32>
    %255 = vector.multi_reduction <add>, %254, %cst_105 [2] : vector<2x8x8xf32> to vector<2x8xf32>
    %256 = vector.shape_cast %255 : vector<2x8xf32> to vector<2x8x1xf32>
    %257 = tpu.reciprocal %256 {approx = true} : vector<2x8x1xf32> -> vector<2x8x1xf32>
    %258 = vector.broadcast %257 : vector<2x8x1xf32> to vector<2x8x8xf32>
    %259 = arith.mulf %254, %258 : vector<2x8x8xf32>
    %260 = arith.truncf %259 : vector<2x8x8xf32> to vector<2x8x8xbf16>
    "tpu.trace_start"() <{level = 10 : i32, message = "bqk,bkd->bqd"}> : () -> ()
    %cst_106 = arith.constant dense<0.000000e+00> : vector<2x8x32xf32>
    %261 = tpu.matmul %260, %246, %cst_106 {dimension_numbers = #tpu.dot_dimension_numbers<[2], [1], [1], [2], [0, 0, 0, 1, 1, 2], [0], [0]>} : vector<2x8x8xbf16>, vector<2x8x32xbf16>, vector<2x8x32xf32> -> vector<2x8x32xf32>
    "tpu.trace_stop"() : () -> ()
    %262 = vector.shape_cast %261 : vector<2x8x32xf32> to vector<16x32xf32>
    %263 = arith.truncf %262 : vector<16x32xf32> to vector<16x32xbf16>
    %264 = vector.extract_strided_slice %190 {offsets = [32, 0], sizes = [32, 128], strides = [1, 1]} : vector<128x128xbf16> to vector<32x128xbf16>
    %cst_107 = arith.constant dense<0.000000e+00> : vector<16x128xf32>
    %265 = tpu.matmul %263, %264, %cst_107 {dimension_numbers = #tpu.dot_dimension_numbers<[1], [0], [0], [1], [0, 0, 1, 1], [], []>} : vector<16x32xbf16>, vector<32x128xbf16>, vector<16x128xf32> -> vector<16x128xf32>
    %266 = arith.addf %240, %265 : vector<16x128xf32>
    %267 = vector.extract_strided_slice %211 {offsets = [0, 0, 64], sizes = [2, 8, 32], strides = [1, 1, 1]} : vector<2x8x128xf32> to vector<2x8x32xf32>
    %268 = arith.truncf %267 : vector<2x8x32xf32> to vector<2x8x32xbf16>
    %269 = vector.extract_strided_slice %212 {offsets = [0, 0, 64], sizes = [2, 8, 32], strides = [1, 1, 1]} : vector<2x8x128xf32> to vector<2x8x32xf32>
    %270 = arith.truncf %269 : vector<2x8x32xf32> to vector<2x8x32xbf16>
    %271 = vector.extract_strided_slice %213 {offsets = [0, 0, 64], sizes = [2, 8, 32], strides = [1, 1, 1]} : vector<2x8x128xf32> to vector<2x8x32xf32>
    %272 = arith.truncf %271 : vector<2x8x32xf32> to vector<2x8x32xbf16>
    "tpu.trace_start"() <{level = 10 : i32, message = "bqd,bkd->bqk"}> : () -> ()
    %cst_108 = arith.constant dense<0.000000e+00> : vector<2x8x8xf32>
    %273 = tpu.matmul %268, %270, %cst_108 {dimension_numbers = #tpu.dot_dimension_numbers<[2], [2], [1], [1], [0, 0, 0, 1, 1, 1], [0], [0]>} : vector<2x8x32xbf16>, vector<2x8x32xbf16>, vector<2x8x8xf32> -> vector<2x8x8xf32>
    "tpu.trace_stop"() : () -> ()
    %cst_109 = arith.constant 0.176776692 : f32
    %274 = vector.broadcast %cst_109 : f32 to vector<2x8x8xf32>
    %275 = arith.mulf %273, %274 : vector<2x8x8xf32>
    %cst_110 = arith.constant dense<0xFF800000> : vector<2x8xf32>
    %276 = vector.multi_reduction <maximumf>, %275, %cst_110 [2] : vector<2x8x8xf32> to vector<2x8xf32>
    %277 = vector.shape_cast %276 : vector<2x8xf32> to vector<2x8x1xf32>
    %278 = vector.broadcast %277 : vector<2x8x1xf32> to vector<2x8x8xf32>
    %279 = arith.subf %275, %278 : vector<2x8x8xf32>
    %280 = math.exp %279 : vector<2x8x8xf32>
    %cst_111 = arith.constant dense<0.000000e+00> : vector<2x8xf32>
    %281 = vector.multi_reduction <add>, %280, %cst_111 [2] : vector<2x8x8xf32> to vector<2x8xf32>
    %282 = vector.shape_cast %281 : vector<2x8xf32> to vector<2x8x1xf32>
    %283 = tpu.reciprocal %282 {approx = true} : vector<2x8x1xf32> -> vector<2x8x1xf32>
    %284 = vector.broadcast %283 : vector<2x8x1xf32> to vector<2x8x8xf32>
    %285 = arith.mulf %280, %284 : vector<2x8x8xf32>
    %286 = arith.truncf %285 : vector<2x8x8xf32> to vector<2x8x8xbf16>
    "tpu.trace_start"() <{level = 10 : i32, message = "bqk,bkd->bqd"}> : () -> ()
    %cst_112 = arith.constant dense<0.000000e+00> : vector<2x8x32xf32>
    %287 = tpu.matmul %286, %272, %cst_112 {dimension_numbers = #tpu.dot_dimension_numbers<[2], [1], [1], [2], [0, 0, 0, 1, 1, 2], [0], [0]>} : vector<2x8x8xbf16>, vector<2x8x32xbf16>, vector<2x8x32xf32> -> vector<2x8x32xf32>
    "tpu.trace_stop"() : () -> ()
    %288 = vector.shape_cast %287 : vector<2x8x32xf32> to vector<16x32xf32>
    %289 = arith.truncf %288 : vector<16x32xf32> to vector<16x32xbf16>
    %290 = vector.extract_strided_slice %190 {offsets = [64, 0], sizes = [32, 128], strides = [1, 1]} : vector<128x128xbf16> to vector<32x128xbf16>
    %cst_113 = arith.constant dense<0.000000e+00> : vector<16x128xf32>
    %291 = tpu.matmul %289, %290, %cst_113 {dimension_numbers = #tpu.dot_dimension_numbers<[1], [0], [0], [1], [0, 0, 1, 1], [], []>} : vector<16x32xbf16>, vector<32x128xbf16>, vector<16x128xf32> -> vector<16x128xf32>
    %292 = arith.addf %266, %291 : vector<16x128xf32>
    %293 = vector.extract_strided_slice %211 {offsets = [0, 0, 96], sizes = [2, 8, 32], strides = [1, 1, 1]} : vector<2x8x128xf32> to vector<2x8x32xf32>
    %294 = arith.truncf %293 : vector<2x8x32xf32> to vector<2x8x32xbf16>
    %295 = vector.extract_strided_slice %212 {offsets = [0, 0, 96], sizes = [2, 8, 32], strides = [1, 1, 1]} : vector<2x8x128xf32> to vector<2x8x32xf32>
    %296 = arith.truncf %295 : vector<2x8x32xf32> to vector<2x8x32xbf16>
    %297 = vector.extract_strided_slice %213 {offsets = [0, 0, 96], sizes = [2, 8, 32], strides = [1, 1, 1]} : vector<2x8x128xf32> to vector<2x8x32xf32>
    %298 = arith.truncf %297 : vector<2x8x32xf32> to vector<2x8x32xbf16>
    "tpu.trace_start"() <{level = 10 : i32, message = "bqd,bkd->bqk"}> : () -> ()
    %cst_114 = arith.constant dense<0.000000e+00> : vector<2x8x8xf32>
    %299 = tpu.matmul %294, %296, %cst_114 {dimension_numbers = #tpu.dot_dimension_numbers<[2], [2], [1], [1], [0, 0, 0, 1, 1, 1], [0], [0]>} : vector<2x8x32xbf16>, vector<2x8x32xbf16>, vector<2x8x8xf32> -> vector<2x8x8xf32>
    "tpu.trace_stop"() : () -> ()
    %cst_115 = arith.constant 0.176776692 : f32
    %300 = vector.broadcast %cst_115 : f32 to vector<2x8x8xf32>
    %301 = arith.mulf %299, %300 : vector<2x8x8xf32>
    %cst_116 = arith.constant dense<0xFF800000> : vector<2x8xf32>
    %302 = vector.multi_reduction <maximumf>, %301, %cst_116 [2] : vector<2x8x8xf32> to vector<2x8xf32>
    %303 = vector.shape_cast %302 : vector<2x8xf32> to vector<2x8x1xf32>
    %304 = vector.broadcast %303 : vector<2x8x1xf32> to vector<2x8x8xf32>
    %305 = arith.subf %301, %304 : vector<2x8x8xf32>
    %306 = math.exp %305 : vector<2x8x8xf32>
    %cst_117 = arith.constant dense<0.000000e+00> : vector<2x8xf32>
    %307 = vector.multi_reduction <add>, %306, %cst_117 [2] : vector<2x8x8xf32> to vector<2x8xf32>
    %308 = vector.shape_cast %307 : vector<2x8xf32> to vector<2x8x1xf32>
    %309 = tpu.reciprocal %308 {approx = true} : vector<2x8x1xf32> -> vector<2x8x1xf32>
    %310 = vector.broadcast %309 : vector<2x8x1xf32> to vector<2x8x8xf32>
    %311 = arith.mulf %306, %310 : vector<2x8x8xf32>
    %312 = arith.truncf %311 : vector<2x8x8xf32> to vector<2x8x8xbf16>
    "tpu.trace_start"() <{level = 10 : i32, message = "bqk,bkd->bqd"}> : () -> ()
    %cst_118 = arith.constant dense<0.000000e+00> : vector<2x8x32xf32>
    %313 = tpu.matmul %312, %298, %cst_118 {dimension_numbers = #tpu.dot_dimension_numbers<[2], [1], [1], [2], [0, 0, 0, 1, 1, 2], [0], [0]>} : vector<2x8x8xbf16>, vector<2x8x32xbf16>, vector<2x8x32xf32> -> vector<2x8x32xf32>
    "tpu.trace_stop"() : () -> ()
    %314 = vector.shape_cast %313 : vector<2x8x32xf32> to vector<16x32xf32>
    %315 = arith.truncf %314 : vector<16x32xf32> to vector<16x32xbf16>
    %316 = vector.extract_strided_slice %190 {offsets = [96, 0], sizes = [32, 128], strides = [1, 1]} : vector<128x128xbf16> to vector<32x128xbf16>
    %cst_119 = arith.constant dense<0.000000e+00> : vector<16x128xf32>
    %317 = tpu.matmul %315, %316, %cst_119 {dimension_numbers = #tpu.dot_dimension_numbers<[1], [0], [0], [1], [0, 0, 1, 1], [], []>} : vector<16x32xbf16>, vector<32x128xbf16>, vector<16x128xf32> -> vector<16x128xf32>
    %318 = arith.addf %292, %317 : vector<16x128xf32>
    %319 = arith.addf %182, %318 : vector<16x128xf32>
    %c0_120 = arith.constant 0 : index
    %c0_121 = arith.constant 0 : index
    %c0_122 = arith.constant 0 : index
    %320 = vector.load %arg21[%c0_120, %c0_121, %c0_122] : memref<1x1x128xf32, #tpu.memory_space<vmem>>, vector<1x1x128xf32>
    %321 = vector.shape_cast %320 : vector<1x1x128xf32> to vector<1x128xf32>
    %c0_123 = arith.constant 0 : index
    %c0_124 = arith.constant 0 : index
    %c0_125 = arith.constant 0 : index
    %322 = vector.load %arg22[%c0_123, %c0_124, %c0_125] : memref<1x1x128xf32, #tpu.memory_space<vmem>>, vector<1x1x128xf32>
    %323 = vector.shape_cast %322 : vector<1x1x128xf32> to vector<1x128xf32>
    %cst_126 = arith.constant dense<0.000000e+00> : vector<16xf32>
    %324 = vector.multi_reduction <add>, %319, %cst_126 [1] : vector<16x128xf32> to vector<16xf32>
    %325 = vector.shape_cast %324 : vector<16xf32> to vector<16x1xf32>
    %cst_127 = arith.constant 1.280000e+02 : f32
    %326 = vector.broadcast %cst_127 : f32 to vector<16x1xf32>
    %327 = arith.divf %325, %326 : vector<16x1xf32>
    %328 = vector.broadcast %327 : vector<16x1xf32> to vector<16x128xf32>
    %329 = arith.subf %319, %328 : vector<16x128xf32>
    %330 = arith.mulf %329, %329 : vector<16x128xf32>
    %cst_128 = arith.constant dense<0.000000e+00> : vector<16xf32>
    %331 = vector.multi_reduction <add>, %330, %cst_128 [1] : vector<16x128xf32> to vector<16xf32>
    %332 = vector.shape_cast %331 : vector<16xf32> to vector<16x1xf32>
    %cst_129 = arith.constant 1.280000e+02 : f32
    %333 = vector.broadcast %cst_129 : f32 to vector<16x1xf32>
    %334 = arith.divf %332, %333 : vector<16x1xf32>
    %335 = vector.broadcast %327 : vector<16x1xf32> to vector<16x128xf32>
    %336 = arith.subf %319, %335 : vector<16x128xf32>
    %cst_130 = arith.constant 9.99999974E-6 : f32
    %337 = vector.broadcast %cst_130 : f32 to vector<16x1xf32>
    %338 = arith.addf %334, %337 : vector<16x1xf32>
    %339 = math.rsqrt %338 : vector<16x1xf32>
    %340 = vector.broadcast %339 : vector<16x1xf32> to vector<16x128xf32>
    %341 = arith.mulf %336, %340 : vector<16x128xf32>
    %342 = vector.broadcast %321 : vector<1x128xf32> to vector<16x128xf32>
    %343 = arith.mulf %341, %342 : vector<16x128xf32>
    %344 = vector.broadcast %323 : vector<1x128xf32> to vector<16x128xf32>
    %345 = arith.addf %343, %344 : vector<16x128xf32>
    %346 = arith.truncf %345 : vector<16x128xf32> to vector<16x128xbf16>
    %c0_131 = arith.constant 0 : index
    %c0_132 = arith.constant 0 : index
    %c0_133 = arith.constant 0 : index
    %347 = vector.load %arg25[%c0_131, %c0_132, %c0_133] : memref<1x128x256xbf16, #tpu.memory_space<vmem>>, vector<1x128x256xbf16>
    %348 = vector.shape_cast %347 : vector<1x128x256xbf16> to vector<128x256xbf16>
    %cst_134 = arith.constant dense<0.000000e+00> : vector<16x256xf32>
    %349 = tpu.matmul %346, %348, %cst_134 {dimension_numbers = #tpu.dot_dimension_numbers<[1], [0], [0], [1], [0, 0, 1, 1], [], []>} : vector<16x128xbf16>, vector<128x256xbf16>, vector<16x256xf32> -> vector<16x256xf32>
    %c0_135 = arith.constant 0 : index
    %c0_136 = arith.constant 0 : index
    %c0_137 = arith.constant 0 : index
    %350 = vector.load %arg26[%c0_135, %c0_136, %c0_137] : memref<1x1x256xf32, #tpu.memory_space<vmem>>, vector<1x1x256xf32>
    %351 = vector.shape_cast %350 : vector<1x1x256xf32> to vector<1x256xf32>
    %352 = vector.broadcast %351 : vector<1x256xf32> to vector<16x256xf32>
    %353 = arith.addf %349, %352 : vector<16x256xf32>
    %cst_138 = arith.constant 0.000000e+00 : f32
    %354 = vector.broadcast %cst_138 : f32 to vector<16x256xf32>
    %355 = arith.maximumf %353, %354 : vector<16x256xf32>
    %356 = arith.truncf %355 : vector<16x256xf32> to vector<16x256xbf16>
    %c0_139 = arith.constant 0 : index
    %c0_140 = arith.constant 0 : index
    %c0_141 = arith.constant 0 : index
    %357 = vector.load %arg27[%c0_139, %c0_140, %c0_141] : memref<1x256x128xbf16, #tpu.memory_space<vmem>>, vector<1x256x128xbf16>
    %358 = vector.shape_cast %357 : vector<1x256x128xbf16> to vector<256x128xbf16>
    %cst_142 = arith.constant dense<0.000000e+00> : vector<16x128xf32>
    %359 = tpu.matmul %356, %358, %cst_142 {dimension_numbers = #tpu.dot_dimension_numbers<[1], [0], [0], [1], [0, 0, 1, 1], [], []>} : vector<16x256xbf16>, vector<256x128xbf16>, vector<16x128xf32> -> vector<16x128xf32>
    %c0_143 = arith.constant 0 : index
    %c0_144 = arith.constant 0 : index
    %c0_145 = arith.constant 0 : index
    %360 = vector.load %arg28[%c0_143, %c0_144, %c0_145] : memref<1x1x128xf32, #tpu.memory_space<vmem>>, vector<1x1x128xf32>
    %361 = vector.shape_cast %360 : vector<1x1x128xf32> to vector<1x128xf32>
    %362 = vector.broadcast %361 : vector<1x128xf32> to vector<16x128xf32>
    %363 = arith.addf %359, %362 : vector<16x128xf32>
    %364 = arith.addf %345, %363 : vector<16x128xf32>
    %c0_146 = arith.constant 0 : index
    %c0_147 = arith.constant 0 : index
    %c0_148 = arith.constant 0 : index
    %365 = vector.load %arg23[%c0_146, %c0_147, %c0_148] : memref<1x1x128xf32, #tpu.memory_space<vmem>>, vector<1x1x128xf32>
    %366 = vector.shape_cast %365 : vector<1x1x128xf32> to vector<1x128xf32>
    %c0_149 = arith.constant 0 : index
    %c0_150 = arith.constant 0 : index
    %c0_151 = arith.constant 0 : index
    %367 = vector.load %arg24[%c0_149, %c0_150, %c0_151] : memref<1x1x128xf32, #tpu.memory_space<vmem>>, vector<1x1x128xf32>
    %368 = vector.shape_cast %367 : vector<1x1x128xf32> to vector<1x128xf32>
    %cst_152 = arith.constant dense<0.000000e+00> : vector<16xf32>
    %369 = vector.multi_reduction <add>, %364, %cst_152 [1] : vector<16x128xf32> to vector<16xf32>
    %370 = vector.shape_cast %369 : vector<16xf32> to vector<16x1xf32>
    %cst_153 = arith.constant 1.280000e+02 : f32
    %371 = vector.broadcast %cst_153 : f32 to vector<16x1xf32>
    %372 = arith.divf %370, %371 : vector<16x1xf32>
    %373 = vector.broadcast %372 : vector<16x1xf32> to vector<16x128xf32>
    %374 = arith.subf %364, %373 : vector<16x128xf32>
    %375 = arith.mulf %374, %374 : vector<16x128xf32>
    %cst_154 = arith.constant dense<0.000000e+00> : vector<16xf32>
    %376 = vector.multi_reduction <add>, %375, %cst_154 [1] : vector<16x128xf32> to vector<16xf32>
    %377 = vector.shape_cast %376 : vector<16xf32> to vector<16x1xf32>
    %cst_155 = arith.constant 1.280000e+02 : f32
    %378 = vector.broadcast %cst_155 : f32 to vector<16x1xf32>
    %379 = arith.divf %377, %378 : vector<16x1xf32>
    %380 = vector.broadcast %372 : vector<16x1xf32> to vector<16x128xf32>
    %381 = arith.subf %364, %380 : vector<16x128xf32>
    %cst_156 = arith.constant 9.99999974E-6 : f32
    %382 = vector.broadcast %cst_156 : f32 to vector<16x1xf32>
    %383 = arith.addf %379, %382 : vector<16x1xf32>
    %384 = math.rsqrt %383 : vector<16x1xf32>
    %385 = vector.broadcast %384 : vector<16x1xf32> to vector<16x128xf32>
    %386 = arith.mulf %381, %385 : vector<16x128xf32>
    %387 = vector.broadcast %366 : vector<1x128xf32> to vector<16x128xf32>
    %388 = arith.mulf %386, %387 : vector<16x128xf32>
    %389 = vector.broadcast %368 : vector<1x128xf32> to vector<16x128xf32>
    %390 = arith.addf %388, %389 : vector<16x128xf32>
    %391 = vector.shape_cast %390 : vector<16x128xf32> to vector<2x8x128xf32>
    %c0_157 = arith.constant 0 : index
    %c0_158 = arith.constant 0 : index
    %c0_159 = arith.constant 0 : index
    %392 = vector.load %arg29[%c0_157, %c0_158, %c0_159] : memref<2x8x128xf32, #tpu.memory_space<vmem>>, vector<2x8x128xf32>
    tpu.vector_store %arg29[%c0_157, %c0_158, %c0_159], %391 {strides = array<i32>} : memref<2x8x128xf32, #tpu.memory_space<vmem>>, vector<2x8x128xf32>,
    return
  }
  func.func @transform_0(%arg0: i32) -> (i32, i32, i32) {
    %c0_i32 = arith.constant 0 : i32
    %c0_i32_0 = arith.constant 0 : i32
    %c0_i32_1 = arith.constant 0 : i32
    %c0_i32_2 = arith.constant 0 : i32
    return %c0_i32, %c0_i32_0, %c0_i32_1 : i32, i32, i32
  }
  func.func @transform_1(%arg0: i32) -> (i32, i32) {
    %c0_i32 = arith.constant 0 : i32
    %c0_i32_0 = arith.constant 0 : i32
    %c0_i32_1 = arith.constant 0 : i32
    return %c0_i32, %c0_i32_0 : i32, i32
  }
  func.func @transform_2(%arg0: i32) -> (i32, i32, i32) {
    %c0_i32 = arith.constant 0 : i32
    %c0_i32_0 = arith.constant 0 : i32
    %c0_i32_1 = arith.constant 0 : i32
    return %arg0, %c0_i32, %c0_i32_0 : i32, i32, i32
  }
  func.func @transform_3(%arg0: i32) -> (i32, i32, i32) {
    %c0_i32 = arith.constant 0 : i32
    %c0_i32_0 = arith.constant 0 : i32
    %c0_i32_1 = arith.constant 0 : i32
    return %arg0, %c0_i32, %c0_i32_0 : i32, i32, i32
  }
  func.func @transform_4(%arg0: i32) -> (i32, i32, i32) {
    %c0_i32 = arith.constant 0 : i32
    %c0_i32_0 = arith.constant 0 : i32
    %c0_i32_1 = arith.constant 0 : i32
    return %arg0, %c0_i32, %c0_i32_0 : i32, i32, i32
  }
  func.func @transform_5(%arg0: i32) -> (i32, i32, i32) {
    %c0_i32 = arith.constant 0 : i32
    %c0_i32_0 = arith.constant 0 : i32
    %c0_i32_1 = arith.constant 0 : i32
    return %arg0, %c0_i32, %c0_i32_0 : i32, i32, i32
  }
  func.func @transform_6(%arg0: i32) -> (i32, i32, i32) {
    %c0_i32 = arith.constant 0 : i32
    %c0_i32_0 = arith.constant 0 : i32
    %c0_i32_1 = arith.constant 0 : i32
    return %arg0, %c0_i32, %c0_i32_0 : i32, i32, i32
  }
  func.func @transform_7(%arg0: i32) -> (i32, i32, i32) {
    %c0_i32 = arith.constant 0 : i32
    %c0_i32_0 = arith.constant 0 : i32
    %c0_i32_1 = arith.constant 0 : i32
    return %arg0, %c0_i32, %c0_i32_0 : i32, i32, i32
  }
  func.func @transform_8(%arg0: i32) -> (i32, i32, i32) {
    %c0_i32 = arith.constant 0 : i32
    %c0_i32_0 = arith.constant 0 : i32
    %c0_i32_1 = arith.constant 0 : i32
    return %arg0, %c0_i32, %c0_i32_0 : i32, i32, i32
  }
  func.func @transform_9(%arg0: i32) -> (i32, i32, i32) {
    %c0_i32 = arith.constant 0 : i32
    %c0_i32_0 = arith.constant 0 : i32
    %c0_i32_1 = arith.constant 0 : i32
    return %arg0, %c0_i32, %c0_i32_0 : i32, i32, i32
  }
  func.func @transform_10(%arg0: i32) -> (i32, i32, i32) {
    %c0_i32 = arith.constant 0 : i32
    %c0_i32_0 = arith.constant 0 : i32
    %c0_i32_1 = arith.constant 0 : i32
    return %arg0, %c0_i32, %c0_i32_0 : i32, i32, i32
  }
  func.func @transform_11(%arg0: i32) -> (i32, i32, i32) {
    %c0_i32 = arith.constant 0 : i32
    %c0_i32_0 = arith.constant 0 : i32
    %c0_i32_1 = arith.constant 0 : i32
    return %arg0, %c0_i32, %c0_i32_0 : i32, i32, i32
  }
  func.func @transform_12(%arg0: i32) -> (i32, i32, i32) {
    %c0_i32 = arith.constant 0 : i32
    %c0_i32_0 = arith.constant 0 : i32
    %c0_i32_1 = arith.constant 0 : i32
    return %arg0, %c0_i32, %c0_i32_0 : i32, i32, i32
  }
  func.func @transform_13(%arg0: i32) -> (i32, i32, i32) {
    %c0_i32 = arith.constant 0 : i32
    %c0_i32_0 = arith.constant 0 : i32
    %c0_i32_1 = arith.constant 0 : i32
    return %arg0, %c0_i32, %c0_i32_0 : i32, i32, i32
  }
  func.func @transform_14(%arg0: i32) -> (i32, i32, i32) {
    %c0_i32 = arith.constant 0 : i32
    %c0_i32_0 = arith.constant 0 : i32
    %c0_i32_1 = arith.constant 0 : i32
    return %arg0, %c0_i32, %c0_i32_0 : i32, i32, i32
  }
  func.func @transform_15(%arg0: i32) -> (i32, i32, i32) {
    %c0_i32 = arith.constant 0 : i32
    %c0_i32_0 = arith.constant 0 : i32
    %c0_i32_1 = arith.constant 0 : i32
    return %arg0, %c0_i32, %c0_i32_0 : i32, i32, i32
  }
  func.func @transform_16(%arg0: i32) -> (i32, i32, i32) {
    %c0_i32 = arith.constant 0 : i32
    %c0_i32_0 = arith.constant 0 : i32
    %c0_i32_1 = arith.constant 0 : i32
    return %arg0, %c0_i32, %c0_i32_0 : i32, i32, i32
  }
  func.func @transform_17(%arg0: i32) -> (i32, i32, i32) {
    %c0_i32 = arith.constant 0 : i32
    %c0_i32_0 = arith.constant 0 : i32
    %c0_i32_1 = arith.constant 0 : i32
    return %arg0, %c0_i32, %c0_i32_0 : i32, i32, i32
  }
  func.func @transform_18(%arg0: i32) -> (i32, i32, i32) {
    %c0_i32 = arith.constant 0 : i32
    %c0_i32_0 = arith.constant 0 : i32
    %c0_i32_1 = arith.constant 0 : i32
    return %arg0, %c0_i32, %c0_i32_0 : i32, i32, i32
  }
  func.func @transform_19(%arg0: i32) -> (i32, i32, i32) {
    %c0_i32 = arith.constant 0 : i32
    %c0_i32_0 = arith.constant 0 : i32
    %c0_i32_1 = arith.constant 0 : i32
    return %arg0, %c0_i32, %c0_i32_0 : i32, i32, i32
  }
  func.func @transform_20(%arg0: i32) -> (i32, i32, i32) {
    %c0_i32 = arith.constant 0 : i32
    %c0_i32_0 = arith.constant 0 : i32
    %c0_i32_1 = arith.constant 0 : i32
    return %arg0, %c0_i32, %c0_i32_0 : i32, i32, i32
  }
  func.func @transform_21(%arg0: i32) -> (i32, i32, i32) {
    %c0_i32 = arith.constant 0 : i32
    %c0_i32_0 = arith.constant 0 : i32
    %c0_i32_1 = arith.constant 0 : i32
    return %arg0, %c0_i32, %c0_i32_0 : i32, i32, i32
  }
  func.func @transform_22(%arg0: i32) -> (i32, i32, i32) {
    %c0_i32 = arith.constant 0 : i32
    %c0_i32_0 = arith.constant 0 : i32
    %c0_i32_1 = arith.constant 0 : i32
    return %arg0, %c0_i32, %c0_i32_0 : i32, i32, i32
  }
  func.func @transform_23(%arg0: i32) -> (i32, i32, i32) {
    %c0_i32 = arith.constant 0 : i32
    %c0_i32_0 = arith.constant 0 : i32
    %c0_i32_1 = arith.constant 0 : i32
    return %arg0, %c0_i32, %c0_i32_0 : i32, i32, i32
  }
  func.func @transform_24(%arg0: i32) -> (i32, i32, i32) {
    %c0_i32 = arith.constant 0 : i32
    %c0_i32_0 = arith.constant 0 : i32
    %c0_i32_1 = arith.constant 0 : i32
    return %arg0, %c0_i32, %c0_i32_0 : i32, i32, i32
  }
  func.func @transform_25(%arg0: i32) -> (i32, i32, i32) {
    %c0_i32 = arith.constant 0 : i32
    %c0_i32_0 = arith.constant 0 : i32
    %c0_i32_1 = arith.constant 0 : i32
    return %arg0, %c0_i32, %c0_i32_0 : i32, i32, i32
  }
  func.func @transform_26(%arg0: i32) -> (i32, i32, i32) {
    %c0_i32 = arith.constant 0 : i32
    %c0_i32_0 = arith.constant 0 : i32
    %c0_i32_1 = arith.constant 0 : i32
    return %arg0, %c0_i32, %c0_i32_0 : i32, i32, i32
  }
  func.func @transform_27(%arg0: i32) -> (i32, i32, i32) {
    %c0_i32 = arith.constant 0 : i32
    %c0_i32_0 = arith.constant 0 : i32
    %c0_i32_1 = arith.constant 0 : i32
    return %arg0, %c0_i32, %c0_i32_0 : i32, i32, i32
  }
  func.func @transform_28(%arg0: i32) -> (i32, i32, i32) {
    %c0_i32 = arith.constant 0 : i32
    %c0_i32_0 = arith.constant 0 : i32
    %c0_i32_1 = arith.constant 0 : i32
    %c0_i32_2 = arith.constant 0 : i32
    return %c0_i32, %c0_i32_0, %c0_i32_1 : i32, i32, i32
  }
}

</mosaic_0001>

<llo_original>
// kernel: tpu_custom_call.1
$region0: #{tpu_custom_call.1}
  #allocation0 [shape = 'u32[]', space=smem, size = 0x4, offset = 0x4, fixed_abs, tag = 'smem constant byte address 0x4 - core index']
  #allocation1 [shape = 'u32[144,128]{1,0:T(1,128)}', space=vmem, size = 0x12000, scoped, tag = 'internal scratch']
  %s0 = inlined_call_operand.hbm [shape: f32[2,8,128], index: 0, kind: input, shape index: {}]
  %s1 = inlined_call_operand.hbm [shape: f32[8,8], index: 1, kind: input, shape index: {}]
  %s2 = inlined_call_operand.hbm [shape: bf16[2,128,128], index: 2, kind: input, shape index: {}]
  %s3 = inlined_call_operand.vmem [shape: f32[2,1,128], index: 3, kind: input, shape index: {}]
  %s4 = inlined_call_operand.hbm [shape: bf16[2,128,128], index: 4, kind: input, shape index: {}]
  %s5 = inlined_call_operand.vmem [shape: f32[2,1,128], index: 5, kind: input, shape index: {}]
  %s6 = inlined_call_operand.hbm [shape: bf16[2,128,128], index: 6, kind: input, shape index: {}]
  %s7 = inlined_call_operand.vmem [shape: f32[2,1,128], index: 7, kind: input, shape index: {}]
  %s8 = inlined_call_operand.hbm [shape: bf16[2,128,128], index: 8, kind: input, shape index: {}]
  %s9 = inlined_call_operand.vmem [shape: f32[2,1,128], index: 9, kind: input, shape index: {}]
  %s10 = inlined_call_operand.hbm [shape: bf16[2,128,128], index: 10, kind: input, shape index: {}]
  %s11 = inlined_call_operand.vmem [shape: f32[2,1,128], index: 11, kind: input, shape index: {}]
  %s12 = inlined_call_operand.hbm [shape: bf16[2,128,128], index: 12, kind: input, shape index: {}]
  %s13 = inlined_call_operand.vmem [shape: f32[2,1,128], index: 13, kind: input, shape index: {}]
  %s14 = inlined_call_operand.hbm [shape: bf16[2,128,128], index: 14, kind: input, shape index: {}]
  %s15 = inlined_call_operand.vmem [shape: f32[2,1,128], index: 15, kind: input, shape index: {}]
  %s16 = inlined_call_operand.hbm [shape: bf16[2,128,128], index: 16, kind: input, shape index: {}]
  %s17 = inlined_call_operand.vmem [shape: f32[2,1,128], index: 17, kind: input, shape index: {}]
  %s18 = inlined_call_operand.vmem [shape: f32[2,1,128], index: 18, kind: input, shape index: {}]
  %s19 = inlined_call_operand.vmem [shape: f32[2,1,128], index: 19, kind: input, shape index: {}]
  %s20 = inlined_call_operand.vmem [shape: f32[2,1,128], index: 20, kind: input, shape index: {}]
  %s21 = inlined_call_operand.vmem [shape: f32[2,1,128], index: 21, kind: input, shape index: {}]
  %s22 = inlined_call_operand.vmem [shape: f32[2,1,128], index: 22, kind: input, shape index: {}]
  %s23 = inlined_call_operand.vmem [shape: f32[2,1,128], index: 23, kind: input, shape index: {}]
  %s24 = inlined_call_operand.hbm [shape: bf16[2,128,256], index: 24, kind: input, shape index: {}]
  %s25 = inlined_call_operand.vmem [shape: f32[2,1,256], index: 25, kind: input, shape index: {}]
  %s26 = inlined_call_operand.hbm [shape: bf16[2,256,128], index: 26, kind: input, shape index: {}]
  %s27 = inlined_call_operand.vmem [shape: f32[2,1,128], index: 27, kind: input, shape index: {}]
  %s28 = inlined_call_operand.hbm [shape: f32[2,8,128], index: 28, kind: output, shape index: {}]
  %s29 = sld [smem:[#allocation0]]
  $region197: #{tpu_custom_call.1} parent=0
    _
  %s31 = ssub.s32 1, %s29
  %s32 = scalar_select 0, %s31, %s29
  $region1: #{tpu_custom_call.1} parent=0
    #allocation2 [shape = 'u8[8192]{0}', space=vmem, size = 0x2000, scoped, tag = 'input window, operand 0, single buffered']
    #allocation3 [shape = 's32[2]{0}', space=sflag, size = 0x8, scoped, tag = 'scoped memory for tpu_custom_call.1']
    #allocation4 [shape = 's32[2]{0}', space=sflag, size = 0x8, scoped, tag = 'scoped memory for tpu_custom_call.1']
    #allocation5 [shape = 'u8[4096]{0}', space=vmem, size = 0x1000, scoped, tag = 'input window, operand 1, single buffered']
    #allocation6 [shape = 's32[1]{0}', space=sflag, size = 0x4, scoped, tag = 'scoped memory for tpu_custom_call.1']
    #allocation7 [shape = 'u8[65536]{0}', space=vmem, size = 0x10000, scoped, tag = 'input window, operand 2']
    #allocation8 [shape = 'u8[65536]{0}', space=vmem, size = 0x10000, scoped, tag = 'input window, operand 4']
    #allocation9 [shape = 'u8[65536]{0}', space=vmem, size = 0x10000, scoped, tag = 'input window, operand 6']
    #allocation10 [shape = 'u8[65536]{0}', space=vmem, size = 0x10000, scoped, tag = 'input window, operand 8']
    #allocation11 [shape = 'u8[65536]{0}', space=vmem, size = 0x10000, scoped, tag = 'input window, operand 10']
    #allocation12 [shape = 'u8[65536]{0}', space=vmem, size = 0x10000, scoped, tag = 'input window, operand 12']
    #allocation13 [shape = 'u8[65536]{0}', space=vmem, size = 0x10000, scoped, tag = 'input window, operand 14']
    #allocation14 [shape = 'u8[65536]{0}', space=vmem, size = 0x10000, scoped, tag = 'input window, operand 16']
    #allocation15 [shape = 'u8[131072]{0}', space=vmem, size = 0x20000, scoped, tag = 'input window, operand 24']
    #allocation16 [shape = 'u8[131072]{0}', space=vmem, size = 0x20000, scoped, tag = 'input window, operand 26']
    #allocation17 [shape = 'u8[8192]{0}', space=vmem, size = 0x2000, scoped, tag = 'output window, operand 0, single buffered']
    %33 = vsyncpa [#allocation3], 0
    %34 = vsyncpa [#allocation6], 0
    %35 = vsyncpa [#allocation4], 0
    loop: start=0, step=1, limit=4
    $region2: #{tpu_custom_call.1} parent=1 // loop_pre_header
      _
    $region3: #{tpu_custom_call.1} parent=1 // loop_header
      %s37 = sphi 0, %s41
      %p38 = scmp.ge.s32.totalorder %s37, 4
      %s45 = sphi 0, %s45
      %s47 = sphi 0, %s45
      %s48 = sphi 0, %s47
      %s62 = sphi 0, %s48
      %s66 = sphi 0, %s66
      %s68 = sphi 0, %s66
      %s69 = sphi 0, %s68
      %s83 = sphi 0, %s69
      %s89 = sphi 0, %s91
      %s92 = sphi 0, %s89
      %s93 = sphi 0, %s92
      %s109 = sphi 0, %s93
      %s115 = sphi 0, %s117
      %s118 = sphi 0, %s115
      %s119 = sphi 0, %s118
      %s135 = sphi 0, %s119
      %s141 = sphi 0, %s143
      %s144 = sphi 0, %s141
      %s145 = sphi 0, %s144
      %s161 = sphi 0, %s145
      %s167 = sphi 0, %s169
      %s170 = sphi 0, %s167
      %s171 = sphi 0, %s170
      %s187 = sphi 0, %s171
      %s193 = sphi 0, %s195
      %s196 = sphi 0, %s193
      %s197 = sphi 0, %s196
      %s213 = sphi 0, %s197
      %s219 = sphi 0, %s221
      %s222 = sphi 0, %s219
      %s223 = sphi 0, %s222
      %s239 = sphi 0, %s223
      %s245 = sphi 0, %s247
      %s248 = sphi 0, %s245
      %s249 = sphi 0, %s248
      %s265 = sphi 0, %s249
      %s271 = sphi 0, %s273
      %s274 = sphi 0, %s271
      %s275 = sphi 0, %s274
      %s291 = sphi 0, %s275
      %s297 = sphi 0, %s299
      %s300 = sphi 0, %s297
      %s301 = sphi 0, %s300
      %s317 = sphi 0, %s301
      %s323 = sphi 0, %s325
      %s326 = sphi 0, %s323
      %s327 = sphi 0, %s326
      %s343 = sphi 0, %s327
      %s349 = sphi 0, %s351
      %s352 = sphi 0, %s349
      %s353 = sphi 0, %s352
      %s369 = sphi 0, %s353
      %s375 = sphi 0, %s377
      %s378 = sphi 0, %s375
      %s379 = sphi 0, %s378
      %s395 = sphi 0, %s379
      %s401 = sphi 0, %s403
      %s404 = sphi 0, %s401
      %s405 = sphi 0, %s404
      %s421 = sphi 0, %s405
      %s427 = sphi 0, %s429
      %s430 = sphi 0, %s427
      %s431 = sphi 0, %s430
      %s447 = sphi 0, %s431
      %s453 = sphi 0, %s455
      %s456 = sphi 0, %s453
      %s457 = sphi 0, %s456
      %s473 = sphi 0, %s457
      %s479 = sphi 0, %s481
      %s482 = sphi 0, %s479
      %s483 = sphi 0, %s482
      %s499 = sphi 0, %s483
      %s505 = sphi 0, %s507
      %s508 = sphi 0, %s505
      %s509 = sphi 0, %s508
      %s525 = sphi 0, %s509
      %s531 = sphi 0, %s533
      %s534 = sphi 0, %s531
      %s535 = sphi 0, %s534
      %s551 = sphi 0, %s535
      %s557 = sphi 0, %s559
      %s560 = sphi 0, %s557
      %s561 = sphi 0, %s560
      %s577 = sphi 0, %s561
      %s583 = sphi 0, %s585
      %s586 = sphi 0, %s583
      %s587 = sphi 0, %s586
      %s603 = sphi 0, %s587
      %s609 = sphi 0, %s611
      %s612 = sphi 0, %s609
      %s613 = sphi 0, %s612
      %s629 = sphi 0, %s613
      %s635 = sphi 0, %s637
      %s638 = sphi 0, %s635
      %s639 = sphi 0, %s638
      %s655 = sphi 0, %s639
      %s661 = sphi 0, %s663
      %s664 = sphi 0, %s661
      %s665 = sphi 0, %s664
      %s681 = sphi 0, %s665
      %s687 = sphi 0, %s689
      %s690 = sphi 0, %s687
      %s691 = sphi 0, %s690
      %s707 = sphi 0, %s691
      %s713 = sphi 0, %s715
      %s716 = sphi 0, %s713
      %s717 = sphi 0, %s716
      %s733 = sphi 0, %s717
      %s739 = sphi 0, %s741
      %s742 = sphi 0, %s739
      %s743 = sphi 0, %s742
      %s759 = sphi 0, %s743
      %s763 = sphi 0, %s763
      %s765 = sphi 0, %s763
      %s766 = sphi 0, %s765
      %s780 = sphi 0, %s766
    $region4: #{tpu_custom_call.1} parent=1 // loop_header_branch
      %40 = sbr.rel (%p38) target = $region8
    $region5: #{tpu_custom_call.1} parent=1 // loop_body
      %s42 = ssub.s32 %s37, 1
      %s43 = ssub.s32 %s37, 2
      %s44 = sadd.s32 %s37, 1
      %s46 = sadd.s32 %s45, 1
      %p49 = scmp.eq.s32.totalorder %s37, 1
      %p50 = scmp.ne.s32.totalorder %s45, %s47
      %p51 = scmp.eq.s32.totalorder %s37, 0
      %p52 = por %p50, %p51
      %p53 = scmp.ne.s32.totalorder %s45, %s47
      %p54 = scmp.eq.s32.totalorder %s42, 1
      %p55 = por %p53, %p54
      %p56 = scmp.ne.s32.totalorder %s47, %s48
      %p57 = scmp.eq.s32.totalorder %s42, 0
      %p58 = por %p56, %p57
      %p59 = scmp.ne.s32.totalorder %s47, %s48
      %p60 = scmp.eq.s32.totalorder %s43, 1
      %p61 = por %p59, %p60
      %p63 = scmp.ne.s32.totalorder %s48, %s62
      %p64 = scmp.eq.s32.totalorder %s43, 0
      %p65 = por %p63, %p64
      %s67 = sadd.s32 %s66, 1
      %p70 = scmp.eq.s32.totalorder %s37, 1
      %p71 = scmp.ne.s32.totalorder %s66, %s68
      %p72 = scmp.eq.s32.totalorder %s37, 0
      %p73 = por %p71, %p72
      %p74 = scmp.ne.s32.totalorder %s66, %s68
      %p75 = scmp.eq.s32.totalorder %s42, 1
      %p76 = por %p74, %p75
      %p77 = scmp.ne.s32.totalorder %s68, %s69
      %p78 = scmp.eq.s32.totalorder %s42, 0
      %p79 = por %p77, %p78
      %p80 = scmp.ne.s32.totalorder %s68, %s69
      %p81 = scmp.eq.s32.totalorder %s43, 1
      %p82 = por %p80, %p81
      %p84 = scmp.ne.s32.totalorder %s69, %s83
      %p85 = scmp.eq.s32.totalorder %s43, 0
      %p86 = por %p84, %p85
      %s87 = ssub.s32 %s37, %s44
      %p88 = scmp.eq.s32.totalorder %s87, 0
      %s90 = sadd.s32 %s89, 1
      %s91 = scalar_select %p88, %s89, %s90
      %p94 = pneg %p88
      %p95 = scmp.eq.s32.totalorder %s37, 1
      %p96 = por %p94, %p95
      %p97 = scmp.ne.s32.totalorder %s89, %s92
      %p98 = scmp.eq.s32.totalorder %s37, 0
      %p99 = por %p97, %p98
      %p100 = scmp.ne.s32.totalorder %s89, %s92
      %p101 = scmp.eq.s32.totalorder %s42, 1
      %p102 = por %p100, %p101
      %p103 = scmp.ne.s32.totalorder %s92, %s93
      %p104 = scmp.eq.s32.totalorder %s42, 0
      %p105 = por %p103, %p104
      %p106 = scmp.ne.s32.totalorder %s92, %s93
      %p107 = scmp.eq.s32.totalorder %s43, 1
      %p108 = por %p106, %p107
      %p110 = scmp.ne.s32.totalorder %s93, %s109
      %p111 = scmp.eq.s32.totalorder %s43, 0
      %p112 = por %p110, %p111
      %s113 = ssub.s32 %s37, %s44
      %p114 = scmp.eq.s32.totalorder %s113, 0
      %s116 = sadd.s32 %s115, 1
      %s117 = scalar_select %p114, %s115, %s116
      %p120 = pneg %p114
      %p121 = scmp.eq.s32.totalorder %s37, 1
      %p122 = por %p120, %p121
      %p123 = scmp.ne.s32.totalorder %s115, %s118
      %p124 = scmp.eq.s32.totalorder %s37, 0
      %p125 = por %p123, %p124
      %p126 = scmp.ne.s32.totalorder %s115, %s118
      %p127 = scmp.eq.s32.totalorder %s42, 1
      %p128 = por %p126, %p127
      %p129 = scmp.ne.s32.totalorder %s118, %s119
      %p130 = scmp.eq.s32.totalorder %s42, 0
      %p131 = por %p129, %p130
      %p132 = scmp.ne.s32.totalorder %s118, %s119
      %p133 = scmp.eq.s32.totalorder %s43, 1
      %p134 = por %p132, %p133
      %p136 = scmp.ne.s32.totalorder %s119, %s135
      %p137 = scmp.eq.s32.totalorder %s43, 0
      %p138 = por %p136, %p137
      %s139 = ssub.s32 %s37, %s44
      %p140 = scmp.eq.s32.totalorder %s139, 0
      %s142 = sadd.s32 %s141, 1
      %s143 = scalar_select %p140, %s141, %s142
      %p146 = pneg %p140
      %p147 = scmp.eq.s32.totalorder %s37, 1
      %p148 = por %p146, %p147
      %p149 = scmp.ne.s32.totalorder %s141, %s144
      %p150 = scmp.eq.s32.totalorder %s37, 0
      %p151 = por %p149, %p150
      %p152 = scmp.ne.s32.totalorder %s141, %s144
      %p153 = scmp.eq.s32.totalorder %s42, 1
      %p154 = por %p152, %p153
      %p155 = scmp.ne.s32.totalorder %s144, %s145
      %p156 = scmp.eq.s32.totalorder %s42, 0
      %p157 = por %p155, %p156
      %p158 = scmp.ne.s32.totalorder %s144, %s145
      %p159 = scmp.eq.s32.totalorder %s43, 1
      %p160 = por %p158, %p159
      %p162 = scmp.ne.s32.totalorder %s145, %s161
      %p163 = scmp.eq.s32.totalorder %s43, 0
      %p164 = por %p162, %p163
      %s165 = ssub.s32 %s37, %s44
      %p166 = scmp.eq.s32.totalorder %s165, 0
      %s168 = sadd.s32 %s167, 1
      %s169 = scalar_select %p166, %s167, %s168
      %p172 = pneg %p166
      %p173 = scmp.eq.s32.totalorder %s37, 1
      %p174 = por %p172, %p173
      %p175 = scmp.ne.s32.totalorder %s167, %s170
      %p176 = scmp.eq.s32.totalorder %s37, 0
      %p177 = por %p175, %p176
      %p178 = scmp.ne.s32.totalorder %s167, %s170
      %p179 = scmp.eq.s32.totalorder %s42, 1
      %p180 = por %p178, %p179
      %p181 = scmp.ne.s32.totalorder %s170, %s171
      %p182 = scmp.eq.s32.totalorder %s42, 0
      %p183 = por %p181, %p182
      %p184 = scmp.ne.s32.totalorder %s170, %s171
      %p185 = scmp.eq.s32.totalorder %s43, 1
      %p186 = por %p184, %p185
      %p188 = scmp.ne.s32.totalorder %s171, %s187
      %p189 = scmp.eq.s32.totalorder %s43, 0
      %p190 = por %p188, %p189
      %s191 = ssub.s32 %s37, %s44
      %p192 = scmp.eq.s32.totalorder %s191, 0
      %s194 = sadd.s32 %s193, 1
      %s195 = scalar_select %p192, %s193, %s194
      %p198 = pneg %p192
      %p199 = scmp.eq.s32.totalorder %s37, 1
      %p200 = por %p198, %p199
      %p201 = scmp.ne.s32.totalorder %s193, %s196
      %p202 = scmp.eq.s32.totalorder %s37, 0
      %p203 = por %p201, %p202
      %p204 = scmp.ne.s32.totalorder %s193, %s196
      %p205 = scmp.eq.s32.totalorder %s42, 1
      %p206 = por %p204, %p205
      %p207 = scmp.ne.s32.totalorder %s196, %s197
      %p208 = scmp.eq.s32.totalorder %s42, 0
      %p209 = por %p207, %p208
      %p210 = scmp.ne.s32.totalorder %s196, %s197
      %p211 = scmp.eq.s32.totalorder %s43, 1
      %p212 = por %p210, %p211
      %p214 = scmp.ne.s32.totalorder %s197, %s213
      %p215 = scmp.eq.s32.totalorder %s43, 0
      %p216 = por %p214, %p215
      %s217 = ssub.s32 %s37, %s44
      %p218 = scmp.eq.s32.totalorder %s217, 0
      %s220 = sadd.s32 %s219, 1
      %s221 = scalar_select %p218, %s219, %s220
      %p224 = pneg %p218
      %p225 = scmp.eq.s32.totalorder %s37, 1
      %p226 = por %p224, %p225
      %p227 = scmp.ne.s32.totalorder %s219, %s222
      %p228 = scmp.eq.s32.totalorder %s37, 0
      %p229 = por %p227, %p228
      %p230 = scmp.ne.s32.totalorder %s219, %s222
      %p231 = scmp.eq.s32.totalorder %s42, 1
      %p232 = por %p230, %p231
      %p233 = scmp.ne.s32.totalorder %s222, %s223
      %p234 = scmp.eq.s32.totalorder %s42, 0
      %p235 = por %p233, %p234
      %p236 = scmp.ne.s32.totalorder %s222, %s223
      %p237 = scmp.eq.s32.totalorder %s43, 1
      %p238 = por %p236, %p237
      %p240 = scmp.ne.s32.totalorder %s223, %s239
      %p241 = scmp.eq.s32.totalorder %s43, 0
      %p242 = por %p240, %p241
      %s243 = ssub.s32 %s37, %s44
      %p244 = scmp.eq.s32.totalorder %s243, 0
      %s246 = sadd.s32 %s245, 1
      %s247 = scalar_select %p244, %s245, %s246
      %p250 = pneg %p244
      %p251 = scmp.eq.s32.totalorder %s37, 1
      %p252 = por %p250, %p251
      %p253 = scmp.ne.s32.totalorder %s245, %s248
      %p254 = scmp.eq.s32.totalorder %s37, 0
      %p255 = por %p253, %p254
      %p256 = scmp.ne.s32.totalorder %s245, %s248
      %p257 = scmp.eq.s32.totalorder %s42, 1
      %p258 = por %p256, %p257
      %p259 = scmp.ne.s32.totalorder %s248, %s249
      %p260 = scmp.eq.s32.totalorder %s42, 0
      %p261 = por %p259, %p260
      %p262 = scmp.ne.s32.totalorder %s248, %s249
      %p263 = scmp.eq.s32.totalorder %s43, 1
      %p264 = por %p262, %p263
      %p266 = scmp.ne.s32.totalorder %s249, %s265
      %p267 = scmp.eq.s32.totalorder %s43, 0
      %p268 = por %p266, %p267
      %s269 = ssub.s32 %s37, %s44
      %p270 = scmp.eq.s32.totalorder %s269, 0
      %s272 = sadd.s32 %s271, 1
      %s273 = scalar_select %p270, %s271, %s272
      %p276 = pneg %p270
      %p277 = scmp.eq.s32.totalorder %s37, 1
      %p278 = por %p276, %p277
      %p279 = scmp.ne.s32.totalorder %s271, %s274
      %p280 = scmp.eq.s32.totalorder %s37, 0
      %p281 = por %p279, %p280
      %p282 = scmp.ne.s32.totalorder %s271, %s274
      %p283 = scmp.eq.s32.totalorder %s42, 1
      %p284 = por %p282, %p283
      %p285 = scmp.ne.s32.totalorder %s274, %s275
      %p286 = scmp.eq.s32.totalorder %s42, 0
      %p287 = por %p285, %p286
      %p288 = scmp.ne.s32.totalorder %s274, %s275
      %p289 = scmp.eq.s32.totalorder %s43, 1
      %p290 = por %p288, %p289
      %p292 = scmp.ne.s32.totalorder %s275, %s291
      %p293 = scmp.eq.s32.totalorder %s43, 0
      %p294 = por %p292, %p293
      %s295 = ssub.s32 %s37, %s44
      %p296 = scmp.eq.s32.totalorder %s295, 0
      %s298 = sadd.s32 %s297, 1
      %s299 = scalar_select %p296, %s297, %s298
      %p302 = pneg %p296
      %p303 = scmp.eq.s32.totalorder %s37, 1
      %p304 = por %p302, %p303
      %p305 = scmp.ne.s32.totalorder %s297, %s300
      %p306 = scmp.eq.s32.totalorder %s37, 0
      %p307 = por %p305, %p306
      %p308 = scmp.ne.s32.totalorder %s297, %s300
      %p309 = scmp.eq.s32.totalorder %s42, 1
      %p310 = por %p308, %p309
      %p311 = scmp.ne.s32.totalorder %s300, %s301
      %p312 = scmp.eq.s32.totalorder %s42, 0
      %p313 = por %p311, %p312
      %p314 = scmp.ne.s32.totalorder %s300, %s301
      %p315 = scmp.eq.s32.totalorder %s43, 1
      %p316 = por %p314, %p315
      %p318 = scmp.ne.s32.totalorder %s301, %s317
      %p319 = scmp.eq.s32.totalorder %s43, 0
      %p320 = por %p318, %p319
      %s321 = ssub.s32 %s37, %s44
      %p322 = scmp.eq.s32.totalorder %s321, 0
      %s324 = sadd.s32 %s323, 1
      %s325 = scalar_select %p322, %s323, %s324
      %p328 = pneg %p322
      %p329 = scmp.eq.s32.totalorder %s37, 1
      %p330 = por %p328, %p329
      %p331 = scmp.ne.s32.totalorder %s323, %s326
      %p332 = scmp.eq.s32.totalorder %s37, 0
      %p333 = por %p331, %p332
      %p334 = scmp.ne.s32.totalorder %s323, %s326
      %p335 = scmp.eq.s32.totalorder %s42, 1
      %p336 = por %p334, %p335
      %p337 = scmp.ne.s32.totalorder %s326, %s327
      %p338 = scmp.eq.s32.totalorder %s42, 0
      %p339 = por %p337, %p338
      %p340 = scmp.ne.s32.totalorder %s326, %s327
      %p341 = scmp.eq.s32.totalorder %s43, 1
      %p342 = por %p340, %p341
      %p344 = scmp.ne.s32.totalorder %s327, %s343
      %p345 = scmp.eq.s32.totalorder %s43, 0
      %p346 = por %p344, %p345
      %s347 = ssub.s32 %s37, %s44
      %p348 = scmp.eq.s32.totalorder %s347, 0
      %s350 = sadd.s32 %s349, 1
      %s351 = scalar_select %p348, %s349, %s350
      %p354 = pneg %p348
      %p355 = scmp.eq.s32.totalorder %s37, 1
      %p356 = por %p354, %p355
      %p357 = scmp.ne.s32.totalorder %s349, %s352
      %p358 = scmp.eq.s32.totalorder %s37, 0
      %p359 = por %p357, %p358
      %p360 = scmp.ne.s32.totalorder %s349, %s352
      %p361 = scmp.eq.s32.totalorder %s42, 1
      %p362 = por %p360, %p361
      %p363 = scmp.ne.s32.totalorder %s352, %s353
      %p364 = scmp.eq.s32.totalorder %s42, 0
      %p365 = por %p363, %p364
      %p366 = scmp.ne.s32.totalorder %s352, %s353
      %p367 = scmp.eq.s32.totalorder %s43, 1
      %p368 = por %p366, %p367
      %p370 = scmp.ne.s32.totalorder %s353, %s369
      %p371 = scmp.eq.s32.totalorder %s43, 0
      %p372 = por %p370, %p371
      %s373 = ssub.s32 %s37, %s44
      %p374 = scmp.eq.s32.totalorder %s373, 0
      %s376 = sadd.s32 %s375, 1
      %s377 = scalar_select %p374, %s375, %s376
      %p380 = pneg %p374
      %p381 = scmp.eq.s32.totalorder %s37, 1
      %p382 = por %p380, %p381
      %p383 = scmp.ne.s32.totalorder %s375, %s378
      %p384 = scmp.eq.s32.totalorder %s37, 0
      %p385 = por %p383, %p384
      %p386 = scmp.ne.s32.totalorder %s375, %s378
      %p387 = scmp.eq.s32.totalorder %s42, 1
      %p388 = por %p386, %p387
      %p389 = scmp.ne.s32.totalorder %s378, %s379
      %p390 = scmp.eq.s32.totalorder %s42, 0
      %p391 = por %p389, %p390
      %p392 = scmp.ne.s32.totalorder %s378, %s379
      %p393 = scmp.eq.s32.totalorder %s43, 1
      %p394 = por %p392, %p393
      %p396 = scmp.ne.s32.totalorder %s379, %s395
      %p397 = scmp.eq.s32.totalorder %s43, 0
      %p398 = por %p396, %p397
      %s399 = ssub.s32 %s37, %s44
      %p400 = scmp.eq.s32.totalorder %s399, 0
      %s402 = sadd.s32 %s401, 1
      %s403 = scalar_select %p400, %s401, %s402
      %p406 = pneg %p400
      %p407 = scmp.eq.s32.totalorder %s37, 1
      %p408 = por %p406, %p407
      %p409 = scmp.ne.s32.totalorder %s401, %s404
      %p410 = scmp.eq.s32.totalorder %s37, 0
      %p411 = por %p409, %p410
      %p412 = scmp.ne.s32.totalorder %s401, %s404
      %p413 = scmp.eq.s32.totalorder %s42, 1
      %p414 = por %p412, %p413
      %p415 = scmp.ne.s32.totalorder %s404, %s405
      %p416 = scmp.eq.s32.totalorder %s42, 0
      %p417 = por %p415, %p416
      %p418 = scmp.ne.s32.totalorder %s404, %s405
      %p419 = scmp.eq.s32.totalorder %s43, 1
      %p420 = por %p418, %p419
      %p422 = scmp.ne.s32.totalorder %s405, %s421
      %p423 = scmp.eq.s32.totalorder %s43, 0
      %p424 = por %p422, %p423
      %s425 = ssub.s32 %s37, %s44
      %p426 = scmp.eq.s32.totalorder %s425, 0
      %s428 = sadd.s32 %s427, 1
      %s429 = scalar_select %p426, %s427, %s428
      %p432 = pneg %p426
      %p433 = scmp.eq.s32.totalorder %s37, 1
      %p434 = por %p432, %p433
      %p435 = scmp.ne.s32.totalorder %s427, %s430
      %p436 = scmp.eq.s32.totalorder %s37, 0
      %p437 = por %p435, %p436
      %p438 = scmp.ne.s32.totalorder %s427, %s430
      %p439 = scmp.eq.s32.totalorder %s42, 1
      %p440 = por %p438, %p439
      %p441 = scmp.ne.s32.totalorder %s430, %s431
      %p442 = scmp.eq.s32.totalorder %s42, 0
      %p443 = por %p441, %p442
      %p444 = scmp.ne.s32.totalorder %s430, %s431
      %p445 = scmp.eq.s32.totalorder %s43, 1
      %p446 = por %p444, %p445
      %p448 = scmp.ne.s32.totalorder %s431, %s447
      %p449 = scmp.eq.s32.totalorder %s43, 0
      %p450 = por %p448, %p449
      %s451 = ssub.s32 %s37, %s44
      %p452 = scmp.eq.s32.totalorder %s451, 0
      %s454 = sadd.s32 %s453, 1
      %s455 = scalar_select %p452, %s453, %s454
      %p458 = pneg %p452
      %p459 = scmp.eq.s32.totalorder %s37, 1
      %p460 = por %p458, %p459
      %p461 = scmp.ne.s32.totalorder %s453, %s456
      %p462 = scmp.eq.s32.totalorder %s37, 0
      %p463 = por %p461, %p462
      %p464 = scmp.ne.s32.totalorder %s453, %s456
      %p465 = scmp.eq.s32.totalorder %s42, 1
      %p466 = por %p464, %p465
      %p467 = scmp.ne.s32.totalorder %s456, %s457
      %p468 = scmp.eq.s32.totalorder %s42, 0
      %p469 = por %p467, %p468
      %p470 = scmp.ne.s32.totalorder %s456, %s457
      %p471 = scmp.eq.s32.totalorder %s43, 1
      %p472 = por %p470, %p471
      %p474 = scmp.ne.s32.totalorder %s457, %s473
      %p475 = scmp.eq.s32.totalorder %s43, 0
      %p476 = por %p474, %p475
      %s477 = ssub.s32 %s37, %s44
      %p478 = scmp.eq.s32.totalorder %s477, 0
      %s480 = sadd.s32 %s479, 1
      %s481 = scalar_select %p478, %s479, %s480
      %p484 = pneg %p478
      %p485 = scmp.eq.s32.totalorder %s37, 1
      %p486 = por %p484, %p485
      %p487 = scmp.ne.s32.totalorder %s479, %s482
      %p488 = scmp.eq.s32.totalorder %s37, 0
      %p489 = por %p487, %p488
      %p490 = scmp.ne.s32.totalorder %s479, %s482
      %p491 = scmp.eq.s32.totalorder %s42, 1
      %p492 = por %p490, %p491
      %p493 = scmp.ne.s32.totalorder %s482, %s483
      %p494 = scmp.eq.s32.totalorder %s42, 0
      %p495 = por %p493, %p494
      %p496 = scmp.ne.s32.totalorder %s482, %s483
      %p497 = scmp.eq.s32.totalorder %s43, 1
      %p498 = por %p496, %p497
      %p500 = scmp.ne.s32.totalorder %s483, %s499
      %p501 = scmp.eq.s32.totalorder %s43, 0
      %p502 = por %p500, %p501
      %s503 = ssub.s32 %s37, %s44
      %p504 = scmp.eq.s32.totalorder %s503, 0
      %s506 = sadd.s32 %s505, 1
      %s507 = scalar_select %p504, %s505, %s506
      %p510 = pneg %p504
      %p511 = scmp.eq.s32.totalorder %s37, 1
      %p512 = por %p510, %p511
      %p513 = scmp.ne.s32.totalorder %s505, %s508
      %p514 = scmp.eq.s32.totalorder %s37, 0
      %p515 = por %p513, %p514
      %p516 = scmp.ne.s32.totalorder %s505, %s508
      %p517 = scmp.eq.s32.totalorder %s42, 1
      %p518 = por %p516, %p517
      %p519 = scmp.ne.s32.totalorder %s508, %s509
      %p520 = scmp.eq.s32.totalorder %s42, 0
      %p521 = por %p519, %p520
      %p522 = scmp.ne.s32.totalorder %s508, %s509
      %p523 = scmp.eq.s32.totalorder %s43, 1
      %p524 = por %p522, %p523
      %p526 = scmp.ne.s32.totalorder %s509, %s525
      %p527 = scmp.eq.s32.totalorder %s43, 0
      %p528 = por %p526, %p527
      %s529 = ssub.s32 %s37, %s44
      %p530 = scmp.eq.s32.totalorder %s529, 0
      %s532 = sadd.s32 %s531, 1
      %s533 = scalar_select %p530, %s531, %s532
      %p536 = pneg %p530
      %p537 = scmp.eq.s32.totalorder %s37, 1
      %p538 = por %p536, %p537
      %p539 = scmp.ne.s32.totalorder %s531, %s534
      %p540 = scmp.eq.s32.totalorder %s37, 0
      %p541 = por %p539, %p540
      %p542 = scmp.ne.s32.totalorder %s531, %s534
      %p543 = scmp.eq.s32.totalorder %s42, 1
      %p544 = por %p542, %p543
      %p545 = scmp.ne.s32.totalorder %s534, %s535
      %p546 = scmp.eq.s32.totalorder %s42, 0
      %p547 = por %p545, %p546
      %p548 = scmp.ne.s32.totalorder %s534, %s535
      %p549 = scmp.eq.s32.totalorder %s43, 1
      %p550 = por %p548, %p549
      %p552 = scmp.ne.s32.totalorder %s535, %s551
      %p553 = scmp.eq.s32.totalorder %s43, 0
      %p554 = por %p552, %p553
      %s555 = ssub.s32 %s37, %s44
      %p556 = scmp.eq.s32.totalorder %s555, 0
      %s558 = sadd.s32 %s557, 1
      %s559 = scalar_select %p556, %s557, %s558
      %p562 = pneg %p556
      %p563 = scmp.eq.s32.totalorder %s37, 1
      %p564 = por %p562, %p563
      %p565 = scmp.ne.s32.totalorder %s557, %s560
      %p566 = scmp.eq.s32.totalorder %s37, 0
      %p567 = por %p565, %p566
      %p568 = scmp.ne.s32.totalorder %s557, %s560
      %p569 = scmp.eq.s32.totalorder %s42, 1
      %p570 = por %p568, %p569
      %p571 = scmp.ne.s32.totalorder %s560, %s561
      %p572 = scmp.eq.s32.totalorder %s42, 0
      %p573 = por %p571, %p572
      %p574 = scmp.ne.s32.totalorder %s560, %s561
      %p575 = scmp.eq.s32.totalorder %s43, 1
      %p576 = por %p574, %p575
      %p578 = scmp.ne.s32.totalorder %s561, %s577
      %p579 = scmp.eq.s32.totalorder %s43, 0
      %p580 = por %p578, %p579
      %s581 = ssub.s32 %s37, %s44
      %p582 = scmp.eq.s32.totalorder %s581, 0
      %s584 = sadd.s32 %s583, 1
      %s585 = scalar_select %p582, %s583, %s584
      %p588 = pneg %p582
      %p589 = scmp.eq.s32.totalorder %s37, 1
      %p590 = por %p588, %p589
      %p591 = scmp.ne.s32.totalorder %s583, %s586
      %p592 = scmp.eq.s32.totalorder %s37, 0
      %p593 = por %p591, %p592
      %p594 = scmp.ne.s32.totalorder %s583, %s586
      %p595 = scmp.eq.s32.totalorder %s42, 1
      %p596 = por %p594, %p595
      %p597 = scmp.ne.s32.totalorder %s586, %s587
      %p598 = scmp.eq.s32.totalorder %s42, 0
      %p599 = por %p597, %p598
      %p600 = scmp.ne.s32.totalorder %s586, %s587
      %p601 = scmp.eq.s32.totalorder %s43, 1
      %p602 = por %p600, %p601
      %p604 = scmp.ne.s32.totalorder %s587, %s603
      %p605 = scmp.eq.s32.totalorder %s43, 0
      %p606 = por %p604, %p605
      %s607 = ssub.s32 %s37, %s44
      %p608 = scmp.eq.s32.totalorder %s607, 0
      %s610 = sadd.s32 %s609, 1
      %s611 = scalar_select %p608, %s609, %s610
      %p614 = pneg %p608
      %p615 = scmp.eq.s32.totalorder %s37, 1
      %p616 = por %p614, %p615
      %p617 = scmp.ne.s32.totalorder %s609, %s612
      %p618 = scmp.eq.s32.totalorder %s37, 0
      %p619 = por %p617, %p618
      %p620 = scmp.ne.s32.totalorder %s609, %s612
      %p621 = scmp.eq.s32.totalorder %s42, 1
      %p622 = por %p620, %p621
      %p623 = scmp.ne.s32.totalorder %s612, %s613
      %p624 = scmp.eq.s32.totalorder %s42, 0
      %p625 = por %p623, %p624
      %p626 = scmp.ne.s32.totalorder %s612, %s613
      %p627 = scmp.eq.s32.totalorder %s43, 1
      %p628 = por %p626, %p627
      %p630 = scmp.ne.s32.totalorder %s613, %s629
      %p631 = scmp.eq.s32.totalorder %s43, 0
      %p632 = por %p630, %p631
      %s633 = ssub.s32 %s37, %s44
      %p634 = scmp.eq.s32.totalorder %s633, 0
      %s636 = sadd.s32 %s635, 1
      %s637 = scalar_select %p634, %s635, %s636
      %p640 = pneg %p634
      %p641 = scmp.eq.s32.totalorder %s37, 1
      %p642 = por %p640, %p641
      %p643 = scmp.ne.s32.totalorder %s635, %s638
      %p644 = scmp.eq.s32.totalorder %s37, 0
      %p645 = por %p643, %p644
      %p646 = scmp.ne.s32.totalorder %s635, %s638
      %p647 = scmp.eq.s32.totalorder %s42, 1
      %p648 = por %p646, %p647
      %p649 = scmp.ne.s32.totalorder %s638, %s639
      %p650 = scmp.eq.s32.totalorder %s42, 0
      %p651 = por %p649, %p650
      %p652 = scmp.ne.s32.totalorder %s638, %s639
      %p653 = scmp.eq.s32.totalorder %s43, 1
      %p654 = por %p652, %p653
      %p656 = scmp.ne.s32.totalorder %s639, %s655
      %p657 = scmp.eq.s32.totalorder %s43, 0
      %p658 = por %p656, %p657
      %s659 = ssub.s32 %s37, %s44
      %p660 = scmp.eq.s32.totalorder %s659, 0
      %s662 = sadd.s32 %s661, 1
      %s663 = scalar_select %p660, %s661, %s662
      %p666 = pneg %p660
      %p667 = scmp.eq.s32.totalorder %s37, 1
      %p668 = por %p666, %p667
      %p669 = scmp.ne.s32.totalorder %s661, %s664
      %p670 = scmp.eq.s32.totalorder %s37, 0
      %p671 = por %p669, %p670
      %p672 = scmp.ne.s32.totalorder %s661, %s664
      %p673 = scmp.eq.s32.totalorder %s42, 1
      %p674 = por %p672, %p673
      %p675 = scmp.ne.s32.totalorder %s664, %s665
      %p676 = scmp.eq.s32.totalorder %s42, 0
      %p677 = por %p675, %p676
      %p678 = scmp.ne.s32.totalorder %s664, %s665
      %p679 = scmp.eq.s32.totalorder %s43, 1
      %p680 = por %p678, %p679
      %p682 = scmp.ne.s32.totalorder %s665, %s681
      %p683 = scmp.eq.s32.totalorder %s43, 0
      %p684 = por %p682, %p683
      %s685 = ssub.s32 %s37, %s44
      %p686 = scmp.eq.s32.totalorder %s685, 0
      %s688 = sadd.s32 %s687, 1
      %s689 = scalar_select %p686, %s687, %s688
      %p692 = pneg %p686
      %p693 = scmp.eq.s32.totalorder %s37, 1
      %p694 = por %p692, %p693
      %p695 = scmp.ne.s32.totalorder %s687, %s690
      %p696 = scmp.eq.s32.totalorder %s37, 0
      %p697 = por %p695, %p696
      %p698 = scmp.ne.s32.totalorder %s687, %s690
      %p699 = scmp.eq.s32.totalorder %s42, 1
      %p700 = por %p698, %p699
      %p701 = scmp.ne.s32.totalorder %s690, %s691
      %p702 = scmp.eq.s32.totalorder %s42, 0
      %p703 = por %p701, %p702
      %p704 = scmp.ne.s32.totalorder %s690, %s691
      %p705 = scmp.eq.s32.totalorder %s43, 1
      %p706 = por %p704, %p705
      %p708 = scmp.ne.s32.totalorder %s691, %s707
      %p709 = scmp.eq.s32.totalorder %s43, 0
      %p710 = por %p708, %p709
      %s711 = ssub.s32 %s37, %s44
      %p712 = scmp.eq.s32.totalorder %s711, 0
      %s714 = sadd.s32 %s713, 1
      %s715 = scalar_select %p712, %s713, %s714
      %p718 = pneg %p712
      %p719 = scmp.eq.s32.totalorder %s37, 1
      %p720 = por %p718, %p719
      %p721 = scmp.ne.s32.totalorder %s713, %s716
      %p722 = scmp.eq.s32.totalorder %s37, 0
      %p723 = por %p721, %p722
      %p724 = scmp.ne.s32.totalorder %s713, %s716
      %p725 = scmp.eq.s32.totalorder %s42, 1
      %p726 = por %p724, %p725
      %p727 = scmp.ne.s32.totalorder %s716, %s717
      %p728 = scmp.eq.s32.totalorder %s42, 0
      %p729 = por %p727, %p728
      %p730 = scmp.ne.s32.totalorder %s716, %s717
      %p731 = scmp.eq.s32.totalorder %s43, 1
      %p732 = por %p730, %p731
      %p734 = scmp.ne.s32.totalorder %s717, %s733
      %p735 = scmp.eq.s32.totalorder %s43, 0
      %p736 = por %p734, %p735
      %s737 = ssub.s32 %s37, %s44
      %p738 = scmp.eq.s32.totalorder %s737, 0
      %s740 = sadd.s32 %s739, 1
      %s741 = scalar_select %p738, %s739, %s740
      %p744 = pneg %p738
      %p745 = scmp.eq.s32.totalorder %s37, 1
      %p746 = por %p744, %p745
      %p747 = scmp.ne.s32.totalorder %s739, %s742
      %p748 = scmp.eq.s32.totalorder %s37, 0
      %p749 = por %p747, %p748
      %p750 = scmp.ne.s32.totalorder %s739, %s742
      %p751 = scmp.eq.s32.totalorder %s42, 1
      %p752 = por %p750, %p751
      %p753 = scmp.ne.s32.totalorder %s742, %s743
      %p754 = scmp.eq.s32.totalorder %s42, 0
      %p755 = por %p753, %p754
      %p756 = scmp.ne.s32.totalorder %s742, %s743
      %p757 = scmp.eq.s32.totalorder %s43, 1
      %p758 = por %p756, %p757
      %p760 = scmp.ne.s32.totalorder %s743, %s759
      %p761 = scmp.eq.s32.totalorder %s43, 0
      %p762 = por %p760, %p761
      %s764 = sadd.s32 %s763, 1
      %p767 = scmp.eq.s32.totalorder %s37, 1
      %p768 = scmp.ne.s32.totalorder %s763, %s765
      %p769 = scmp.eq.s32.totalorder %s37, 0
      %p770 = por %p768, %p769
      %p771 = scmp.ne.s32.totalorder %s763, %s765
      %p772 = scmp.eq.s32.totalorder %s42, 1
      %p773 = por %p771, %p772
      %p774 = scmp.ne.s32.totalorder %s765, %s766
      %p775 = scmp.eq.s32.totalorder %s42, 0
      %p776 = por %p774, %p775
      %p777 = scmp.ne.s32.totalorder %s765, %s766
      %p778 = scmp.eq.s32.totalorder %s43, 1
      %p779 = por %p777, %p778
      %p781 = scmp.ne.s32.totalorder %s766, %s780
      %p782 = scmp.eq.s32.totalorder %s43, 0
      %p783 = por %p781, %p782
      %p784 = scmp.le.s32.totalorder 1, %s37
      %p785 = scmp.lt.s32.totalorder %s37, 3
      %p786 = pnand %p784, %p785
      %p787 = pneg %p786
      // Predicated region
      $region9: #{tpu_custom_call.1} parent=5 // pred_check
        _
      $region10: #{tpu_custom_call.1} parent=5 // pred_check_branch
        %789 = sbr.rel (%p786) target = $region12
      $region11: #{tpu_custom_call.1} parent=5 // pred_region
        %s790 = ssub.s32 %s37, 1
        // Predicated region
        $region13: #{tpu_custom_call.1} parent=11 // pred_check
          %p791 = pneg %p58
        $region14: #{tpu_custom_call.1} parent=11 // pred_check_branch
          %793 = sbr.rel (%p791) target = $region16
        $region15: #{tpu_custom_call.1} parent=11 // pred_region
          %s795 = ssub.s32 256, 256
          %796 = vsyncadd [#allocation3], %s795
          %s797 = sshll.u32 [#allocation2], 4
          %s798 = int_to_ptr.vmem [resolvable:$true] %s797
          %803 = dma.hbm_to_vmem [thread:$0]  %s0, 256, %s798, [#allocation3], 128, 128, 8
        $region16: #{tpu_custom_call.1} parent=11 // pred_fallthru
          _
        // Predicated region
        $region17: #{tpu_custom_call.1} parent=11 // pred_check
          %p804 = pneg %p79
        $region18: #{tpu_custom_call.1} parent=11 // pred_check_branch
          %806 = sbr.rel (%p804) target = $region20
        $region19: #{tpu_custom_call.1} parent=11 // pred_region
          %s808 = ssub.s32 128, 128
          %809 = vsyncadd [#allocation6], %s808
          %s811 = sshll.u32 [#allocation5], 4
          %s812 = int_to_ptr.vmem [resolvable:$true] %s811
          %814 = dma.hbm_to_vmem [thread:$0]  %s1, 128, %s812, [#allocation6]
        $region20: #{tpu_custom_call.1} parent=11 // pred_fallthru
          _
      $region12: #{tpu_custom_call.1} parent=5 // pred_fallthru
        _
      %p815 = scmp.lt.s32.totalorder %s37, 2
      // Predicated region
      $region21: #{tpu_custom_call.1} parent=5 // pred_check
        %p816 = pneg %p815
      $region22: #{tpu_custom_call.1} parent=5 // pred_check_branch
        %818 = sbr.rel (%p816) target = $region24
      $region23: #{tpu_custom_call.1} parent=5 // pred_region
        // Predicated region
        $region25: #{tpu_custom_call.1} parent=23 // pred_check
          %p819 = pneg %p99
        $region26: #{tpu_custom_call.1} parent=23 // pred_check_branch
          %821 = sbr.rel (%p819) target = $region28
        $region27: #{tpu_custom_call.1} parent=23 // pred_region
          %s822 = sand.u32 %s37, 1
          %s823 = scalar_lea.sflag [#allocation3], %s822
          %s824 = sand.u32 %s89, 1
          %s825 = smul.addr %s824, 64
          %s826 = scalar_lea.vmem [#allocation7], %s825
          %s828 = ssub.s32 1024, 1024
          %829 = vsyncadd %s823, %s828
          %s830 = smul.addr %s37, 16
          %s831 = smul.addr %s830, 64
          %s832 = scalar_lea.hbm %s2, %s831
          %s833 = sshll.u32 %s826, 4
          %s834 = int_to_ptr.vmem [resolvable:$true] %s833
          %839 = dma.hbm_to_vmem [thread:$0]  %s832, 1024, %s834, %s823, 64, 64, 4
        $region28: #{tpu_custom_call.1} parent=23 // pred_fallthru
          _
        // Predicated region
        $region29: #{tpu_custom_call.1} parent=23 // pred_check
          %p840 = pneg %p125
        $region30: #{tpu_custom_call.1} parent=23 // pred_check_branch
          %842 = sbr.rel (%p840) target = $region32
        $region31: #{tpu_custom_call.1} parent=23 // pred_region
          %p843 = scmp.lt.s32.totalorder %s37, 1
          %s844 = scalar_select %p843, %s37, 1
          %s845 = scalar_lea.vmem %s3, %s844
        $region32: #{tpu_custom_call.1} parent=23 // pred_fallthru
          _
        // Predicated region
        $region33: #{tpu_custom_call.1} parent=23 // pred_check
          %p846 = pneg %p151
        $region34: #{tpu_custom_call.1} parent=23 // pred_check_branch
          %848 = sbr.rel (%p846) target = $region36
        $region35: #{tpu_custom_call.1} parent=23 // pred_region
          %s849 = sand.u32 %s37, 1
          %s850 = scalar_lea.sflag [#allocation3], %s849
          %s851 = sand.u32 %s141, 1
          %s852 = smul.addr %s851, 64
          %s853 = scalar_lea.vmem [#allocation8], %s852
          %s855 = ssub.s32 1024, 1024
          %856 = vsyncadd %s850, %s855
          %s857 = smul.addr %s37, 16
          %s858 = smul.addr %s857, 64
          %s859 = scalar_lea.hbm %s4, %s858
          %s860 = sshll.u32 %s853, 4
          %s861 = int_to_ptr.vmem [resolvable:$true] %s860
          %866 = dma.hbm_to_vmem [thread:$0]  %s859, 1024, %s861, %s850, 64, 64, 4
        $region36: #{tpu_custom_call.1} parent=23 // pred_fallthru
          _
        // Predicated region
        $region37: #{tpu_custom_call.1} parent=23 // pred_check
          %p867 = pneg %p177
        $region38: #{tpu_custom_call.1} parent=23 // pred_check_branch
          %869 = sbr.rel (%p867) target = $region40
        $region39: #{tpu_custom_call.1} parent=23 // pred_region
          %p870 = scmp.lt.s32.totalorder %s37, 1
          %s871 = scalar_select %p870, %s37, 1
          %s872 = scalar_lea.vmem %s5, %s871
        $region40: #{tpu_custom_call.1} parent=23 // pred_fallthru
          _
        // Predicated region
        $region41: #{tpu_custom_call.1} parent=23 // pred_check
          %p873 = pneg %p203
        $region42: #{tpu_custom_call.1} parent=23 // pred_check_branch
          %875 = sbr.rel (%p873) target = $region44
        $region43: #{tpu_custom_call.1} parent=23 // pred_region
          %s876 = sand.u32 %s37, 1
          %s877 = scalar_lea.sflag [#allocation3], %s876
          %s878 = sand.u32 %s193, 1
          %s879 = smul.addr %s878, 64
          %s880 = scalar_lea.vmem [#allocation9], %s879
          %s882 = ssub.s32 1024, 1024
          %883 = vsyncadd %s877, %s882
          %s884 = smul.addr %s37, 16
          %s885 = smul.addr %s884, 64
          %s886 = scalar_lea.hbm %s6, %s885
          %s887 = sshll.u32 %s880, 4
          %s888 = int_to_ptr.vmem [resolvable:$true] %s887
          %893 = dma.hbm_to_vmem [thread:$0]  %s886, 1024, %s888, %s877, 64, 64, 4
        $region44: #{tpu_custom_call.1} parent=23 // pred_fallthru
          _
        // Predicated region
        $region45: #{tpu_custom_call.1} parent=23 // pred_check
          %p894 = pneg %p229
        $region46: #{tpu_custom_call.1} parent=23 // pred_check_branch
          %896 = sbr.rel (%p894) target = $region48
        $region47: #{tpu_custom_call.1} parent=23 // pred_region
          %p897 = scmp.lt.s32.totalorder %s37, 1
          %s898 = scalar_select %p897, %s37, 1
          %s899 = scalar_lea.vmem %s7, %s898
        $region48: #{tpu_custom_call.1} parent=23 // pred_fallthru
          _
        // Predicated region
        $region49: #{tpu_custom_call.1} parent=23 // pred_check
          %p900 = pneg %p255
        $region50: #{tpu_custom_call.1} parent=23 // pred_check_branch
          %902 = sbr.rel (%p900) target = $region52
        $region51: #{tpu_custom_call.1} parent=23 // pred_region
          %s903 = sand.u32 %s37, 1
          %s904 = scalar_lea.sflag [#allocation3], %s903
          %s905 = sand.u32 %s245, 1
          %s906 = smul.addr %s905, 64
          %s907 = scalar_lea.vmem [#allocation10], %s906
          %s909 = ssub.s32 1024, 1024
          %910 = vsyncadd %s904, %s909
          %s911 = smul.addr %s37, 16
          %s912 = smul.addr %s911, 64
          %s913 = scalar_lea.hbm %s8, %s912
          %s914 = sshll.u32 %s907, 4
          %s915 = int_to_ptr.vmem [resolvable:$true] %s914
          %920 = dma.hbm_to_vmem [thread:$0]  %s913, 1024, %s915, %s904, 64, 64, 4
        $region52: #{tpu_custom_call.1} parent=23 // pred_fallthru
          _
        // Predicated region
        $region53: #{tpu_custom_call.1} parent=23 // pred_check
          %p921 = pneg %p281
        $region54: #{tpu_custom_call.1} parent=23 // pred_check_branch
          %923 = sbr.rel (%p921) target = $region56
        $region55: #{tpu_custom_call.1} parent=23 // pred_region
          %p924 = scmp.lt.s32.totalorder %s37, 1
          %s925 = scalar_select %p924, %s37, 1
          %s926 = scalar_lea.vmem %s9, %s925
        $region56: #{tpu_custom_call.1} parent=23 // pred_fallthru
          _
        // Predicated region
        $region57: #{tpu_custom_call.1} parent=23 // pred_check
          %p927 = pneg %p307
        $region58: #{tpu_custom_call.1} parent=23 // pred_check_branch
          %929 = sbr.rel (%p927) target = $region60
        $region59: #{tpu_custom_call.1} parent=23 // pred_region
          %s930 = sand.u32 %s37, 1
          %s931 = scalar_lea.sflag [#allocation3], %s930
          %s932 = sand.u32 %s297, 1
          %s933 = smul.addr %s932, 64
          %s934 = scalar_lea.vmem [#allocation11], %s933
          %s936 = ssub.s32 1024, 1024
          %937 = vsyncadd %s931, %s936
          %s938 = smul.addr %s37, 16
          %s939 = smul.addr %s938, 64
          %s940 = scalar_lea.hbm %s10, %s939
          %s941 = sshll.u32 %s934, 4
          %s942 = int_to_ptr.vmem [resolvable:$true] %s941
          %947 = dma.hbm_to_vmem [thread:$0]  %s940, 1024, %s942, %s931, 64, 64, 4
        $region60: #{tpu_custom_call.1} parent=23 // pred_fallthru
          _
        // Predicated region
        $region61: #{tpu_custom_call.1} parent=23 // pred_check
          %p948 = pneg %p333
        $region62: #{tpu_custom_call.1} parent=23 // pred_check_branch
          %950 = sbr.rel (%p948) target = $region64
        $region63: #{tpu_custom_call.1} parent=23 // pred_region
          %p951 = scmp.lt.s32.totalorder %s37, 1
          %s952 = scalar_select %p951, %s37, 1
          %s953 = scalar_lea.vmem %s11, %s952
        $region64: #{tpu_custom_call.1} parent=23 // pred_fallthru
          _
        // Predicated region
        $region65: #{tpu_custom_call.1} parent=23 // pred_check
          %p954 = pneg %p359
        $region66: #{tpu_custom_call.1} parent=23 // pred_check_branch
          %956 = sbr.rel (%p954) target = $region68
        $region67: #{tpu_custom_call.1} parent=23 // pred_region
          %s957 = sand.u32 %s37, 1
          %s958 = scalar_lea.sflag [#allocation3], %s957
          %s959 = sand.u32 %s349, 1
          %s960 = smul.addr %s959, 64
          %s961 = scalar_lea.vmem [#allocation12], %s960
          %s963 = ssub.s32 1024, 1024
          %964 = vsyncadd %s958, %s963
          %s965 = smul.addr %s37, 16
          %s966 = smul.addr %s965, 64
          %s967 = scalar_lea.hbm %s12, %s966
          %s968 = sshll.u32 %s961, 4
          %s969 = int_to_ptr.vmem [resolvable:$true] %s968
          %974 = dma.hbm_to_vmem [thread:$0]  %s967, 1024, %s969, %s958, 64, 64, 4
        $region68: #{tpu_custom_call.1} parent=23 // pred_fallthru
          _
        // Predicated region
        $region69: #{tpu_custom_call.1} parent=23 // pred_check
          %p975 = pneg %p385
        $region70: #{tpu_custom_call.1} parent=23 // pred_check_branch
          %977 = sbr.rel (%p975) target = $region72
        $region71: #{tpu_custom_call.1} parent=23 // pred_region
          %p978 = scmp.lt.s32.totalorder %s37, 1
          %s979 = scalar_select %p978, %s37, 1
          %s980 = scalar_lea.vmem %s13, %s979
        $region72: #{tpu_custom_call.1} parent=23 // pred_fallthru
          _
        // Predicated region
        $region73: #{tpu_custom_call.1} parent=23 // pred_check
          %p981 = pneg %p411
        $region74: #{tpu_custom_call.1} parent=23 // pred_check_branch
          %983 = sbr.rel (%p981) target = $region76
        $region75: #{tpu_custom_call.1} parent=23 // pred_region
          %s984 = sand.u32 %s37, 1
          %s985 = scalar_lea.sflag [#allocation3], %s984
          %s986 = sand.u32 %s401, 1
          %s987 = smul.addr %s986, 64
          %s988 = scalar_lea.vmem [#allocation13], %s987
          %s990 = ssub.s32 1024, 1024
          %991 = vsyncadd %s985, %s990
          %s992 = smul.addr %s37, 16
          %s993 = smul.addr %s992, 64
          %s994 = scalar_lea.hbm %s14, %s993
          %s995 = sshll.u32 %s988, 4
          %s996 = int_to_ptr.vmem [resolvable:$true] %s995
          %1001 = dma.hbm_to_vmem [thread:$0]  %s994, 1024, %s996, %s985, 64, 64, 4
        $region76: #{tpu_custom_call.1} parent=23 // pred_fallthru
          _
        // Predicated region
        $region77: #{tpu_custom_call.1} parent=23 // pred_check
          %p1002 = pneg %p437
        $region78: #{tpu_custom_call.1} parent=23 // pred_check_branch
          %1004 = sbr.rel (%p1002) target = $region80
        $region79: #{tpu_custom_call.1} parent=23 // pred_region
          %p1005 = scmp.lt.s32.totalorder %s37, 1
          %s1006 = scalar_select %p1005, %s37, 1
          %s1007 = scalar_lea.vmem %s15, %s1006
        $region80: #{tpu_custom_call.1} parent=23 // pred_fallthru
          _
        // Predicated region
        $region81: #{tpu_custom_call.1} parent=23 // pred_check
          %p1008 = pneg %p463
        $region82: #{tpu_custom_call.1} parent=23 // pred_check_branch
          %1010 = sbr.rel (%p1008) target = $region84
        $region83: #{tpu_custom_call.1} parent=23 // pred_region
          %s1011 = sand.u32 %s37, 1
          %s1012 = scalar_lea.sflag [#allocation3], %s1011
          %s1013 = sand.u32 %s453, 1
          %s1014 = smul.addr %s1013, 64
          %s1015 = scalar_lea.vmem [#allocation14], %s1014
          %s1017 = ssub.s32 1024, 1024
          %1018 = vsyncadd %s1012, %s1017
          %s1019 = smul.addr %s37, 16
          %s1020 = smul.addr %s1019, 64
          %s1021 = scalar_lea.hbm %s16, %s1020
          %s1022 = sshll.u32 %s1015, 4
          %s1023 = int_to_ptr.vmem [resolvable:$true] %s1022
          %1028 = dma.hbm_to_vmem [thread:$0]  %s1021, 1024, %s1023, %s1012, 64, 64, 4
        $region84: #{tpu_custom_call.1} parent=23 // pred_fallthru
          _
        // Predicated region
        $region85: #{tpu_custom_call.1} parent=23 // pred_check
          %p1029 = pneg %p489
        $region86: #{tpu_custom_call.1} parent=23 // pred_check_branch
          %1031 = sbr.rel (%p1029) target = $region88
        $region87: #{tpu_custom_call.1} parent=23 // pred_region
          %p1032 = scmp.lt.s32.totalorder %s37, 1
          %s1033 = scalar_select %p1032, %s37, 1
          %s1034 = scalar_lea.vmem %s17, %s1033
        $region88: #{tpu_custom_call.1} parent=23 // pred_fallthru
          _
        // Predicated region
        $region89: #{tpu_custom_call.1} parent=23 // pred_check
          %p1035 = pneg %p515
        $region90: #{tpu_custom_call.1} parent=23 // pred_check_branch
          %1037 = sbr.rel (%p1035) target = $region92
        $region91: #{tpu_custom_call.1} parent=23 // pred_region
          %p1038 = scmp.lt.s32.totalorder %s37, 1
          %s1039 = scalar_select %p1038, %s37, 1
          %s1040 = scalar_lea.vmem %s18, %s1039
        $region92: #{tpu_custom_call.1} parent=23 // pred_fallthru
          _
        // Predicated region
        $region93: #{tpu_custom_call.1} parent=23 // pred_check
          %p1041 = pneg %p541
        $region94: #{tpu_custom_call.1} parent=23 // pred_check_branch
          %1043 = sbr.rel (%p1041) target = $region96
        $region95: #{tpu_custom_call.1} parent=23 // pred_region
          %p1044 = scmp.lt.s32.totalorder %s37, 1
          %s1045 = scalar_select %p1044, %s37, 1
          %s1046 = scalar_lea.vmem %s19, %s1045
        $region96: #{tpu_custom_call.1} parent=23 // pred_fallthru
          _
        // Predicated region
        $region97: #{tpu_custom_call.1} parent=23 // pred_check
          %p1047 = pneg %p567
        $region98: #{tpu_custom_call.1} parent=23 // pred_check_branch
          %1049 = sbr.rel (%p1047) target = $region100
        $region99: #{tpu_custom_call.1} parent=23 // pred_region
          %p1050 = scmp.lt.s32.totalorder %s37, 1
          %s1051 = scalar_select %p1050, %s37, 1
          %s1052 = scalar_lea.vmem %s20, %s1051
        $region100: #{tpu_custom_call.1} parent=23 // pred_fallthru
          _
        // Predicated region
        $region101: #{tpu_custom_call.1} parent=23 // pred_check
          %p1053 = pneg %p593
        $region102: #{tpu_custom_call.1} parent=23 // pred_check_branch
          %1055 = sbr.rel (%p1053) target = $region104
        $region103: #{tpu_custom_call.1} parent=23 // pred_region
          %p1056 = scmp.lt.s32.totalorder %s37, 1
          %s1057 = scalar_select %p1056, %s37, 1
          %s1058 = scalar_lea.vmem %s21, %s1057
        $region104: #{tpu_custom_call.1} parent=23 // pred_fallthru
          _
        // Predicated region
        $region105: #{tpu_custom_call.1} parent=23 // pred_check
          %p1059 = pneg %p619
        $region106: #{tpu_custom_call.1} parent=23 // pred_check_branch
          %1061 = sbr.rel (%p1059) target = $region108
        $region107: #{tpu_custom_call.1} parent=23 // pred_region
          %p1062 = scmp.lt.s32.totalorder %s37, 1
          %s1063 = scalar_select %p1062, %s37, 1
          %s1064 = scalar_lea.vmem %s22, %s1063
        $region108: #{tpu_custom_call.1} parent=23 // pred_fallthru
          _
        // Predicated region
        $region109: #{tpu_custom_call.1} parent=23 // pred_check
          %p1065 = pneg %p645
        $region110: #{tpu_custom_call.1} parent=23 // pred_check_branch
          %1067 = sbr.rel (%p1065) target = $region112
        $region111: #{tpu_custom_call.1} parent=23 // pred_region
          %p1068 = scmp.lt.s32.totalorder %s37, 1
          %s1069 = scalar_select %p1068, %s37, 1
          %s1070 = scalar_lea.vmem %s23, %s1069
        $region112: #{tpu_custom_call.1} parent=23 // pred_fallthru
          _
        // Predicated region
        $region113: #{tpu_custom_call.1} parent=23 // pred_check
          %p1071 = pneg %p671
        $region114: #{tpu_custom_call.1} parent=23 // pred_check_branch
          %1073 = sbr.rel (%p1071) target = $region116
        $region115: #{tpu_custom_call.1} parent=23 // pred_region
          %s1074 = sand.u32 %s37, 1
          %s1075 = scalar_lea.sflag [#allocation3], %s1074
          %s1076 = sand.u32 %s661, 1
          %s1077 = smul.addr %s1076, 128
          %s1078 = scalar_lea.vmem [#allocation15], %s1077
          %s1080 = ssub.s32 2048, 2048
          %1081 = vsyncadd %s1075, %s1080
          %s1082 = smul.addr %s37, 32
          %s1083 = smul.addr %s1082, 64
          %s1084 = scalar_lea.hbm %s24, %s1083
          %s1085 = sshll.u32 %s1078, 4
          %s1086 = int_to_ptr.vmem [resolvable:$true] %s1085
          %1091 = dma.hbm_to_vmem [thread:$0]  %s1084, 2048, %s1086, %s1075, 128, 128, 8
        $region116: #{tpu_custom_call.1} parent=23 // pred_fallthru
          _
        // Predicated region
        $region117: #{tpu_custom_call.1} parent=23 // pred_check
          %p1092 = pneg %p697
        $region118: #{tpu_custom_call.1} parent=23 // pred_check_branch
          %1094 = sbr.rel (%p1092) target = $region120
        $region119: #{tpu_custom_call.1} parent=23 // pred_region
          %p1095 = scmp.lt.s32.totalorder %s37, 1
          %s1096 = scalar_select %p1095, %s37, 1
          %s1097 = smul.addr %s1096, 2
          %s1098 = scalar_lea.vmem %s25, %s1097
        $region120: #{tpu_custom_call.1} parent=23 // pred_fallthru
          _
        // Predicated region
        $region121: #{tpu_custom_call.1} parent=23 // pred_check
          %p1099 = pneg %p723
        $region122: #{tpu_custom_call.1} parent=23 // pred_check_branch
          %1101 = sbr.rel (%p1099) target = $region124
        $region123: #{tpu_custom_call.1} parent=23 // pred_region
          %s1102 = sand.u32 %s37, 1
          %s1103 = scalar_lea.sflag [#allocation3], %s1102
          %s1104 = sand.u32 %s713, 1
          %s1105 = smul.addr %s1104, 128
          %s1106 = scalar_lea.vmem [#allocation16], %s1105
          %s1108 = ssub.s32 2048, 2048
          %1109 = vsyncadd %s1103, %s1108
          %s1110 = smul.addr %s37, 32
          %s1111 = smul.addr %s1110, 64
          %s1112 = scalar_lea.hbm %s26, %s1111
          %s1113 = sshll.u32 %s1106, 4
          %s1114 = int_to_ptr.vmem [resolvable:$true] %s1113
          %1119 = dma.hbm_to_vmem [thread:$0]  %s1112, 2048, %s1114, %s1103, 64, 64, 4
        $region124: #{tpu_custom_call.1} parent=23 // pred_fallthru
          _
        // Predicated region
        $region125: #{tpu_custom_call.1} parent=23 // pred_check
          %p1120 = pneg %p749
        $region126: #{tpu_custom_call.1} parent=23 // pred_check_branch
          %1122 = sbr.rel (%p1120) target = $region128
        $region127: #{tpu_custom_call.1} parent=23 // pred_region
          %p1123 = scmp.lt.s32.totalorder %s37, 1
          %s1124 = scalar_select %p1123, %s37, 1
          %s1125 = scalar_lea.vmem %s27, %s1124
        $region128: #{tpu_custom_call.1} parent=23 // pred_fallthru
          _
      $region24: #{tpu_custom_call.1} parent=5 // pred_fallthru
        _
      %p1126 = scmp.le.s32.totalorder 1, %s37
      %p1127 = scmp.lt.s32.totalorder %s37, 3
      %p1128 = pnand %p1126, %p1127
      %p1129 = pneg %p1128
      // Predicated region
      $region129: #{tpu_custom_call.1} parent=5 // pred_check
        _
      $region130: #{tpu_custom_call.1} parent=5 // pred_check_branch
        %1131 = sbr.rel (%p1128) target = $region132
      $region131: #{tpu_custom_call.1} parent=5 // pred_region
        %s1132 = ssub.s32 %s37, 1
        // Predicated region
        $region133: #{tpu_custom_call.1} parent=131 // pred_check
          %p1133 = pneg %p58
        $region134: #{tpu_custom_call.1} parent=131 // pred_check_branch
          %1135 = sbr.rel (%p1133) target = $region136
        $region135: #{tpu_custom_call.1} parent=131 // pred_region
          %1136 = dma.done [#allocation3], 256
        $region136: #{tpu_custom_call.1} parent=131 // pred_fallthru
          _
        // Predicated region
        $region137: #{tpu_custom_call.1} parent=131 // pred_check
          %p1137 = pneg %p79
        $region138: #{tpu_custom_call.1} parent=131 // pred_check_branch
          %1139 = sbr.rel (%p1137) target = $region140
        $region139: #{tpu_custom_call.1} parent=131 // pred_region
          %1140 = dma.done [#allocation6], 128
        $region140: #{tpu_custom_call.1} parent=131 // pred_fallthru
          _
        %s1141 = sand.u32 %s42, 1
        %s1142 = scalar_lea.sflag [#allocation3], %s1141
        %s1143 = sand.u32 %s92, 1
        %s1144 = smul.addr %s1143, 64
        %s1145 = scalar_lea.vmem [#allocation7], %s1144
        // Predicated region
        $region141: #{tpu_custom_call.1} parent=131 // pred_check
          %p1146 = pneg %p105
        $region142: #{tpu_custom_call.1} parent=131 // pred_check_branch
          %1148 = sbr.rel (%p1146) target = $region144
        $region143: #{tpu_custom_call.1} parent=131 // pred_region
          %1149 = dma.done %s1142, 1024
        $region144: #{tpu_custom_call.1} parent=131 // pred_fallthru
          _
        %s1150 = sand.u32 %s42, 1
        %s1151 = scalar_lea.sflag [#allocation3], %s1150
        %s1152 = sand.u32 %s144, 1
        %s1153 = smul.addr %s1152, 64
        %s1154 = scalar_lea.vmem [#allocation8], %s1153
        // Predicated region
        $region145: #{tpu_custom_call.1} parent=131 // pred_check
          %p1155 = pneg %p157
        $region146: #{tpu_custom_call.1} parent=131 // pred_check_branch
          %1157 = sbr.rel (%p1155) target = $region148
        $region147: #{tpu_custom_call.1} parent=131 // pred_region
          %1158 = dma.done %s1151, 1024
        $region148: #{tpu_custom_call.1} parent=131 // pred_fallthru
          _
        %s1159 = sand.u32 %s42, 1
        %s1160 = scalar_lea.sflag [#allocation3], %s1159
        %s1161 = sand.u32 %s196, 1
        %s1162 = smul.addr %s1161, 64
        %s1163 = scalar_lea.vmem [#allocation9], %s1162
        // Predicated region
        $region149: #{tpu_custom_call.1} parent=131 // pred_check
          %p1164 = pneg %p209
        $region150: #{tpu_custom_call.1} parent=131 // pred_check_branch
          %1166 = sbr.rel (%p1164) target = $region152
        $region151: #{tpu_custom_call.1} parent=131 // pred_region
          %1167 = dma.done %s1160, 1024
        $region152: #{tpu_custom_call.1} parent=131 // pred_fallthru
          _
        %s1168 = sand.u32 %s42, 1
        %s1169 = scalar_lea.sflag [#allocation3], %s1168
        %s1170 = sand.u32 %s248, 1
        %s1171 = smul.addr %s1170, 64
        %s1172 = scalar_lea.vmem [#allocation10], %s1171
        // Predicated region
        $region153: #{tpu_custom_call.1} parent=131 // pred_check
          %p1173 = pneg %p261
        $region154: #{tpu_custom_call.1} parent=131 // pred_check_branch
          %1175 = sbr.rel (%p1173) target = $region156
        $region155: #{tpu_custom_call.1} parent=131 // pred_region
          %1176 = dma.done %s1169, 1024
        $region156: #{tpu_custom_call.1} parent=131 // pred_fallthru
          _
        %s1177 = sand.u32 %s42, 1
        %s1178 = scalar_lea.sflag [#allocation3], %s1177
        %s1179 = sand.u32 %s300, 1
        %s1180 = smul.addr %s1179, 64
        %s1181 = scalar_lea.vmem [#allocation11], %s1180
        // Predicated region
        $region157: #{tpu_custom_call.1} parent=131 // pred_check
          %p1182 = pneg %p313
        $region158: #{tpu_custom_call.1} parent=131 // pred_check_branch
          %1184 = sbr.rel (%p1182) target = $region160
        $region159: #{tpu_custom_call.1} parent=131 // pred_region
          %1185 = dma.done %s1178, 1024
        $region160: #{tpu_custom_call.1} parent=131 // pred_fallthru
          _
        %s1186 = sand.u32 %s42, 1
        %s1187 = scalar_lea.sflag [#allocation3], %s1186
        %s1188 = sand.u32 %s352, 1
        %s1189 = smul.addr %s1188, 64
        %s1190 = scalar_lea.vmem [#allocation12], %s1189
        // Predicated region
        $region161: #{tpu_custom_call.1} parent=131 // pred_check
          %p1191 = pneg %p365
        $region162: #{tpu_custom_call.1} parent=131 // pred_check_branch
          %1193 = sbr.rel (%p1191) target = $region164
        $region163: #{tpu_custom_call.1} parent=131 // pred_region
          %1194 = dma.done %s1187, 1024
        $region164: #{tpu_custom_call.1} parent=131 // pred_fallthru
          _
        %s1195 = sand.u32 %s42, 1
        %s1196 = scalar_lea.sflag [#allocation3], %s1195
        %s1197 = sand.u32 %s404, 1
        %s1198 = smul.addr %s1197, 64
        %s1199 = scalar_lea.vmem [#allocation13], %s1198
        // Predicated region
        $region165: #{tpu_custom_call.1} parent=131 // pred_check
          %p1200 = pneg %p417
        $region166: #{tpu_custom_call.1} parent=131 // pred_check_branch
          %1202 = sbr.rel (%p1200) target = $region168
        $region167: #{tpu_custom_call.1} parent=131 // pred_region
          %1203 = dma.done %s1196, 1024
        $region168: #{tpu_custom_call.1} parent=131 // pred_fallthru
          _
        %s1204 = sand.u32 %s42, 1
        %s1205 = scalar_lea.sflag [#allocation3], %s1204
        %s1206 = sand.u32 %s456, 1
        %s1207 = smul.addr %s1206, 64
        %s1208 = scalar_lea.vmem [#allocation14], %s1207
        // Predicated region
        $region169: #{tpu_custom_call.1} parent=131 // pred_check
          %p1209 = pneg %p469
        $region170: #{tpu_custom_call.1} parent=131 // pred_check_branch
          %1211 = sbr.rel (%p1209) target = $region172
        $region171: #{tpu_custom_call.1} parent=131 // pred_region
          %1212 = dma.done %s1205, 1024
        $region172: #{tpu_custom_call.1} parent=131 // pred_fallthru
          _
        %s1213 = sand.u32 %s42, 1
        %s1214 = scalar_lea.sflag [#allocation3], %s1213
        %s1215 = sand.u32 %s664, 1
        %s1216 = smul.addr %s1215, 128
        %s1217 = scalar_lea.vmem [#allocation15], %s1216
        // Predicated region
        $region173: #{tpu_custom_call.1} parent=131 // pred_check
          %p1218 = pneg %p677
        $region174: #{tpu_custom_call.1} parent=131 // pred_check_branch
          %1220 = sbr.rel (%p1218) target = $region176
        $region175: #{tpu_custom_call.1} parent=131 // pred_region
          %1221 = dma.done %s1214, 2048
        $region176: #{tpu_custom_call.1} parent=131 // pred_fallthru
          _
        %s1222 = sand.u32 %s42, 1
        %s1223 = scalar_lea.sflag [#allocation3], %s1222
        %s1224 = sand.u32 %s716, 1
        %s1225 = smul.addr %s1224, 128
        %s1226 = scalar_lea.vmem [#allocation16], %s1225
        // Predicated region
        $region177: #{tpu_custom_call.1} parent=131 // pred_check
          %p1227 = pneg %p729
        $region178: #{tpu_custom_call.1} parent=131 // pred_check_branch
          %1229 = sbr.rel (%p1227) target = $region180
        $region179: #{tpu_custom_call.1} parent=131 // pred_region
          %1230 = dma.done %s1223, 2048
        $region180: #{tpu_custom_call.1} parent=131 // pred_fallthru
          _
        %p1231 = pneg %p58
        %p1232 = pneg %p55
        %p1233 = pneg %p79
        %p1234 = pneg %p76
        %s1235 = sand.u32 %s42, 1
        %s1236 = scalar_lea.sflag [#allocation3], %s1235
        %s1237 = sand.u32 %s92, 1
        %s1238 = smul.addr %s1237, 64
        %s1239 = scalar_lea.vmem [#allocation7], %s1238
        %p1240 = pneg %p105
        %p1241 = pneg %p102
        %p1242 = scmp.lt.s32.totalorder %s42, 1
        %s1243 = scalar_select %p1242, %s42, 1
        %s1244 = scalar_lea.vmem %s3, %s1243
        %p1245 = pneg %p131
        %p1246 = pneg %p128
        %s1247 = sand.u32 %s42, 1
        %s1248 = scalar_lea.sflag [#allocation3], %s1247
        %s1249 = sand.u32 %s144, 1
        %s1250 = smul.addr %s1249, 64
        %s1251 = scalar_lea.vmem [#allocation8], %s1250
        %p1252 = pneg %p157
        %p1253 = pneg %p154
        %p1254 = scmp.lt.s32.totalorder %s42, 1
        %s1255 = scalar_select %p1254, %s42, 1
        %s1256 = scalar_lea.vmem %s5, %s1255
        %p1257 = pneg %p183
        %p1258 = pneg %p180
        %s1259 = sand.u32 %s42, 1
        %s1260 = scalar_lea.sflag [#allocation3], %s1259
        %s1261 = sand.u32 %s196, 1
        %s1262 = smul.addr %s1261, 64
        %s1263 = scalar_lea.vmem [#allocation9], %s1262
        %p1264 = pneg %p209
        %p1265 = pneg %p206
        %p1266 = scmp.lt.s32.totalorder %s42, 1
        %s1267 = scalar_select %p1266, %s42, 1
        %s1268 = scalar_lea.vmem %s7, %s1267
        %p1269 = pneg %p235
        %p1270 = pneg %p232
        %s1271 = sand.u32 %s42, 1
        %s1272 = scalar_lea.sflag [#allocation3], %s1271
        %s1273 = sand.u32 %s248, 1
        %s1274 = smul.addr %s1273, 64
        %s1275 = scalar_lea.vmem [#allocation10], %s1274
        %p1276 = pneg %p261
        %p1277 = pneg %p258
        %p1278 = scmp.lt.s32.totalorder %s42, 1
        %s1279 = scalar_select %p1278, %s42, 1
        %s1280 = scalar_lea.vmem %s9, %s1279
        %p1281 = pneg %p287
        %p1282 = pneg %p284
        %s1283 = sand.u32 %s42, 1
        %s1284 = scalar_lea.sflag [#allocation3], %s1283
        %s1285 = sand.u32 %s300, 1
        %s1286 = smul.addr %s1285, 64
        %s1287 = scalar_lea.vmem [#allocation11], %s1286
        %p1288 = pneg %p313
        %p1289 = pneg %p310
        %p1290 = scmp.lt.s32.totalorder %s42, 1
        %s1291 = scalar_select %p1290, %s42, 1
        %s1292 = scalar_lea.vmem %s11, %s1291
        %p1293 = pneg %p339
        %p1294 = pneg %p336
        %s1295 = sand.u32 %s42, 1
        %s1296 = scalar_lea.sflag [#allocation3], %s1295
        %s1297 = sand.u32 %s352, 1
        %s1298 = smul.addr %s1297, 64
        %s1299 = scalar_lea.vmem [#allocation12], %s1298
        %p1300 = pneg %p365
        %p1301 = pneg %p362
        %p1302 = scmp.lt.s32.totalorder %s42, 1
        %s1303 = scalar_select %p1302, %s42, 1
        %s1304 = scalar_lea.vmem %s13, %s1303
        %p1305 = pneg %p391
        %p1306 = pneg %p388
        %s1307 = sand.u32 %s42, 1
        %s1308 = scalar_lea.sflag [#allocation3], %s1307
        %s1309 = sand.u32 %s404, 1
        %s1310 = smul.addr %s1309, 64
        %s1311 = scalar_lea.vmem [#allocation13], %s1310
        %p1312 = pneg %p417
        %p1313 = pneg %p414
        %p1314 = scmp.lt.s32.totalorder %s42, 1
        %s1315 = scalar_select %p1314, %s42, 1
        %s1316 = scalar_lea.vmem %s15, %s1315
        %p1317 = pneg %p443
        %p1318 = pneg %p440
        %s1319 = sand.u32 %s42, 1
        %s1320 = scalar_lea.sflag [#allocation3], %s1319
        %s1321 = sand.u32 %s456, 1
        %s1322 = smul.addr %s1321, 64
        %s1323 = scalar_lea.vmem [#allocation14], %s1322
        %p1324 = pneg %p469
        %p1325 = pneg %p466
        %p1326 = scmp.lt.s32.totalorder %s42, 1
        %s1327 = scalar_select %p1326, %s42, 1
        %s1328 = scalar_lea.vmem %s17, %s1327
        %p1329 = pneg %p495
        %p1330 = pneg %p492
        %p1331 = scmp.lt.s32.totalorder %s42, 1
        %s1332 = scalar_select %p1331, %s42, 1
        %s1333 = scalar_lea.vmem %s18, %s1332
        %p1334 = pneg %p521
        %p1335 = pneg %p518
        %p1336 = scmp.lt.s32.totalorder %s42, 1
        %s1337 = scalar_select %p1336, %s42, 1
        %s1338 = scalar_lea.vmem %s19, %s1337
        %p1339 = pneg %p547
        %p1340 = pneg %p544
        %p1341 = scmp.lt.s32.totalorder %s42, 1
        %s1342 = scalar_select %p1341, %s42, 1
        %s1343 = scalar_lea.vmem %s20, %s1342
        %p1344 = pneg %p573
        %p1345 = pneg %p570
        %p1346 = scmp.lt.s32.totalorder %s42, 1
        %s1347 = scalar_select %p1346, %s42, 1
        %s1348 = scalar_lea.vmem %s21, %s1347
        %p1349 = pneg %p599
        %p1350 = pneg %p596
        %p1351 = scmp.lt.s32.totalorder %s42, 1
        %s1352 = scalar_select %p1351, %s42, 1
        %s1353 = scalar_lea.vmem %s22, %s1352
        %p1354 = pneg %p625
        %p1355 = pneg %p622
        %p1356 = scmp.lt.s32.totalorder %s42, 1
        %s1357 = scalar_select %p1356, %s42, 1
        %s1358 = scalar_lea.vmem %s23, %s1357
        %p1359 = pneg %p651
        %p1360 = pneg %p648
        %s1361 = sand.u32 %s42, 1
        %s1362 = scalar_lea.sflag [#allocation3], %s1361
        %s1363 = sand.u32 %s664, 1
        %s1364 = smul.addr %s1363, 128
        %s1365 = scalar_lea.vmem [#allocation15], %s1364
        %p1366 = pneg %p677
        %p1367 = pneg %p674
        %p1368 = scmp.lt.s32.totalorder %s42, 1
        %s1369 = scalar_select %p1368, %s42, 1
        %s1370 = smul.addr %s1369, 2
        %s1371 = scalar_lea.vmem %s25, %s1370
        %p1372 = pneg %p703
        %p1373 = pneg %p700
        %s1374 = sand.u32 %s42, 1
        %s1375 = scalar_lea.sflag [#allocation3], %s1374
        %s1376 = sand.u32 %s716, 1
        %s1377 = smul.addr %s1376, 128
        %s1378 = scalar_lea.vmem [#allocation16], %s1377
        %p1379 = pneg %p729
        %p1380 = pneg %p726
        %p1381 = scmp.lt.s32.totalorder %s42, 1
        %s1382 = scalar_select %p1381, %s42, 1
        %s1383 = scalar_lea.vmem %s27, %s1382
        %p1384 = pneg %p755
        %p1385 = pneg %p752
        %p1386 = pneg %p776
        %p1387 = pneg %p773
        %p1388 = scmp.lt.s32.totalorder %s42, 1
        %s1389 = scalar_select %p1388, %s42, 1
        %s1390 = scalar_lea.vmem %s3, %s1389
        %p1391 = scmp.lt.s32.totalorder %s42, 1
        %s1392 = scalar_select %p1391, %s42, 1
        %s1393 = scalar_lea.vmem %s5, %s1392
        %p1394 = scmp.lt.s32.totalorder %s42, 1
        %s1395 = scalar_select %p1394, %s42, 1
        %s1396 = scalar_lea.vmem %s7, %s1395
        %p1397 = scmp.lt.s32.totalorder %s42, 1
        %s1398 = scalar_select %p1397, %s42, 1
        %s1399 = scalar_lea.vmem %s9, %s1398
        %p1400 = scmp.lt.s32.totalorder %s42, 1
        %s1401 = scalar_select %p1400, %s42, 1
        %s1402 = scalar_lea.vmem %s11, %s1401
        %p1403 = scmp.lt.s32.totalorder %s42, 1
        %s1404 = scalar_select %p1403, %s42, 1
        %s1405 = scalar_lea.vmem %s13, %s1404
        %p1406 = scmp.lt.s32.totalorder %s42, 1
        %s1407 = scalar_select %p1406, %s42, 1
        %s1408 = scalar_lea.vmem %s15, %s1407
        %p1409 = scmp.lt.s32.totalorder %s42, 1
        %s1410 = scalar_select %p1409, %s42, 1
        %s1411 = scalar_lea.vmem %s17, %s1410
        %p1412 = scmp.lt.s32.totalorder %s42, 1
        %s1413 = scalar_select %p1412, %s42, 1
        %s1414 = scalar_lea.vmem %s18, %s1413
        %p1415 = scmp.lt.s32.totalorder %s42, 1
        %s1416 = scalar_select %p1415, %s42, 1
        %s1417 = scalar_lea.vmem %s19, %s1416
        %p1418 = scmp.lt.s32.totalorder %s42, 1
        %s1419 = scalar_select %p1418, %s42, 1
        %s1420 = scalar_lea.vmem %s20, %s1419
        %p1421 = scmp.lt.s32.totalorder %s42, 1
        %s1422 = scalar_select %p1421, %s42, 1
        %s1423 = scalar_lea.vmem %s21, %s1422
        %p1424 = scmp.lt.s32.totalorder %s42, 1
        %s1425 = scalar_select %p1424, %s42, 1
        %s1426 = scalar_lea.vmem %s22, %s1425
        %p1427 = scmp.lt.s32.totalorder %s42, 1
        %s1428 = scalar_select %p1427, %s42, 1
        %s1429 = scalar_lea.vmem %s23, %s1428
        %p1430 = scmp.lt.s32.totalorder %s42, 1
        %s1431 = scalar_select %p1430, %s42, 1
        %s1432 = smul.addr %s1431, 2
        %s1433 = scalar_lea.vmem %s25, %s1432
        %p1434 = scmp.lt.s32.totalorder %s42, 1
        %s1435 = scalar_select %p1434, %s42, 1
        %s1436 = scalar_lea.vmem %s27, %s1435
        %p1438 = scmp.eq.s32.totalorder %s42, 0
        // Predicated region
        $region181: #{tpu_custom_call.1} parent=131 // pred_check
          %p1439 = pneg %p1438
        $region182: #{tpu_custom_call.1} parent=131 // pred_check_branch
          %1441 = sbr.rel (%p1439) target = $region184
        $region183: #{tpu_custom_call.1} parent=131 // pred_region
          %v1442 = vld [vmem:[#allocation2] sm:$0xff]
          %v1443 = vld [vmem:[#allocation2 + $0x8] sm:$0xff]
          %1444 = vst [vmem:[#allocation17] sm:$0xff] %v1442
          %1445 = vst [vmem:[#allocation17 + $0x8] sm:$0xff] %v1443
        $region184: #{tpu_custom_call.1} parent=131 // pred_fallthru
          _
        %v1446 = vld [vmem:[#allocation17] sm:$0xff]
        %v1447 = vld [vmem:[#allocation17 + $0x8] sm:$0xff]
        %v1448 = vld [vmem:[#allocation2] sm:$0xff]
        %v1449 = vld [vmem:[#allocation2 + $0x8] sm:$0xff]
        %v1450 = vld [vmem:[#allocation5] sm:$0xff]
        %v1451 = vld [vmem:[%s1145] sm:$0xf]
        %v1452 = vld [vmem:[%s1145 + $0x4] sm:$0xf]
        %v1453 = vld [vmem:[%s1145 + $0x8] sm:$0xf]
        %v1454 = vld [vmem:[%s1145 + $0xc] sm:$0xf]
        %v1455 = vld [vmem:[%s1145 + $0x10] sm:$0xf]
        %v1456 = vld [vmem:[%s1145 + $0x14] sm:$0xf]
        %v1457 = vld [vmem:[%s1145 + $0x18] sm:$0xf]
        %v1458 = vld [vmem:[%s1145 + $0x1c] sm:$0xf]
        %v1459 = vld [vmem:[%s1145 + $0x20] sm:$0xf]
        %v1460 = vld [vmem:[%s1145 + $0x24] sm:$0xf]
        %v1461 = vld [vmem:[%s1145 + $0x28] sm:$0xf]
        %v1462 = vld [vmem:[%s1145 + $0x2c] sm:$0xf]
        %v1463 = vld [vmem:[%s1145 + $0x30] sm:$0xf]
        %v1464 = vld [vmem:[%s1145 + $0x34] sm:$0xf]
        %v1465 = vld [vmem:[%s1145 + $0x38] sm:$0xf]
        %v1466 = vld [vmem:[%s1145 + $0x3c] sm:$0xf]
        %v1467 = vld [vmem:[%s1154] sm:$0xf]
        %v1468 = vld [vmem:[%s1154 + $0x4] sm:$0xf]
        %v1469 = vld [vmem:[%s1154 + $0x8] sm:$0xf]
        %v1470 = vld [vmem:[%s1154 + $0xc] sm:$0xf]
        %v1471 = vld [vmem:[%s1154 + $0x10] sm:$0xf]
        %v1472 = vld [vmem:[%s1154 + $0x14] sm:$0xf]
        %v1473 = vld [vmem:[%s1154 + $0x18] sm:$0xf]
        %v1474 = vld [vmem:[%s1154 + $0x1c] sm:$0xf]
        %v1475 = vld [vmem:[%s1154 + $0x20] sm:$0xf]
        %v1476 = vld [vmem:[%s1154 + $0x24] sm:$0xf]
        %v1477 = vld [vmem:[%s1154 + $0x28] sm:$0xf]
        %v1478 = vld [vmem:[%s1154 + $0x2c] sm:$0xf]
        %v1479 = vld [vmem:[%s1154 + $0x30] sm:$0xf]
        %v1480 = vld [vmem:[%s1154 + $0x34] sm:$0xf]
        %v1481 = vld [vmem:[%s1154 + $0x38] sm:$0xf]
        %v1482 = vld [vmem:[%s1154 + $0x3c] sm:$0xf]
        %v1483 = vld [vmem:[%s1163] sm:$0xf]
        %v1484 = vld [vmem:[%s1163 + $0x4] sm:$0xf]
        %v1485 = vld [vmem:[%s1163 + $0x8] sm:$0xf]
        %v1486 = vld [vmem:[%s1163 + $0xc] sm:$0xf]
        %v1487 = vld [vmem:[%s1163 + $0x10] sm:$0xf]
        %v1488 = vld [vmem:[%s1163 + $0x14] sm:$0xf]
        %v1489 = vld [vmem:[%s1163 + $0x18] sm:$0xf]
        %v1490 = vld [vmem:[%s1163 + $0x1c] sm:$0xf]
        %v1491 = vld [vmem:[%s1163 + $0x20] sm:$0xf]
        %v1492 = vld [vmem:[%s1163 + $0x24] sm:$0xf]
        %v1493 = vld [vmem:[%s1163 + $0x28] sm:$0xf]
        %v1494 = vld [vmem:[%s1163 + $0x2c] sm:$0xf]
        %v1495 = vld [vmem:[%s1163 + $0x30] sm:$0xf]
        %v1496 = vld [vmem:[%s1163 + $0x34] sm:$0xf]
        %v1497 = vld [vmem:[%s1163 + $0x38] sm:$0xf]
        %v1498 = vld [vmem:[%s1163 + $0x3c] sm:$0xf]
        %v1499 = vld [vmem:[%s1172] sm:$0xf]
        %v1500 = vld [vmem:[%s1172 + $0x4] sm:$0xf]
        %v1501 = vld [vmem:[%s1172 + $0x8] sm:$0xf]
        %v1502 = vld [vmem:[%s1172 + $0xc] sm:$0xf]
        %v1503 = vld [vmem:[%s1172 + $0x10] sm:$0xf]
        %v1504 = vld [vmem:[%s1172 + $0x14] sm:$0xf]
        %v1505 = vld [vmem:[%s1172 + $0x18] sm:$0xf]
        %v1506 = vld [vmem:[%s1172 + $0x1c] sm:$0xf]
        %v1507 = vld [vmem:[%s1172 + $0x20] sm:$0xf]
        %v1508 = vld [vmem:[%s1172 + $0x24] sm:$0xf]
        %v1509 = vld [vmem:[%s1172 + $0x28] sm:$0xf]
        %v1510 = vld [vmem:[%s1172 + $0x2c] sm:$0xf]
        %v1511 = vld [vmem:[%s1172 + $0x30] sm:$0xf]
        %v1512 = vld [vmem:[%s1172 + $0x34] sm:$0xf]
        %v1513 = vld [vmem:[%s1172 + $0x38] sm:$0xf]
        %v1514 = vld [vmem:[%s1172 + $0x3c] sm:$0xf]
        %v1515 = vld [vmem:[%s1390] sm:$0x1]
        %v1516 = vld [vmem:[%s1393] sm:$0x1]
        %v1517 = vld [vmem:[%s1396] sm:$0x1]
        %v1518 = vld [vmem:[%s1399] sm:$0x1]
        %v1519 = vpack.c.bf16 %v1447, %v1446
        %v1521 = vlaneseq
        %v1522 = vshrl.u32 %v1521, 7
        %v1523 = vsub.s32 0, %v1522
        %v1524 = vrot.slane %v1515, %v1523
        %v1542 = vunpack.c.l.b16 %v1451
        %v1543 = vunpack.c.l.b16 %v1452
        %v1544 = vunpack.c.l.b16 %v1453
        %v1545 = vunpack.c.l.b16 %v1454
        %v1546 = vunpack.c.l.b16 %v1455
        %v1547 = vunpack.c.l.b16 %v1456
        %v1548 = vunpack.c.l.b16 %v1457
        %v1549 = vunpack.c.l.b16 %v1458
        %v1550 = vunpack.c.l.b16 %v1459
        %v1551 = vunpack.c.l.b16 %v1460
        %v1552 = vunpack.c.l.b16 %v1461
        %v1553 = vunpack.c.l.b16 %v1462
        %v1554 = vunpack.c.l.b16 %v1463
        %v1555 = vunpack.c.l.b16 %v1464
        %v1556 = vunpack.c.l.b16 %v1465
        %v1557 = vunpack.c.l.b16 %v1466
        %v1558 = vpack.c.b16 %v1543, %v1542
        %v1559 = vpack.c.b16 %v1545, %v1544
        %v1560 = vpack.c.b16 %v1547, %v1546
        %v1561 = vpack.c.b16 %v1549, %v1548
        %v1562 = vpack.c.b16 %v1551, %v1550
        %v1563 = vpack.c.b16 %v1553, %v1552
        %v1564 = vpack.c.b16 %v1555, %v1554
        %v1565 = vpack.c.b16 %v1557, %v1556
        %1574 = vmatprep.subr.bf16.mxu0 0
        %1575 = vmatpush1.bf16.msra.mxu0 %v1558
        %1576 = vmatprep.subr.bf16.mxu0 0
        %1577 = vmatpush1.bf16.msra.mxu0 %v1559
        %1578 = vmatprep.subr.bf16.mxu0 0
        %1579 = vmatpush1.bf16.msra.mxu0 %v1560
        %1580 = vmatprep.subr.bf16.mxu0 0
        %1581 = vmatpush1.bf16.msra.mxu0 %v1561
        %1582 = vmatprep.subr.bf16.mxu0 0
        %1583 = vmatpush1.bf16.msra.mxu0 %v1562
        %1584 = vmatprep.subr.bf16.mxu0 0
        %1585 = vmatpush1.bf16.msra.mxu0 %v1563
        %1586 = vmatprep.subr.bf16.mxu0 0
        %1587 = vmatpush1.bf16.msra.mxu0 %v1564
        %1588 = vmatprep.subr.bf16.mxu0 0
        %1589 = vmatpush1.bf16.msra.mxu0 %v1565
        %1590 = vmatprep.subr.bf16.mxu0 0
        %1591 = vmatpush1.bf16.msra.mxu0 0
        %1592 = vmatprep.subr.bf16.mxu0 0
        %1593 = vmatpush1.bf16.msra.mxu0 0
        %1594 = vmatprep.subr.bf16.mxu0 0
        %1595 = vmatpush1.bf16.msra.mxu0 0
        %1596 = vmatprep.subr.bf16.mxu0 0
        %1597 = vmatpush1.bf16.msra.mxu0 0
        %1598 = vmatprep.subr.bf16.mxu0 0
        %1599 = vmatpush1.bf16.msra.mxu0 0
        %1600 = vmatprep.subr.bf16.mxu0 0
        %1601 = vmatpush1.bf16.msra.mxu0 0
        %1602 = vmatprep.subr.bf16.mxu0 0
        %1603 = vmatpush1.bf16.msra.mxu0 0
        %1604 = vmatprep.subr.bf16.mxu0 0
        %1605 = vmatpush1.bf16.msra.mxu0 0
        %1606 = vmatprep.mubr.bf16.mxu0 0
        %1607 = vmatmul.mubr.bf16.gmra.mrb[0].mxu0 %v1519
        %v1608 = vpop.f32.mrb[0].mxu0
        %v1609 = vadd.f32 %v1524, %v1608
        %v1610 = vpop.f32.mrb[0].mxu0
        %v1611 = vpop.f32.mrb[0].mxu0
        %v1612 = vadd.f32 %v1524, %v1611
        %v1613 = vpop.f32.mrb[0].mxu0
        %1614 = vdwg.mxu0
        %v1616 = vlaneseq
        %v1617 = vshrl.u32 %v1616, 7
        %v1618 = vsub.s32 0, %v1617
        %v1619 = vrot.slane %v1516, %v1618
        %v1637 = vunpack.c.l.b16 %v1467
        %v1638 = vunpack.c.l.b16 %v1468
        %v1639 = vunpack.c.l.b16 %v1469
        %v1640 = vunpack.c.l.b16 %v1470
        %v1641 = vunpack.c.l.b16 %v1471
        %v1642 = vunpack.c.l.b16 %v1472
        %v1643 = vunpack.c.l.b16 %v1473
        %v1644 = vunpack.c.l.b16 %v1474
        %v1645 = vunpack.c.l.b16 %v1475
        %v1646 = vunpack.c.l.b16 %v1476
        %v1647 = vunpack.c.l.b16 %v1477
        %v1648 = vunpack.c.l.b16 %v1478
        %v1649 = vunpack.c.l.b16 %v1479
        %v1650 = vunpack.c.l.b16 %v1480
        %v1651 = vunpack.c.l.b16 %v1481
        %v1652 = vunpack.c.l.b16 %v1482
        %v1653 = vpack.c.b16 %v1638, %v1637
        %v1654 = vpack.c.b16 %v1640, %v1639
        %v1655 = vpack.c.b16 %v1642, %v1641
        %v1656 = vpack.c.b16 %v1644, %v1643
        %v1657 = vpack.c.b16 %v1646, %v1645
        %v1658 = vpack.c.b16 %v1648, %v1647
        %v1659 = vpack.c.b16 %v1650, %v1649
        %v1660 = vpack.c.b16 %v1652, %v1651
        %1669 = vmatprep.subr.bf16.mxu0 0
        %1670 = vmatpush1.bf16.msra.mxu0 %v1653
        %1671 = vmatprep.subr.bf16.mxu0 0
        %1672 = vmatpush1.bf16.msra.mxu0 %v1654
        %1673 = vmatprep.subr.bf16.mxu0 0
        %1674 = vmatpush1.bf16.msra.mxu0 %v1655
        %1675 = vmatprep.subr.bf16.mxu0 0
        %1676 = vmatpush1.bf16.msra.mxu0 %v1656
        %1677 = vmatprep.subr.bf16.mxu0 0
        %1678 = vmatpush1.bf16.msra.mxu0 %v1657
        %1679 = vmatprep.subr.bf16.mxu0 0
        %1680 = vmatpush1.bf16.msra.mxu0 %v1658
        %1681 = vmatprep.subr.bf16.mxu0 0
        %1682 = vmatpush1.bf16.msra.mxu0 %v1659
        %1683 = vmatprep.subr.bf16.mxu0 0
        %1684 = vmatpush1.bf16.msra.mxu0 %v1660
        %1685 = vmatprep.subr.bf16.mxu0 0
        %1686 = vmatpush1.bf16.msra.mxu0 0
        %1687 = vmatprep.subr.bf16.mxu0 0
        %1688 = vmatpush1.bf16.msra.mxu0 0
        %1689 = vmatprep.subr.bf16.mxu0 0
        %1690 = vmatpush1.bf16.msra.mxu0 0
        %1691 = vmatprep.subr.bf16.mxu0 0
        %1692 = vmatpush1.bf16.msra.mxu0 0
        %1693 = vmatprep.subr.bf16.mxu0 0
        %1694 = vmatpush1.bf16.msra.mxu0 0
        %1695 = vmatprep.subr.bf16.mxu0 0
        %1696 = vmatpush1.bf16.msra.mxu0 0
        %1697 = vmatprep.subr.bf16.mxu0 0
        %1698 = vmatpush1.bf16.msra.mxu0 0
        %1699 = vmatprep.subr.bf16.mxu0 0
        %1700 = vmatpush1.bf16.msra.mxu0 0
        %1701 = vmatprep.mubr.bf16.mxu0 0
        %1702 = vmatmul.mubr.bf16.gmra.mrb[0].mxu0 %v1519
        %v1703 = vpop.f32.mrb[0].mxu0
        %v1704 = vadd.f32 %v1619, %v1703
        %v1705 = vpop.f32.mrb[0].mxu0
        %v1706 = vpop.f32.mrb[0].mxu0
        %v1707 = vadd.f32 %v1619, %v1706
        %v1708 = vpop.f32.mrb[0].mxu0
        %1709 = vdwg.mxu0
        %v1711 = vlaneseq
        %v1712 = vshrl.u32 %v1711, 7
        %v1713 = vsub.s32 0, %v1712
        %v1714 = vrot.slane %v1517, %v1713
        %v1732 = vunpack.c.l.b16 %v1483
        %v1733 = vunpack.c.l.b16 %v1484
        %v1734 = vunpack.c.l.b16 %v1485
        %v1735 = vunpack.c.l.b16 %v1486
        %v1736 = vunpack.c.l.b16 %v1487
        %v1737 = vunpack.c.l.b16 %v1488
        %v1738 = vunpack.c.l.b16 %v1489
        %v1739 = vunpack.c.l.b16 %v1490
        %v1740 = vunpack.c.l.b16 %v1491
        %v1741 = vunpack.c.l.b16 %v1492
        %v1742 = vunpack.c.l.b16 %v1493
        %v1743 = vunpack.c.l.b16 %v1494
        %v1744 = vunpack.c.l.b16 %v1495
        %v1745 = vunpack.c.l.b16 %v1496
        %v1746 = vunpack.c.l.b16 %v1497
        %v1747 = vunpack.c.l.b16 %v1498
        %v1748 = vpack.c.b16 %v1733, %v1732
        %v1749 = vpack.c.b16 %v1735, %v1734
        %v1750 = vpack.c.b16 %v1737, %v1736
        %v1751 = vpack.c.b16 %v1739, %v1738
        %v1752 = vpack.c.b16 %v1741, %v1740
        %v1753 = vpack.c.b16 %v1743, %v1742
        %v1754 = vpack.c.b16 %v1745, %v1744
        %v1755 = vpack.c.b16 %v1747, %v1746
        %1764 = vmatprep.subr.bf16.mxu0 0
        %1765 = vmatpush1.bf16.msra.mxu0 %v1748
        %1766 = vmatprep.subr.bf16.mxu0 0
        %1767 = vmatpush1.bf16.msra.mxu0 %v1749
        %1768 = vmatprep.subr.bf16.mxu0 0
        %1769 = vmatpush1.bf16.msra.mxu0 %v1750
        %1770 = vmatprep.subr.bf16.mxu0 0
        %1771 = vmatpush1.bf16.msra.mxu0 %v1751
        %1772 = vmatprep.subr.bf16.mxu0 0
        %1773 = vmatpush1.bf16.msra.mxu0 %v1752
        %1774 = vmatprep.subr.bf16.mxu0 0
        %1775 = vmatpush1.bf16.msra.mxu0 %v1753
        %1776 = vmatprep.subr.bf16.mxu0 0
        %1777 = vmatpush1.bf16.msra.mxu0 %v1754
        %1778 = vmatprep.subr.bf16.mxu0 0
        %1779 = vmatpush1.bf16.msra.mxu0 %v1755
        %1780 = vmatprep.subr.bf16.mxu0 0
        %1781 = vmatpush1.bf16.msra.mxu0 0
        %1782 = vmatprep.subr.bf16.mxu0 0
        %1783 = vmatpush1.bf16.msra.mxu0 0
        %1784 = vmatprep.subr.bf16.mxu0 0
        %1785 = vmatpush1.bf16.msra.mxu0 0
        %1786 = vmatprep.subr.bf16.mxu0 0
        %1787 = vmatpush1.bf16.msra.mxu0 0
        %1788 = vmatprep.subr.bf16.mxu0 0
        %1789 = vmatpush1.bf16.msra.mxu0 0
        %1790 = vmatprep.subr.bf16.mxu0 0
        %1791 = vmatpush1.bf16.msra.mxu0 0
        %1792 = vmatprep.subr.bf16.mxu0 0
        %1793 = vmatpush1.bf16.msra.mxu0 0
        %1794 = vmatprep.subr.bf16.mxu0 0
        %1795 = vmatpush1.bf16.msra.mxu0 0
        %1796 = vmatprep.mubr.bf16.mxu0 0
        %1797 = vmatmul.mubr.bf16.gmra.mrb[0].mxu0 %v1519
        %v1798 = vpop.f32.mrb[0].mxu0
        %v1799 = vadd.f32 %v1714, %v1798
        %v1800 = vpop.f32.mrb[0].mxu0
        %v1801 = vpop.f32.mrb[0].mxu0
        %v1802 = vadd.f32 %v1714, %v1801
        %v1803 = vpop.f32.mrb[0].mxu0
        %1804 = vdwg.mxu0
        %v1805 = vpack.c.bf16 %v1609, %v1609
        %v1806 = vpack.c.bf16 %v1612, %v1612
        %v1807 = vpack.c.bf16 %v1704, %v1704
        %v1808 = vpack.c.bf16 %v1707, %v1707
        %v1809 = vpack.c.bf16 %v1799, %v1799
        %v1810 = vpack.c.bf16 %v1802, %v1802
        %vm1811 = vcmask 261120
        %v1813 = vsel %vm1811, %v1805, 0
        %v1816 = vsel %vm1811, %v1807, 0
        %1818 = vmatprep.subr.bf16.mxu0 0
        %1819 = vmatpush1.bf16.xpose.msra.mxu0 %v1816
        %1820 = vmatprep.subr.bf16.mxu0 0
        %1821 = vmatpush1.bf16.xpose.msra.mxu0 0
        %1822 = vmatprep.subr.bf16.mxu0 0
        %1823 = vmatpush1.bf16.xpose.msra.mxu0 0
        %1824 = vmatprep.subr.bf16.mxu0 0
        %1825 = vmatpush1.bf16.xpose.msra.mxu0 0
        %1826 = vmatprep.subr.bf16.mxu0 0
        %1827 = vmatpush1.bf16.xpose.msra.mxu0 0
        %1828 = vmatprep.subr.bf16.mxu0 0
        %1829 = vmatpush1.bf16.xpose.msra.mxu0 0
        %1830 = vmatprep.subr.bf16.mxu0 0
        %1831 = vmatpush1.bf16.xpose.msra.mxu0 0
        %1832 = vmatprep.subr.bf16.mxu0 0
        %1833 = vmatpush1.bf16.xpose.msra.mxu0 0
        %1834 = vmatprep.subr.bf16.mxu0 0
        %1835 = vmatpush1.bf16.xpose.msra.mxu0 0
        %1836 = vmatprep.subr.bf16.mxu0 0
        %1837 = vmatpush1.bf16.xpose.msra.mxu0 0
        %1838 = vmatprep.subr.bf16.mxu0 0
        %1839 = vmatpush1.bf16.xpose.msra.mxu0 0
        %1840 = vmatprep.subr.bf16.mxu0 0
        %1841 = vmatpush1.bf16.xpose.msra.mxu0 0
        %1842 = vmatprep.subr.bf16.mxu0 0
        %1843 = vmatpush1.bf16.xpose.msra.mxu0 0
        %1844 = vmatprep.subr.bf16.mxu0 0
        %1845 = vmatpush1.bf16.xpose.msra.mxu0 0
        %1846 = vmatprep.subr.bf16.mxu0 0
        %1847 = vmatpush1.bf16.xpose.msra.mxu0 0
        %1848 = vmatprep.subr.bf16.mxu0 0
        %1849 = vmatpush1.bf16.xpose.msra.mxu0 0
        %1850 = vmatprep.mubr.bf16.mxu0 0
        %1851 = vmatmul.mubr.bf16.gmra.mrb[0].mxu0 %v1813
        %v1852 = vpop.f32.mrb[0].mxu0
        %v1853 = vadd.f32 0.0, %v1852
        %v1854 = vpop.f32.mrb[0].mxu0
        %v1855 = vpop.f32.mrb[0].mxu0
        %v1856 = vpop.f32.mrb[0].mxu0
        %1857 = vdwg.mxu0
        %v1859 = vsel %vm1811, %v1806, 0
        %v1862 = vsel %vm1811, %v1808, 0
        %1864 = vmatprep.subr.bf16.mxu0 0
        %1865 = vmatpush1.bf16.xpose.msra.mxu0 %v1862
        %1866 = vmatprep.subr.bf16.mxu0 0
        %1867 = vmatpush1.bf16.xpose.msra.mxu0 0
        %1868 = vmatprep.subr.bf16.mxu0 0
        %1869 = vmatpush1.bf16.xpose.msra.mxu0 0
        %1870 = vmatprep.subr.bf16.mxu0 0
        %1871 = vmatpush1.bf16.xpose.msra.mxu0 0
        %1872 = vmatprep.subr.bf16.mxu0 0
        %1873 = vmatpush1.bf16.xpose.msra.mxu0 0
        %1874 = vmatprep.subr.bf16.mxu0 0
        %1875 = vmatpush1.bf16.xpose.msra.mxu0 0
        %1876 = vmatprep.subr.bf16.mxu0 0
        %1877 = vmatpush1.bf16.xpose.msra.mxu0 0
        %1878 = vmatprep.subr.bf16.mxu0 0
        %1879 = vmatpush1.bf16.xpose.msra.mxu0 0
        %1880 = vmatprep.subr.bf16.mxu0 0
        %1881 = vmatpush1.bf16.xpose.msra.mxu0 0
        %1882 = vmatprep.subr.bf16.mxu0 0
        %1883 = vmatpush1.bf16.xpose.msra.mxu0 0
        %1884 = vmatprep.subr.bf16.mxu0 0
        %1885 = vmatpush1.bf16.xpose.msra.mxu0 0
        %1886 = vmatprep.subr.bf16.mxu0 0
        %1887 = vmatpush1.bf16.xpose.msra.mxu0 0
        %1888 = vmatprep.subr.bf16.mxu0 0
        %1889 = vmatpush1.bf16.xpose.msra.mxu0 0
        %1890 = vmatprep.subr.bf16.mxu0 0
        %1891 = vmatpush1.bf16.xpose.msra.mxu0 0
        %1892 = vmatprep.subr.bf16.mxu0 0
        %1893 = vmatpush1.bf16.xpose.msra.mxu0 0
        %1894 = vmatprep.subr.bf16.mxu0 0
        %1895 = vmatpush1.bf16.xpose.msra.mxu0 0
        %1896 = vmatprep.mubr.bf16.mxu0 0
        %1897 = vmatmul.mubr.bf16.gmra.mrb[0].mxu0 %v1859
        %v1898 = vpop.f32.mrb[0].mxu0
        %v1899 = vadd.f32 0.0, %v1898
        %v1900 = vpop.f32.mrb[0].mxu0
        %v1901 = vpop.f32.mrb[0].mxu0
        %v1902 = vpop.f32.mrb[0].mxu0
        %1903 = vdwg.mxu0
        %v1904 = vmul.f32 %v1853, 0.17677669
        %v1905 = vmul.f32 %v1899, 0.17677669
        %v1906 = vadd.f32 %v1904, %v1450
        %v1907 = vadd.f32 %v1905, %v1450
        %vm1908 = vcmask 64512
        %v1909 = vsel %vm1908, %v1906, -inf
        %1910 = vmax.xlane.f32.xlu0 %v1909
        %v1911 = vpop.xlane.xlu0 %1910
        %v1912 = vsel %vm1908, %v1907, -inf
        %1913 = vmax.xlane.f32.xlu0 %v1912
        %v1914 = vpop.xlane.xlu0 %1913
        %v1915 = vsub.f32 %v1906, %v1911
        %v1916 = vsub.f32 %v1907, %v1914
        %v1917 = vmul.f32 %v1915, 1.442695
        %v1918 = vpow.pop %v1917
        %v1919 = vmul.f32 %v1916, 1.442695
        %v1920 = vpow.pop %v1919
        %v1921 = vsel %vm1908, %v1918, 0.0
        %1922 = vadd.xlane.f32.xlu0 %v1921
        %v1923 = vpop.xlane.xlu0 %1922
        %v1924 = vsel %vm1908, %v1920, 0.0
        %1925 = vadd.xlane.f32.xlu0 %v1924
        %v1926 = vpop.xlane.xlu0 %1925
        %v1927 = vrcp.pop %v1923
        %v1928 = vrcp.pop %v1926
        %v1929 = vmul.f32 %v1918, %v1927
        %v1930 = vmul.f32 %v1920, %v1928
        %v1931 = vpack.c.bf16 %v1929, %v1929
        %v1932 = vpack.c.bf16 %v1930, %v1930
        %v1934 = vsel %vm1908, %v1931, 0
        %vm1936 = vcmask 1043456
        %v1938 = vsel %vm1936, %v1809, 0
        %1940 = vmatprep.subr.bf16.mxu0 0
        %1941 = vmatpush1.bf16.msra.mxu0 %v1938
        %1942 = vmatprep.subr.bf16.mxu0 0
        %1943 = vmatpush1.bf16.msra.mxu0 0
        %1944 = vmatprep.subr.bf16.mxu0 0
        %1945 = vmatpush1.bf16.msra.mxu0 0
        %1946 = vmatprep.subr.bf16.mxu0 0
        %1947 = vmatpush1.bf16.msra.mxu0 0
        %1948 = vmatprep.subr.bf16.mxu0 0
        %1949 = vmatpush1.bf16.msra.mxu0 0
        %1950 = vmatprep.subr.bf16.mxu0 0
        %1951 = vmatpush1.bf16.msra.mxu0 0
        %1952 = vmatprep.subr.bf16.mxu0 0
        %1953 = vmatpush1.bf16.msra.mxu0 0
        %1954 = vmatprep.subr.bf16.mxu0 0
        %1955 = vmatpush1.bf16.msra.mxu0 0
        %1956 = vmatprep.subr.bf16.mxu0 0
        %1957 = vmatpush1.bf16.msra.mxu0 0
        %1958 = vmatprep.subr.bf16.mxu0 0
        %1959 = vmatpush1.bf16.msra.mxu0 0
        %1960 = vmatprep.subr.bf16.mxu0 0
        %1961 = vmatpush1.bf16.msra.mxu0 0
        %1962 = vmatprep.subr.bf16.mxu0 0
        %1963 = vmatpush1.bf16.msra.mxu0 0
        %1964 = vmatprep.subr.bf16.mxu0 0
        %1965 = vmatpush1.bf16.msra.mxu0 0
        %1966 = vmatprep.subr.bf16.mxu0 0
        %1967 = vmatpush1.bf16.msra.mxu0 0
        %1968 = vmatprep.subr.bf16.mxu0 0
        %1969 = vmatpush1.bf16.msra.mxu0 0
        %1970 = vmatprep.subr.bf16.mxu0 0
        %1971 = vmatpush1.bf16.msra.mxu0 0
        %1972 = vmatprep.mubr.bf16.mxu0 0
        %1973 = vmatmul.mubr.bf16.gmra.mrb[0].mxu0 %v1934
        %v1974 = vpop.f32.mrb[0].mxu0
        %v1975 = vadd.f32 0.0, %v1974
        %v1976 = vpop.f32.mrb[0].mxu0
        %v1977 = vpop.f32.mrb[0].mxu0
        %v1978 = vpop.f32.mrb[0].mxu0
        %1979 = vdwg.mxu0
        %v1981 = vsel %vm1908, %v1932, 0
        %v1984 = vsel %vm1936, %v1810, 0
        %1986 = vmatprep.subr.bf16.mxu0 0
        %1987 = vmatpush1.bf16.msra.mxu0 %v1984
        %1988 = vmatprep.subr.bf16.mxu0 0
        %1989 = vmatpush1.bf16.msra.mxu0 0
        %1990 = vmatprep.subr.bf16.mxu0 0
        %1991 = vmatpush1.bf16.msra.mxu0 0
        %1992 = vmatprep.subr.bf16.mxu0 0
        %1993 = vmatpush1.bf16.msra.mxu0 0
        %1994 = vmatprep.subr.bf16.mxu0 0
        %1995 = vmatpush1.bf16.msra.mxu0 0
        %1996 = vmatprep.subr.bf16.mxu0 0
        %1997 = vmatpush1.bf16.msra.mxu0 0
        %1998 = vmatprep.subr.bf16.mxu0 0
        %1999 = vmatpush1.bf16.msra.mxu0 0
        %2000 = vmatprep.subr.bf16.mxu0 0
        %2001 = vmatpush1.bf16.msra.mxu0 0
        %2002 = vmatprep.subr.bf16.mxu0 0
        %2003 = vmatpush1.bf16.msra.mxu0 0
        %2004 = vmatprep.subr.bf16.mxu0 0
        %2005 = vmatpush1.bf16.msra.mxu0 0
        %2006 = vmatprep.subr.bf16.mxu0 0
        %2007 = vmatpush1.bf16.msra.mxu0 0
        %2008 = vmatprep.subr.bf16.mxu0 0
        %2009 = vmatpush1.bf16.msra.mxu0 0
        %2010 = vmatprep.subr.bf16.mxu0 0
        %2011 = vmatpush1.bf16.msra.mxu0 0
        %2012 = vmatprep.subr.bf16.mxu0 0
        %2013 = vmatpush1.bf16.msra.mxu0 0
        %2014 = vmatprep.subr.bf16.mxu0 0
        %2015 = vmatpush1.bf16.msra.mxu0 0
        %2016 = vmatprep.subr.bf16.mxu0 0
        %2017 = vmatpush1.bf16.msra.mxu0 0
        %2018 = vmatprep.mubr.bf16.mxu0 0
        %2019 = vmatmul.mubr.bf16.gmra.mrb[0].mxu0 %v1981
        %v2020 = vpop.f32.mrb[0].mxu0
        %v2021 = vadd.f32 0.0, %v2020
        %v2022 = vpop.f32.mrb[0].mxu0
        %v2023 = vpop.f32.mrb[0].mxu0
        %v2024 = vpop.f32.mrb[0].mxu0
        %2025 = vdwg.mxu0
        %v2026 = vpack.c.bf16 %v2021, %v1975
        %v2031 = vunpack.c.l.b16 %v1499
        %v2032 = vunpack.c.l.b16 %v1500
        %v2033 = vunpack.c.l.b16 %v1501
        %v2034 = vunpack.c.l.b16 %v1502
        %v2035 = vpack.c.b16 %v2032, %v2031
        %v2036 = vpack.c.b16 %v2034, %v2033
        %v2040 = vsel %vm1811, %v2026, 0
        %2042 = vmatprep.subr.bf16.mxu0 0
        %2043 = vmatpush1.bf16.msra.mxu0 %v2035
        %2044 = vmatprep.subr.bf16.mxu0 0
        %2045 = vmatpush1.bf16.msra.mxu0 %v2036
        %2046 = vmatprep.subr.bf16.mxu0 0
        %2047 = vmatpush1.bf16.msra.mxu0 0
        %2048 = vmatprep.subr.bf16.mxu0 0
        %2049 = vmatpush1.bf16.msra.mxu0 0
        %2050 = vmatprep.subr.bf16.mxu0 0
        %2051 = vmatpush1.bf16.msra.mxu0 0
        %2052 = vmatprep.subr.bf16.mxu0 0
        %2053 = vmatpush1.bf16.msra.mxu0 0
        %2054 = vmatprep.subr.bf16.mxu0 0
        %2055 = vmatpush1.bf16.msra.mxu0 0
        %2056 = vmatprep.subr.bf16.mxu0 0
        %2057 = vmatpush1.bf16.msra.mxu0 0
        %2058 = vmatprep.subr.bf16.mxu0 0
        %2059 = vmatpush1.bf16.msra.mxu0 0
        %2060 = vmatprep.subr.bf16.mxu0 0
        %2061 = vmatpush1.bf16.msra.mxu0 0
        %2062 = vmatprep.subr.bf16.mxu0 0
        %2063 = vmatpush1.bf16.msra.mxu0 0
        %2064 = vmatprep.subr.bf16.mxu0 0
        %2065 = vmatpush1.bf16.msra.mxu0 0
        %2066 = vmatprep.subr.bf16.mxu0 0
        %2067 = vmatpush1.bf16.msra.mxu0 0
        %2068 = vmatprep.subr.bf16.mxu0 0
        %2069 = vmatpush1.bf16.msra.mxu0 0
        %2070 = vmatprep.subr.bf16.mxu0 0
        %2071 = vmatpush1.bf16.msra.mxu0 0
        %2072 = vmatprep.subr.bf16.mxu0 0
        %2073 = vmatpush1.bf16.msra.mxu0 0
        %2074 = vmatprep.mubr.bf16.mxu0 0
        %2075 = vmatmul.mubr.bf16.gmra.mrb[0].mxu0 %v2040
        %v2076 = vpop.f32.mrb[0].mxu0
        %v2077 = vadd.f32 0.0, %v2076
        %v2078 = vpop.f32.mrb[0].mxu0
        %v2079 = vpop.f32.mrb[0].mxu0
        %v2080 = vadd.f32 0.0, %v2079
        %v2081 = vpop.f32.mrb[0].mxu0
        %2082 = vdwg.mxu0
        %v2084 = vlaneseq
        %v2085 = vshrl.u32 %v2084, 7
        %v2086 = vsub.s32 0, %v2085
        %v2087 = vrot.slane %v1518, %v2086
        %v2089 = vadd.f32 %v2087, %v2077
        %v2090 = vadd.f32 %v2087, %v2080
        %2092 = vrot.lane.b32.xlu0 %v1805, 96
        %v2093 = vpop.permute.xlu0 %2092
        %2095 = vrot.lane.b32.xlu0 %v1807, 96
        %v2096 = vpop.permute.xlu0 %2095
        %v2098 = vsel %vm1811, %v2093, 0
        %v2101 = vsel %vm1811, %v2096, 0
        %2103 = vmatprep.subr.bf16.mxu0 0
        %2104 = vmatpush1.bf16.xpose.msra.mxu0 %v2101
        %2105 = vmatprep.subr.bf16.mxu0 0
        %2106 = vmatpush1.bf16.xpose.msra.mxu0 0
        %2107 = vmatprep.subr.bf16.mxu0 0
        %2108 = vmatpush1.bf16.xpose.msra.mxu0 0
        %2109 = vmatprep.subr.bf16.mxu0 0
        %2110 = vmatpush1.bf16.xpose.msra.mxu0 0
        %2111 = vmatprep.subr.bf16.mxu0 0
        %2112 = vmatpush1.bf16.xpose.msra.mxu0 0
        %2113 = vmatprep.subr.bf16.mxu0 0
        %2114 = vmatpush1.bf16.xpose.msra.mxu0 0
        %2115 = vmatprep.subr.bf16.mxu0 0
        %2116 = vmatpush1.bf16.xpose.msra.mxu0 0
        %2117 = vmatprep.subr.bf16.mxu0 0
        %2118 = vmatpush1.bf16.xpose.msra.mxu0 0
        %2119 = vmatprep.subr.bf16.mxu0 0
        %2120 = vmatpush1.bf16.xpose.msra.mxu0 0
        %2121 = vmatprep.subr.bf16.mxu0 0
        %2122 = vmatpush1.bf16.xpose.msra.mxu0 0
        %2123 = vmatprep.subr.bf16.mxu0 0
        %2124 = vmatpush1.bf16.xpose.msra.mxu0 0
        %2125 = vmatprep.subr.bf16.mxu0 0
        %2126 = vmatpush1.bf16.xpose.msra.mxu0 0
        %2127 = vmatprep.subr.bf16.mxu0 0
        %2128 = vmatpush1.bf16.xpose.msra.mxu0 0
        %2129 = vmatprep.subr.bf16.mxu0 0
        %2130 = vmatpush1.bf16.xpose.msra.mxu0 0
        %2131 = vmatprep.subr.bf16.mxu0 0
        %2132 = vmatpush1.bf16.xpose.msra.mxu0 0
        %2133 = vmatprep.subr.bf16.mxu0 0
        %2134 = vmatpush1.bf16.xpose.msra.mxu0 0
        %2135 = vmatprep.mubr.bf16.mxu0 0
        %2136 = vmatmul.mubr.bf16.gmra.mrb[0].mxu0 %v2098
        %v2137 = vpop.f32.mrb[0].mxu0
        %v2138 = vadd.f32 0.0, %v2137
        %v2139 = vpop.f32.mrb[0].mxu0
        %v2140 = vpop.f32.mrb[0].mxu0
        %v2141 = vpop.f32.mrb[0].mxu0
        %2142 = vdwg.mxu0
        %2144 = vrot.lane.b32.xlu0 %v1806, 96
        %v2145 = vpop.permute.xlu0 %2144
        %2147 = vrot.lane.b32.xlu0 %v1808, 96
        %v2148 = vpop.permute.xlu0 %2147
        %v2150 = vsel %vm1811, %v2145, 0
        %v2153 = vsel %vm1811, %v2148, 0
        %2155 = vmatprep.subr.bf16.mxu0 0
        %2156 = vmatpush1.bf16.xpose.msra.mxu0 %v2153
        %2157 = vmatprep.subr.bf16.mxu0 0
        %2158 = vmatpush1.bf16.xpose.msra.mxu0 0
        %2159 = vmatprep.subr.bf16.mxu0 0
        %2160 = vmatpush1.bf16.xpose.msra.mxu0 0
        %2161 = vmatprep.subr.bf16.mxu0 0
        %2162 = vmatpush1.bf16.xpose.msra.mxu0 0
        %2163 = vmatprep.subr.bf16.mxu0 0
        %2164 = vmatpush1.bf16.xpose.msra.mxu0 0
        %2165 = vmatprep.subr.bf16.mxu0 0
        %2166 = vmatpush1.bf16.xpose.msra.mxu0 0
        %2167 = vmatprep.subr.bf16.mxu0 0
        %2168 = vmatpush1.bf16.xpose.msra.mxu0 0
        %2169 = vmatprep.subr.bf16.mxu0 0
        %2170 = vmatpush1.bf16.xpose.msra.mxu0 0
        %2171 = vmatprep.subr.bf16.mxu0 0
        %2172 = vmatpush1.bf16.xpose.msra.mxu0 0
        %2173 = vmatprep.subr.bf16.mxu0 0
        %2174 = vmatpush1.bf16.xpose.msra.mxu0 0
        %2175 = vmatprep.subr.bf16.mxu0 0
        %2176 = vmatpush1.bf16.xpose.msra.mxu0 0
        %2177 = vmatprep.subr.bf16.mxu0 0
        %2178 = vmatpush1.bf16.xpose.msra.mxu0 0
        %2179 = vmatprep.subr.bf16.mxu0 0
        %2180 = vmatpush1.bf16.xpose.msra.mxu0 0
        %2181 = vmatprep.subr.bf16.mxu0 0
        %2182 = vmatpush1.bf16.xpose.msra.mxu0 0
        %2183 = vmatprep.subr.bf16.mxu0 0
        %2184 = vmatpush1.bf16.xpose.msra.mxu0 0
        %2185 = vmatprep.subr.bf16.mxu0 0
        %2186 = vmatpush1.bf16.xpose.msra.mxu0 0
        %2187 = vmatprep.mubr.bf16.mxu0 0
        %2188 = vmatmul.mubr.bf16.gmra.mrb[0].mxu0 %v2150
        %v2189 = vpop.f32.mrb[0].mxu0
        %v2190 = vadd.f32 0.0, %v2189
        %v2191 = vpop.f32.mrb[0].mxu0
        %v2192 = vpop.f32.mrb[0].mxu0
        %v2193 = vpop.f32.mrb[0].mxu0
        %2194 = vdwg.mxu0
        %v2195 = vmul.f32 %v2138, 0.17677669
        %v2196 = vmul.f32 %v2190, 0.17677669
        %v2197 = vadd.f32 %v2195, %v1450
        %v2198 = vadd.f32 %v2196, %v1450
        %v2199 = vsel %vm1908, %v2197, -inf
        %2200 = vmax.xlane.f32.xlu0 %v2199
        %v2201 = vpop.xlane.xlu0 %2200
        %v2202 = vsel %vm1908, %v2198, -inf
        %2203 = vmax.xlane.f32.xlu0 %v2202
        %v2204 = vpop.xlane.xlu0 %2203
        %v2205 = vsub.f32 %v2197, %v2201
        %v2206 = vsub.f32 %v2198, %v2204
        %v2207 = vmul.f32 %v2205, 1.442695
        %v2208 = vpow.pop %v2207
        %v2209 = vmul.f32 %v2206, 1.442695
        %v2210 = vpow.pop %v2209
        %v2211 = vsel %vm1908, %v2208, 0.0
        %2212 = vadd.xlane.f32.xlu0 %v2211
        %v2213 = vpop.xlane.xlu0 %2212
        %v2214 = vsel %vm1908, %v2210, 0.0
        %2215 = vadd.xlane.f32.xlu0 %v2214
        %v2216 = vpop.xlane.xlu0 %2215
        %v2217 = vrcp.pop %v2213
        %v2218 = vrcp.pop %v2216
        %v2219 = vmul.f32 %v2208, %v2217
        %v2220 = vmul.f32 %v2210, %v2218
        %v2221 = vpack.c.bf16 %v2219, %v2219
        %v2222 = vpack.c.bf16 %v2220, %v2220
        %2224 = vrot.lane.b32.xlu0 %v1809, 96
        %v2225 = vpop.permute.xlu0 %2224
        %v2227 = vsel %vm1908, %v2221, 0
        %v2230 = vsel %vm1936, %v2225, 0
        %2232 = vmatprep.subr.bf16.mxu0 0
        %2233 = vmatpush1.bf16.msra.mxu0 %v2230
        %2234 = vmatprep.subr.bf16.mxu0 0
        %2235 = vmatpush1.bf16.msra.mxu0 0
        %2236 = vmatprep.subr.bf16.mxu0 0
        %2237 = vmatpush1.bf16.msra.mxu0 0
        %2238 = vmatprep.subr.bf16.mxu0 0
        %2239 = vmatpush1.bf16.msra.mxu0 0
        %2240 = vmatprep.subr.bf16.mxu0 0
        %2241 = vmatpush1.bf16.msra.mxu0 0
        %2242 = vmatprep.subr.bf16.mxu0 0
        %2243 = vmatpush1.bf16.msra.mxu0 0
        %2244 = vmatprep.subr.bf16.mxu0 0
        %2245 = vmatpush1.bf16.msra.mxu0 0
        %2246 = vmatprep.subr.bf16.mxu0 0
        %2247 = vmatpush1.bf16.msra.mxu0 0
        %2248 = vmatprep.subr.bf16.mxu0 0
        %2249 = vmatpush1.bf16.msra.mxu0 0
        %2250 = vmatprep.subr.bf16.mxu0 0
        %2251 = vmatpush1.bf16.msra.mxu0 0
        %2252 = vmatprep.subr.bf16.mxu0 0
        %2253 = vmatpush1.bf16.msra.mxu0 0
        %2254 = vmatprep.subr.bf16.mxu0 0
        %2255 = vmatpush1.bf16.msra.mxu0 0
        %2256 = vmatprep.subr.bf16.mxu0 0
        %2257 = vmatpush1.bf16.msra.mxu0 0
        %2258 = vmatprep.subr.bf16.mxu0 0
        %2259 = vmatpush1.bf16.msra.mxu0 0
        %2260 = vmatprep.subr.bf16.mxu0 0
        %2261 = vmatpush1.bf16.msra.mxu0 0
        %2262 = vmatprep.subr.bf16.mxu0 0
        %2263 = vmatpush1.bf16.msra.mxu0 0
        %2264 = vmatprep.mubr.bf16.mxu0 0
        %2265 = vmatmul.mubr.bf16.gmra.mrb[0].mxu0 %v2227
        %v2266 = vpop.f32.mrb[0].mxu0
        %v2267 = vadd.f32 0.0, %v2266
        %v2268 = vpop.f32.mrb[0].mxu0
        %v2269 = vpop.f32.mrb[0].mxu0
        %v2270 = vpop.f32.mrb[0].mxu0
        %2271 = vdwg.mxu0
        %2273 = vrot.lane.b32.xlu0 %v1810, 96
        %v2274 = vpop.permute.xlu0 %2273
        %v2276 = vsel %vm1908, %v2222, 0
        %v2279 = vsel %vm1936, %v2274, 0
        %2281 = vmatprep.subr.bf16.mxu0 0
        %2282 = vmatpush1.bf16.msra.mxu0 %v2279
        %2283 = vmatprep.subr.bf16.mxu0 0
        %2284 = vmatpush1.bf16.msra.mxu0 0
        %2285 = vmatprep.subr.bf16.mxu0 0
        %2286 = vmatpush1.bf16.msra.mxu0 0
        %2287 = vmatprep.subr.bf16.mxu0 0
        %2288 = vmatpush1.bf16.msra.mxu0 0
        %2289 = vmatprep.subr.bf16.mxu0 0
        %2290 = vmatpush1.bf16.msra.mxu0 0
        %2291 = vmatprep.subr.bf16.mxu0 0
        %2292 = vmatpush1.bf16.msra.mxu0 0
        %2293 = vmatprep.subr.bf16.mxu0 0
        %2294 = vmatpush1.bf16.msra.mxu0 0
        %2295 = vmatprep.subr.bf16.mxu0 0
        %2296 = vmatpush1.bf16.msra.mxu0 0
        %2297 = vmatprep.subr.bf16.mxu0 0
        %2298 = vmatpush1.bf16.msra.mxu0 0
        %2299 = vmatprep.subr.bf16.mxu0 0
        %2300 = vmatpush1.bf16.msra.mxu0 0
        %2301 = vmatprep.subr.bf16.mxu0 0
        %2302 = vmatpush1.bf16.msra.mxu0 0
        %2303 = vmatprep.subr.bf16.mxu0 0
        %2304 = vmatpush1.bf16.msra.mxu0 0
        %2305 = vmatprep.subr.bf16.mxu0 0
        %2306 = vmatpush1.bf16.msra.mxu0 0
        %2307 = vmatprep.subr.bf16.mxu0 0
        %2308 = vmatpush1.bf16.msra.mxu0 0
        %2309 = vmatprep.subr.bf16.mxu0 0
        %2310 = vmatpush1.bf16.msra.mxu0 0
        %2311 = vmatprep.subr.bf16.mxu0 0
        %2312 = vmatpush1.bf16.msra.mxu0 0
        %2313 = vmatprep.mubr.bf16.mxu0 0
        %2314 = vmatmul.mubr.bf16.gmra.mrb[0].mxu0 %v2276
        %v2315 = vpop.f32.mrb[0].mxu0
        %v2316 = vadd.f32 0.0, %v2315
        %v2317 = vpop.f32.mrb[0].mxu0
        %v2318 = vpop.f32.mrb[0].mxu0
        %v2319 = vpop.f32.mrb[0].mxu0
        %2320 = vdwg.mxu0
        %v2321 = vpack.c.bf16 %v2316, %v2267
        %v2326 = vunpack.c.l.b16 %v1503
        %v2327 = vunpack.c.l.b16 %v1504
        %v2328 = vunpack.c.l.b16 %v1505
        %v2329 = vunpack.c.l.b16 %v1506
        %v2330 = vpack.c.b16 %v2327, %v2326
        %v2331 = vpack.c.b16 %v2329, %v2328
        %v2335 = vsel %vm1811, %v2321, 0
        %2337 = vmatprep.subr.bf16.mxu0 0
        %2338 = vmatpush1.bf16.msra.mxu0 %v2330
        %2339 = vmatprep.subr.bf16.mxu0 0
        %2340 = vmatpush1.bf16.msra.mxu0 %v2331
        %2341 = vmatprep.subr.bf16.mxu0 0
        %2342 = vmatpush1.bf16.msra.mxu0 0
        %2343 = vmatprep.subr.bf16.mxu0 0
        %2344 = vmatpush1.bf16.msra.mxu0 0
        %2345 = vmatprep.subr.bf16.mxu0 0
        %2346 = vmatpush1.bf16.msra.mxu0 0
        %2347 = vmatprep.subr.bf16.mxu0 0
        %2348 = vmatpush1.bf16.msra.mxu0 0
        %2349 = vmatprep.subr.bf16.mxu0 0
        %2350 = vmatpush1.bf16.msra.mxu0 0
        %2351 = vmatprep.subr.bf16.mxu0 0
        %2352 = vmatpush1.bf16.msra.mxu0 0
        %2353 = vmatprep.subr.bf16.mxu0 0
        %2354 = vmatpush1.bf16.msra.mxu0 0
        %2355 = vmatprep.subr.bf16.mxu0 0
        %2356 = vmatpush1.bf16.msra.mxu0 0
        %2357 = vmatprep.subr.bf16.mxu0 0
        %2358 = vmatpush1.bf16.msra.mxu0 0
        %2359 = vmatprep.subr.bf16.mxu0 0
        %2360 = vmatpush1.bf16.msra.mxu0 0
        %2361 = vmatprep.subr.bf16.mxu0 0
        %2362 = vmatpush1.bf16.msra.mxu0 0
        %2363 = vmatprep.subr.bf16.mxu0 0
        %2364 = vmatpush1.bf16.msra.mxu0 0
        %2365 = vmatprep.subr.bf16.mxu0 0
        %2366 = vmatpush1.bf16.msra.mxu0 0
        %2367 = vmatprep.subr.bf16.mxu0 0
        %2368 = vmatpush1.bf16.msra.mxu0 0
        %2369 = vmatprep.mubr.bf16.mxu0 0
        %2370 = vmatmul.mubr.bf16.gmra.mrb[0].mxu0 %v2335
        %v2371 = vpop.f32.mrb[0].mxu0
        %v2372 = vadd.f32 0.0, %v2371
        %v2373 = vpop.f32.mrb[0].mxu0
        %v2374 = vpop.f32.mrb[0].mxu0
        %v2375 = vadd.f32 0.0, %v2374
        %v2376 = vpop.f32.mrb[0].mxu0
        %2377 = vdwg.mxu0
        %v2378 = vadd.f32 %v2089, %v2372
        %v2379 = vadd.f32 %v2090, %v2375
        %2380 = vrot.lane.b32.xlu0 %v1805, 64
        %v2381 = vpop.permute.xlu0 %2380
        %2382 = vrot.lane.b32.xlu0 %v1807, 64
        %v2383 = vpop.permute.xlu0 %2382
        %v2385 = vsel %vm1811, %v2381, 0
        %v2388 = vsel %vm1811, %v2383, 0
        %2390 = vmatprep.subr.bf16.mxu0 0
        %2391 = vmatpush1.bf16.xpose.msra.mxu0 %v2388
        %2392 = vmatprep.subr.bf16.mxu0 0
        %2393 = vmatpush1.bf16.xpose.msra.mxu0 0
        %2394 = vmatprep.subr.bf16.mxu0 0
        %2395 = vmatpush1.bf16.xpose.msra.mxu0 0
        %2396 = vmatprep.subr.bf16.mxu0 0
        %2397 = vmatpush1.bf16.xpose.msra.mxu0 0
        %2398 = vmatprep.subr.bf16.mxu0 0
        %2399 = vmatpush1.bf16.xpose.msra.mxu0 0
        %2400 = vmatprep.subr.bf16.mxu0 0
        %2401 = vmatpush1.bf16.xpose.msra.mxu0 0
        %2402 = vmatprep.subr.bf16.mxu0 0
        %2403 = vmatpush1.bf16.xpose.msra.mxu0 0
        %2404 = vmatprep.subr.bf16.mxu0 0
        %2405 = vmatpush1.bf16.xpose.msra.mxu0 0
        %2406 = vmatprep.subr.bf16.mxu0 0
        %2407 = vmatpush1.bf16.xpose.msra.mxu0 0
        %2408 = vmatprep.subr.bf16.mxu0 0
        %2409 = vmatpush1.bf16.xpose.msra.mxu0 0
        %2410 = vmatprep.subr.bf16.mxu0 0
        %2411 = vmatpush1.bf16.xpose.msra.mxu0 0
        %2412 = vmatprep.subr.bf16.mxu0 0
        %2413 = vmatpush1.bf16.xpose.msra.mxu0 0
        %2414 = vmatprep.subr.bf16.mxu0 0
        %2415 = vmatpush1.bf16.xpose.msra.mxu0 0
        %2416 = vmatprep.subr.bf16.mxu0 0
        %2417 = vmatpush1.bf16.xpose.msra.mxu0 0
        %2418 = vmatprep.subr.bf16.mxu0 0
        %2419 = vmatpush1.bf16.xpose.msra.mxu0 0
        %2420 = vmatprep.subr.bf16.mxu0 0
        %2421 = vmatpush1.bf16.xpose.msra.mxu0 0
        %2422 = vmatprep.mubr.bf16.mxu0 0
        %2423 = vmatmul.mubr.bf16.gmra.mrb[0].mxu0 %v2385
        %v2424 = vpop.f32.mrb[0].mxu0
        %v2425 = vadd.f32 0.0, %v2424
        %v2426 = vpop.f32.mrb[0].mxu0
        %v2427 = vpop.f32.mrb[0].mxu0
        %v2428 = vpop.f32.mrb[0].mxu0
        %2429 = vdwg.mxu0
        %2430 = vrot.lane.b32.xlu0 %v1806, 64
        %v2431 = vpop.permute.xlu0 %2430
        %2432 = vrot.lane.b32.xlu0 %v1808, 64
        %v2433 = vpop.permute.xlu0 %2432
        %v2435 = vsel %vm1811, %v2431, 0
        %v2438 = vsel %vm1811, %v2433, 0
        %2440 = vmatprep.subr.bf16.mxu0 0
        %2441 = vmatpush1.bf16.xpose.msra.mxu0 %v2438
        %2442 = vmatprep.subr.bf16.mxu0 0
        %2443 = vmatpush1.bf16.xpose.msra.mxu0 0
        %2444 = vmatprep.subr.bf16.mxu0 0
        %2445 = vmatpush1.bf16.xpose.msra.mxu0 0
        %2446 = vmatprep.subr.bf16.mxu0 0
        %2447 = vmatpush1.bf16.xpose.msra.mxu0 0
        %2448 = vmatprep.subr.bf16.mxu0 0
        %2449 = vmatpush1.bf16.xpose.msra.mxu0 0
        %2450 = vmatprep.subr.bf16.mxu0 0
        %2451 = vmatpush1.bf16.xpose.msra.mxu0 0
        %2452 = vmatprep.subr.bf16.mxu0 0
        %2453 = vmatpush1.bf16.xpose.msra.mxu0 0
        %2454 = vmatprep.subr.bf16.mxu0 0
        %2455 = vmatpush1.bf16.xpose.msra.mxu0 0
        %2456 = vmatprep.subr.bf16.mxu0 0
        %2457 = vmatpush1.bf16.xpose.msra.mxu0 0
        %2458 = vmatprep.subr.bf16.mxu0 0
        %2459 = vmatpush1.bf16.xpose.msra.mxu0 0
        %2460 = vmatprep.subr.bf16.mxu0 0
        %2461 = vmatpush1.bf16.xpose.msra.mxu0 0
        %2462 = vmatprep.subr.bf16.mxu0 0
        %2463 = vmatpush1.bf16.xpose.msra.mxu0 0
        %2464 = vmatprep.subr.bf16.mxu0 0
        %2465 = vmatpush1.bf16.xpose.msra.mxu0 0
        %2466 = vmatprep.subr.bf16.mxu0 0
        %2467 = vmatpush1.bf16.xpose.msra.mxu0 0
        %2468 = vmatprep.subr.bf16.mxu0 0
        %2469 = vmatpush1.bf16.xpose.msra.mxu0 0
        %2470 = vmatprep.subr.bf16.mxu0 0
        %2471 = vmatpush1.bf16.xpose.msra.mxu0 0
        %2472 = vmatprep.mubr.bf16.mxu0 0
        %2473 = vmatmul.mubr.bf16.gmra.mrb[0].mxu0 %v2435
        %v2474 = vpop.f32.mrb[0].mxu0
        %v2475 = vadd.f32 0.0, %v2474
        %v2476 = vpop.f32.mrb[0].mxu0
        %v2477 = vpop.f32.mrb[0].mxu0
        %v2478 = vpop.f32.mrb[0].mxu0
        %2479 = vdwg.mxu0
        %v2480 = vmul.f32 %v2425, 0.17677669
        %v2481 = vmul.f32 %v2475, 0.17677669
        %v2482 = vadd.f32 %v2480, %v1450
        %v2483 = vadd.f32 %v2481, %v1450
        %v2484 = vsel %vm1908, %v2482, -inf
        %2485 = vmax.xlane.f32.xlu0 %v2484
        %v2486 = vpop.xlane.xlu0 %2485
        %v2487 = vsel %vm1908, %v2483, -inf
        %2488 = vmax.xlane.f32.xlu0 %v2487
        %v2489 = vpop.xlane.xlu0 %2488
        %v2490 = vsub.f32 %v2482, %v2486
        %v2491 = vsub.f32 %v2483, %v2489
        %v2492 = vmul.f32 %v2490, 1.442695
        %v2493 = vpow.pop %v2492
        %v2494 = vmul.f32 %v2491, 1.442695
        %v2495 = vpow.pop %v2494
        %v2496 = vsel %vm1908, %v2493, 0.0
        %2497 = vadd.xlane.f32.xlu0 %v2496
        %v2498 = vpop.xlane.xlu0 %2497
        %v2499 = vsel %vm1908, %v2495, 0.0
        %2500 = vadd.xlane.f32.xlu0 %v2499
        %v2501 = vpop.xlane.xlu0 %2500
        %v2502 = vrcp.pop %v2498
        %v2503 = vrcp.pop %v2501
        %v2504 = vmul.f32 %v2493, %v2502
        %v2505 = vmul.f32 %v2495, %v2503
        %v2506 = vpack.c.bf16 %v2504, %v2504
        %v2507 = vpack.c.bf16 %v2505, %v2505
        %2508 = vrot.lane.b32.xlu0 %v1809, 64
        %v2509 = vpop.permute.xlu0 %2508
        %v2511 = vsel %vm1908, %v2506, 0
        %v2514 = vsel %vm1936, %v2509, 0
        %2516 = vmatprep.subr.bf16.mxu0 0
        %2517 = vmatpush1.bf16.msra.mxu0 %v2514
        %2518 = vmatprep.subr.bf16.mxu0 0
        %2519 = vmatpush1.bf16.msra.mxu0 0
        %2520 = vmatprep.subr.bf16.mxu0 0
        %2521 = vmatpush1.bf16.msra.mxu0 0
        %2522 = vmatprep.subr.bf16.mxu0 0
        %2523 = vmatpush1.bf16.msra.mxu0 0
        %2524 = vmatprep.subr.bf16.mxu0 0
        %2525 = vmatpush1.bf16.msra.mxu0 0
        %2526 = vmatprep.subr.bf16.mxu0 0
        %2527 = vmatpush1.bf16.msra.mxu0 0
        %2528 = vmatprep.subr.bf16.mxu0 0
        %2529 = vmatpush1.bf16.msra.mxu0 0
        %2530 = vmatprep.subr.bf16.mxu0 0
        %2531 = vmatpush1.bf16.msra.mxu0 0
        %2532 = vmatprep.subr.bf16.mxu0 0
        %2533 = vmatpush1.bf16.msra.mxu0 0
        %2534 = vmatprep.subr.bf16.mxu0 0
        %2535 = vmatpush1.bf16.msra.mxu0 0
        %2536 = vmatprep.subr.bf16.mxu0 0
        %2537 = vmatpush1.bf16.msra.mxu0 0
        %2538 = vmatprep.subr.bf16.mxu0 0
        %2539 = vmatpush1.bf16.msra.mxu0 0
        %2540 = vmatprep.subr.bf16.mxu0 0
        %2541 = vmatpush1.bf16.msra.mxu0 0
        %2542 = vmatprep.subr.bf16.mxu0 0
        %2543 = vmatpush1.bf16.msra.mxu0 0
        %2544 = vmatprep.subr.bf16.mxu0 0
        %2545 = vmatpush1.bf16.msra.mxu0 0
        %2546 = vmatprep.subr.bf16.mxu0 0
        %2547 = vmatpush1.bf16.msra.mxu0 0
        %2548 = vmatprep.mubr.bf16.mxu0 0
        %2549 = vmatmul.mubr.bf16.gmra.mrb[0].mxu0 %v2511
        %v2550 = vpop.f32.mrb[0].mxu0
        %v2551 = vadd.f32 0.0, %v2550
        %v2552 = vpop.f32.mrb[0].mxu0
        %v2553 = vpop.f32.mrb[0].mxu0
        %v2554 = vpop.f32.mrb[0].mxu0
        %2555 = vdwg.mxu0
        %2556 = vrot.lane.b32.xlu0 %v1810, 64
        %v2557 = vpop.permute.xlu0 %2556
        %v2559 = vsel %vm1908, %v2507, 0
        %v2562 = vsel %vm1936, %v2557, 0
        %2564 = vmatprep.subr.bf16.mxu0 0
        %2565 = vmatpush1.bf16.msra.mxu0 %v2562
        %2566 = vmatprep.subr.bf16.mxu0 0
        %2567 = vmatpush1.bf16.msra.mxu0 0
        %2568 = vmatprep.subr.bf16.mxu0 0
        %2569 = vmatpush1.bf16.msra.mxu0 0
        %2570 = vmatprep.subr.bf16.mxu0 0
        %2571 = vmatpush1.bf16.msra.mxu0 0
        %2572 = vmatprep.subr.bf16.mxu0 0
        %2573 = vmatpush1.bf16.msra.mxu0 0
        %2574 = vmatprep.subr.bf16.mxu0 0
        %2575 = vmatpush1.bf16.msra.mxu0 0
        %2576 = vmatprep.subr.bf16.mxu0 0
        %2577 = vmatpush1.bf16.msra.mxu0 0
        %2578 = vmatprep.subr.bf16.mxu0 0
        %2579 = vmatpush1.bf16.msra.mxu0 0
        %2580 = vmatprep.subr.bf16.mxu0 0
        %2581 = vmatpush1.bf16.msra.mxu0 0
        %2582 = vmatprep.subr.bf16.mxu0 0
        %2583 = vmatpush1.bf16.msra.mxu0 0
        %2584 = vmatprep.subr.bf16.mxu0 0
        %2585 = vmatpush1.bf16.msra.mxu0 0
        %2586 = vmatprep.subr.bf16.mxu0 0
        %2587 = vmatpush1.bf16.msra.mxu0 0
        %2588 = vmatprep.subr.bf16.mxu0 0
        %2589 = vmatpush1.bf16.msra.mxu0 0
        %2590 = vmatprep.subr.bf16.mxu0 0
        %2591 = vmatpush1.bf16.msra.mxu0 0
        %2592 = vmatprep.subr.bf16.mxu0 0
        %2593 = vmatpush1.bf16.msra.mxu0 0
        %2594 = vmatprep.subr.bf16.mxu0 0
        %2595 = vmatpush1.bf16.msra.mxu0 0
        %2596 = vmatprep.mubr.bf16.mxu0 0
        %2597 = vmatmul.mubr.bf16.gmra.mrb[0].mxu0 %v2559
        %v2598 = vpop.f32.mrb[0].mxu0
        %v2599 = vadd.f32 0.0, %v2598
        %v2600 = vpop.f32.mrb[0].mxu0
        %v2601 = vpop.f32.mrb[0].mxu0
        %v2602 = vpop.f32.mrb[0].mxu0
        %2603 = vdwg.mxu0
        %v2604 = vpack.c.bf16 %v2599, %v2551
        %v2609 = vunpack.c.l.b16 %v1507
        %v2610 = vunpack.c.l.b16 %v1508
        %v2611 = vunpack.c.l.b16 %v1509
        %v2612 = vunpack.c.l.b16 %v1510
        %v2613 = vpack.c.b16 %v2610, %v2609
        %v2614 = vpack.c.b16 %v2612, %v2611
        %v2618 = vsel %vm1811, %v2604, 0
        %2620 = vmatprep.subr.bf16.mxu0 0
        %2621 = vmatpush1.bf16.msra.mxu0 %v2613
        %2622 = vmatprep.subr.bf16.mxu0 0
        %2623 = vmatpush1.bf16.msra.mxu0 %v2614
        %2624 = vmatprep.subr.bf16.mxu0 0
        %2625 = vmatpush1.bf16.msra.mxu0 0
        %2626 = vmatprep.subr.bf16.mxu0 0
        %2627 = vmatpush1.bf16.msra.mxu0 0
        %2628 = vmatprep.subr.bf16.mxu0 0
        %2629 = vmatpush1.bf16.msra.mxu0 0
        %2630 = vmatprep.subr.bf16.mxu0 0
        %2631 = vmatpush1.bf16.msra.mxu0 0
        %2632 = vmatprep.subr.bf16.mxu0 0
        %2633 = vmatpush1.bf16.msra.mxu0 0
        %2634 = vmatprep.subr.bf16.mxu0 0
        %2635 = vmatpush1.bf16.msra.mxu0 0
        %2636 = vmatprep.subr.bf16.mxu0 0
        %2637 = vmatpush1.bf16.msra.mxu0 0
        %2638 = vmatprep.subr.bf16.mxu0 0
        %2639 = vmatpush1.bf16.msra.mxu0 0
        %2640 = vmatprep.subr.bf16.mxu0 0
        %2641 = vmatpush1.bf16.msra.mxu0 0
        %2642 = vmatprep.subr.bf16.mxu0 0
        %2643 = vmatpush1.bf16.msra.mxu0 0
        %2644 = vmatprep.subr.bf16.mxu0 0
        %2645 = vmatpush1.bf16.msra.mxu0 0
        %2646 = vmatprep.subr.bf16.mxu0 0
        %2647 = vmatpush1.bf16.msra.mxu0 0
        %2648 = vmatprep.subr.bf16.mxu0 0
        %2649 = vmatpush1.bf16.msra.mxu0 0
        %2650 = vmatprep.subr.bf16.mxu0 0
        %2651 = vmatpush1.bf16.msra.mxu0 0
        %2652 = vmatprep.mubr.bf16.mxu0 0
        %2653 = vmatmul.mubr.bf16.gmra.mrb[0].mxu0 %v2618
        %v2654 = vpop.f32.mrb[0].mxu0
        %v2655 = vadd.f32 0.0, %v2654
        %v2656 = vpop.f32.mrb[0].mxu0
        %v2657 = vpop.f32.mrb[0].mxu0
        %v2658 = vadd.f32 0.0, %v2657
        %v2659 = vpop.f32.mrb[0].mxu0
        %2660 = vdwg.mxu0
        %v2661 = vadd.f32 %v2378, %v2655
        %v2662 = vadd.f32 %v2379, %v2658
        %2663 = vrot.lane.b32.xlu0 %v1805, 32
        %v2664 = vpop.permute.xlu0 %2663
        %2665 = vrot.lane.b32.xlu0 %v1807, 32
        %v2666 = vpop.permute.xlu0 %2665
        %v2668 = vsel %vm1811, %v2664, 0
        %v2671 = vsel %vm1811, %v2666, 0
        %2673 = vmatprep.subr.bf16.mxu0 0
        %2674 = vmatpush1.bf16.xpose.msra.mxu0 %v2671
        %2675 = vmatprep.subr.bf16.mxu0 0
        %2676 = vmatpush1.bf16.xpose.msra.mxu0 0
        %2677 = vmatprep.subr.bf16.mxu0 0
        %2678 = vmatpush1.bf16.xpose.msra.mxu0 0
        %2679 = vmatprep.subr.bf16.mxu0 0
        %2680 = vmatpush1.bf16.xpose.msra.mxu0 0
        %2681 = vmatprep.subr.bf16.mxu0 0
        %2682 = vmatpush1.bf16.xpose.msra.mxu0 0
        %2683 = vmatprep.subr.bf16.mxu0 0
        %2684 = vmatpush1.bf16.xpose.msra.mxu0 0
        %2685 = vmatprep.subr.bf16.mxu0 0
        %2686 = vmatpush1.bf16.xpose.msra.mxu0 0
        %2687 = vmatprep.subr.bf16.mxu0 0
        %2688 = vmatpush1.bf16.xpose.msra.mxu0 0
        %2689 = vmatprep.subr.bf16.mxu0 0
        %2690 = vmatpush1.bf16.xpose.msra.mxu0 0
        %2691 = vmatprep.subr.bf16.mxu0 0
        %2692 = vmatpush1.bf16.xpose.msra.mxu0 0
        %2693 = vmatprep.subr.bf16.mxu0 0
        %2694 = vmatpush1.bf16.xpose.msra.mxu0 0
        %2695 = vmatprep.subr.bf16.mxu0 0
        %2696 = vmatpush1.bf16.xpose.msra.mxu0 0
        %2697 = vmatprep.subr.bf16.mxu0 0
        %2698 = vmatpush1.bf16.xpose.msra.mxu0 0
        %2699 = vmatprep.subr.bf16.mxu0 0
        %2700 = vmatpush1.bf16.xpose.msra.mxu0 0
        %2701 = vmatprep.subr.bf16.mxu0 0
        %2702 = vmatpush1.bf16.xpose.msra.mxu0 0
        %2703 = vmatprep.subr.bf16.mxu0 0
        %2704 = vmatpush1.bf16.xpose.msra.mxu0 0
        %2705 = vmatprep.mubr.bf16.mxu0 0
        %2706 = vmatmul.mubr.bf16.gmra.mrb[0].mxu0 %v2668
        %v2707 = vpop.f32.mrb[0].mxu0
        %v2708 = vadd.f32 0.0, %v2707
        %v2709 = vpop.f32.mrb[0].mxu0
        %v2710 = vpop.f32.mrb[0].mxu0
        %v2711 = vpop.f32.mrb[0].mxu0
        %2712 = vdwg.mxu0
        %2713 = vrot.lane.b32.xlu0 %v1806, 32
        %v2714 = vpop.permute.xlu0 %2713
        %2715 = vrot.lane.b32.xlu0 %v1808, 32
        %v2716 = vpop.permute.xlu0 %2715
        %v2718 = vsel %vm1811, %v2714, 0
        %v2721 = vsel %vm1811, %v2716, 0
        %2723 = vmatprep.subr.bf16.mxu0 0
        %2724 = vmatpush1.bf16.xpose.msra.mxu0 %v2721
        %2725 = vmatprep.subr.bf16.mxu0 0
        %2726 = vmatpush1.bf16.xpose.msra.mxu0 0
        %2727 = vmatprep.subr.bf16.mxu0 0
        %2728 = vmatpush1.bf16.xpose.msra.mxu0 0
        %2729 = vmatprep.subr.bf16.mxu0 0
        %2730 = vmatpush1.bf16.xpose.msra.mxu0 0
        %2731 = vmatprep.subr.bf16.mxu0 0
        %2732 = vmatpush1.bf16.xpose.msra.mxu0 0
        %2733 = vmatprep.subr.bf16.mxu0 0
        %2734 = vmatpush1.bf16.xpose.msra.mxu0 0
        %2735 = vmatprep.subr.bf16.mxu0 0
        %2736 = vmatpush1.bf16.xpose.msra.mxu0 0
        %2737 = vmatprep.subr.bf16.mxu0 0
        %2738 = vmatpush1.bf16.xpose.msra.mxu0 0
        %2739 = vmatprep.subr.bf16.mxu0 0
        %2740 = vmatpush1.bf16.xpose.msra.mxu0 0
        %2741 = vmatprep.subr.bf16.mxu0 0
        %2742 = vmatpush1.bf16.xpose.msra.mxu0 0
        %2743 = vmatprep.subr.bf16.mxu0 0
        %2744 = vmatpush1.bf16.xpose.msra.mxu0 0
        %2745 = vmatprep.subr.bf16.mxu0 0
        %2746 = vmatpush1.bf16.xpose.msra.mxu0 0
        %2747 = vmatprep.subr.bf16.mxu0 0
        %2748 = vmatpush1.bf16.xpose.msra.mxu0 0
        %2749 = vmatprep.subr.bf16.mxu0 0
        %2750 = vmatpush1.bf16.xpose.msra.mxu0 0
        %2751 = vmatprep.subr.bf16.mxu0 0
        %2752 = vmatpush1.bf16.xpose.msra.mxu0 0
        %2753 = vmatprep.subr.bf16.mxu0 0
        %2754 = vmatpush1.bf16.xpose.msra.mxu0 0
        %2755 = vmatprep.mubr.bf16.mxu0 0
        %2756 = vmatmul.mubr.bf16.gmra.mrb[0].mxu0 %v2718
        %v2757 = vpop.f32.mrb[0].mxu0
        %v2758 = vadd.f32 0.0, %v2757
        %v2759 = vpop.f32.mrb[0].mxu0
        %v2760 = vpop.f32.mrb[0].mxu0
        %v2761 = vpop.f32.mrb[0].mxu0
        %2762 = vdwg.mxu0
        %v2763 = vmul.f32 %v2708, 0.17677669
        %v2764 = vmul.f32 %v2758, 0.17677669
        %v2765 = vadd.f32 %v2763, %v1450
        %v2766 = vadd.f32 %v2764, %v1450
        %v2767 = vsel %vm1908, %v2765, -inf
        %2768 = vmax.xlane.f32.xlu0 %v2767
        %v2769 = vpop.xlane.xlu0 %2768
        %v2770 = vsel %vm1908, %v2766, -inf
        %2771 = vmax.xlane.f32.xlu0 %v2770
        %v2772 = vpop.xlane.xlu0 %2771
        %v2773 = vsub.f32 %v2765, %v2769
        %v2774 = vsub.f32 %v2766, %v2772
        %v2775 = vmul.f32 %v2773, 1.442695
        %v2776 = vpow.pop %v2775
        %v2777 = vmul.f32 %v2774, 1.442695
        %v2778 = vpow.pop %v2777
        %v2779 = vsel %vm1908, %v2776, 0.0
        %2780 = vadd.xlane.f32.xlu0 %v2779
        %v2781 = vpop.xlane.xlu0 %2780
        %v2782 = vsel %vm1908, %v2778, 0.0
        %2783 = vadd.xlane.f32.xlu0 %v2782
        %v2784 = vpop.xlane.xlu0 %2783
        %v2785 = vrcp.pop %v2781
        %v2786 = vrcp.pop %v2784
        %v2787 = vmul.f32 %v2776, %v2785
        %v2788 = vmul.f32 %v2778, %v2786
        %v2789 = vpack.c.bf16 %v2787, %v2787
        %v2790 = vpack.c.bf16 %v2788, %v2788
        %2791 = vrot.lane.b32.xlu0 %v1809, 32
        %v2792 = vpop.permute.xlu0 %2791
        %v2794 = vsel %vm1908, %v2789, 0
        %v2797 = vsel %vm1936, %v2792, 0
        %2799 = vmatprep.subr.bf16.mxu0 0
        %2800 = vmatpush1.bf16.msra.mxu0 %v2797
        %2801 = vmatprep.subr.bf16.mxu0 0
        %2802 = vmatpush1.bf16.msra.mxu0 0
        %2803 = vmatprep.subr.bf16.mxu0 0
        %2804 = vmatpush1.bf16.msra.mxu0 0
        %2805 = vmatprep.subr.bf16.mxu0 0
        %2806 = vmatpush1.bf16.msra.mxu0 0
        %2807 = vmatprep.subr.bf16.mxu0 0
        %2808 = vmatpush1.bf16.msra.mxu0 0
        %2809 = vmatprep.subr.bf16.mxu0 0
        %2810 = vmatpush1.bf16.msra.mxu0 0
        %2811 = vmatprep.subr.bf16.mxu0 0
        %2812 = vmatpush1.bf16.msra.mxu0 0
        %2813 = vmatprep.subr.bf16.mxu0 0
        %2814 = vmatpush1.bf16.msra.mxu0 0
        %2815 = vmatprep.subr.bf16.mxu0 0
        %2816 = vmatpush1.bf16.msra.mxu0 0
        %2817 = vmatprep.subr.bf16.mxu0 0
        %2818 = vmatpush1.bf16.msra.mxu0 0
        %2819 = vmatprep.subr.bf16.mxu0 0
        %2820 = vmatpush1.bf16.msra.mxu0 0
        %2821 = vmatprep.subr.bf16.mxu0 0
        %2822 = vmatpush1.bf16.msra.mxu0 0
        %2823 = vmatprep.subr.bf16.mxu0 0
        %2824 = vmatpush1.bf16.msra.mxu0 0
        %2825 = vmatprep.subr.bf16.mxu0 0
        %2826 = vmatpush1.bf16.msra.mxu0 0
        %2827 = vmatprep.subr.bf16.mxu0 0
        %2828 = vmatpush1.bf16.msra.mxu0 0
        %2829 = vmatprep.subr.bf16.mxu0 0
        %2830 = vmatpush1.bf16.msra.mxu0 0
        %2831 = vmatprep.mubr.bf16.mxu0 0
        %2832 = vmatmul.mubr.bf16.gmra.mrb[0].mxu0 %v2794
        %v2833 = vpop.f32.mrb[0].mxu0
        %v2834 = vadd.f32 0.0, %v2833
        %v2835 = vpop.f32.mrb[0].mxu0
        %v2836 = vpop.f32.mrb[0].mxu0
        %v2837 = vpop.f32.mrb[0].mxu0
        %2838 = vdwg.mxu0
        %2839 = vrot.lane.b32.xlu0 %v1810, 32
        %v2840 = vpop.permute.xlu0 %2839
        %v2842 = vsel %vm1908, %v2790, 0
        %v2845 = vsel %vm1936, %v2840, 0
        %2847 = vmatprep.subr.bf16.mxu0 0
        %2848 = vmatpush1.bf16.msra.mxu0 %v2845
        %2849 = vmatprep.subr.bf16.mxu0 0
        %2850 = vmatpush1.bf16.msra.mxu0 0
        %2851 = vmatprep.subr.bf16.mxu0 0
        %2852 = vmatpush1.bf16.msra.mxu0 0
        %2853 = vmatprep.subr.bf16.mxu0 0
        %2854 = vmatpush1.bf16.msra.mxu0 0
        %2855 = vmatprep.subr.bf16.mxu0 0
        %2856 = vmatpush1.bf16.msra.mxu0 0
        %2857 = vmatprep.subr.bf16.mxu0 0
        %2858 = vmatpush1.bf16.msra.mxu0 0
        %2859 = vmatprep.subr.bf16.mxu0 0
        %2860 = vmatpush1.bf16.msra.mxu0 0
        %2861 = vmatprep.subr.bf16.mxu0 0
        %2862 = vmatpush1.bf16.msra.mxu0 0
        %2863 = vmatprep.subr.bf16.mxu0 0
        %2864 = vmatpush1.bf16.msra.mxu0 0
        %2865 = vmatprep.subr.bf16.mxu0 0
        %2866 = vmatpush1.bf16.msra.mxu0 0
        %2867 = vmatprep.subr.bf16.mxu0 0
        %2868 = vmatpush1.bf16.msra.mxu0 0
        %2869 = vmatprep.subr.bf16.mxu0 0
        %2870 = vmatpush1.bf16.msra.mxu0 0
        %2871 = vmatprep.subr.bf16.mxu0 0
        %2872 = vmatpush1.bf16.msra.mxu0 0
        %2873 = vmatprep.subr.bf16.mxu0 0
        %2874 = vmatpush1.bf16.msra.mxu0 0
        %2875 = vmatprep.subr.bf16.mxu0 0
        %2876 = vmatpush1.bf16.msra.mxu0 0
        %2877 = vmatprep.subr.bf16.mxu0 0
        %2878 = vmatpush1.bf16.msra.mxu0 0
        %2879 = vmatprep.mubr.bf16.mxu0 0
        %2880 = vmatmul.mubr.bf16.gmra.mrb[0].mxu0 %v2842
        %v2881 = vpop.f32.mrb[0].mxu0
        %v2882 = vadd.f32 0.0, %v2881
        %v2883 = vpop.f32.mrb[0].mxu0
        %v2884 = vpop.f32.mrb[0].mxu0
        %v2885 = vpop.f32.mrb[0].mxu0
        %2886 = vdwg.mxu0
        %v2887 = vpack.c.bf16 %v2882, %v2834
        %v2892 = vunpack.c.l.b16 %v1511
        %v2893 = vunpack.c.l.b16 %v1512
        %v2894 = vunpack.c.l.b16 %v1513
        %v2895 = vunpack.c.l.b16 %v1514
        %v2896 = vpack.c.b16 %v2893, %v2892
        %v2897 = vpack.c.b16 %v2895, %v2894
        %v2901 = vsel %vm1811, %v2887, 0
        %2903 = vmatprep.subr.bf16.mxu0 0
        %2904 = vmatpush1.bf16.msra.mxu0 %v2896
        %2905 = vmatprep.subr.bf16.mxu0 0
        %2906 = vmatpush1.bf16.msra.mxu0 %v2897
        %2907 = vmatprep.subr.bf16.mxu0 0
        %2908 = vmatpush1.bf16.msra.mxu0 0
        %2909 = vmatprep.subr.bf16.mxu0 0
        %2910 = vmatpush1.bf16.msra.mxu0 0
        %2911 = vmatprep.subr.bf16.mxu0 0
        %2912 = vmatpush1.bf16.msra.mxu0 0
        %2913 = vmatprep.subr.bf16.mxu0 0
        %2914 = vmatpush1.bf16.msra.mxu0 0
        %2915 = vmatprep.subr.bf16.mxu0 0
        %2916 = vmatpush1.bf16.msra.mxu0 0
        %2917 = vmatprep.subr.bf16.mxu0 0
        %2918 = vmatpush1.bf16.msra.mxu0 0
        %2919 = vmatprep.subr.bf16.mxu0 0
        %2920 = vmatpush1.bf16.msra.mxu0 0
        %2921 = vmatprep.subr.bf16.mxu0 0
        %2922 = vmatpush1.bf16.msra.mxu0 0
        %2923 = vmatprep.subr.bf16.mxu0 0
        %2924 = vmatpush1.bf16.msra.mxu0 0
        %2925 = vmatprep.subr.bf16.mxu0 0
        %2926 = vmatpush1.bf16.msra.mxu0 0
        %2927 = vmatprep.subr.bf16.mxu0 0
        %2928 = vmatpush1.bf16.msra.mxu0 0
        %2929 = vmatprep.subr.bf16.mxu0 0
        %2930 = vmatpush1.bf16.msra.mxu0 0
        %2931 = vmatprep.subr.bf16.mxu0 0
        %2932 = vmatpush1.bf16.msra.mxu0 0
        %2933 = vmatprep.subr.bf16.mxu0 0
        %2934 = vmatpush1.bf16.msra.mxu0 0
        %2935 = vmatprep.mubr.bf16.mxu0 0
        %2936 = vmatmul.mubr.bf16.gmra.mrb[0].mxu0 %v2901
        %v2937 = vpop.f32.mrb[0].mxu0
        %v2938 = vadd.f32 0.0, %v2937
        %v2939 = vpop.f32.mrb[0].mxu0
        %v2940 = vpop.f32.mrb[0].mxu0
        %v2941 = vadd.f32 0.0, %v2940
        %v2942 = vpop.f32.mrb[0].mxu0
        %2943 = vdwg.mxu0
        %v2944 = vadd.f32 %v2661, %v2938
        %v2945 = vadd.f32 %v2662, %v2941
        %v2946 = vadd.f32 %v1446, %v2944
        %v2947 = vadd.f32 %v1447, %v2945
        %v2948 = vld [vmem:[%s1414] sm:$0x1]
        %v2949 = vld [vmem:[%s1417] sm:$0x1]
        %2950 = vadd.xlane.f32.xlu0 %v2946
        %v2951 = vpop.xlane.xlu0 %2950
        %2952 = vadd.xlane.f32.xlu0 %v2947
        %v2953 = vpop.xlane.xlu0 %2952
        %v2954 = vrcp.pop 128.0
        %v2955 = vmul.f32 %v2951, %v2954
        %v2956 = vmul.f32 %v2953, %v2954
        %v2957 = vsub.f32 %v2946, %v2955
        %v2958 = vsub.f32 %v2947, %v2956
        %v2959 = vmul.f32 %v2957, %v2957
        %v2960 = vmul.f32 %v2958, %v2958
        %2961 = vadd.xlane.f32.xlu0 %v2959
        %v2962 = vpop.xlane.xlu0 %2961
        %2963 = vadd.xlane.f32.xlu0 %v2960
        %v2964 = vpop.xlane.xlu0 %2963
        %v2965 = vmul.f32 %v2962, %v2954
        %v2966 = vmul.f32 %v2964, %v2954
        %v2967 = vadd.f32 %v2965, 1e-05
        %v2968 = vadd.f32 %v2966, 1e-05
        %v2969 = vrsqrt.pop %v2967
        %v2970 = vrsqrt.pop %v2968
        %v2971 = vmul.f32 %v2957, %v2969
        %v2972 = vmul.f32 %v2958, %v2970
        %v2974 = vlaneseq
        %v2975 = vshrl.u32 %v2974, 7
        %v2976 = vsub.s32 0, %v2975
        %v2977 = vrot.slane %v2948, %v2976
        %v2979 = vmul.f32 %v2971, %v2977
        %v2980 = vmul.f32 %v2972, %v2977
        %v2982 = vlaneseq
        %v2983 = vshrl.u32 %v2982, 7
        %v2984 = vsub.s32 0, %v2983
        %v2985 = vrot.slane %v2949, %v2984
        %v2987 = vadd.f32 %v2979, %v2985
        %v2988 = vadd.f32 %v2980, %v2985
        %v2989 = vld [vmem:[%s1181] sm:$0xf]
        %v2990 = vld [vmem:[%s1181 + $0x4] sm:$0xf]
        %v2991 = vld [vmem:[%s1181 + $0x8] sm:$0xf]
        %v2992 = vld [vmem:[%s1181 + $0xc] sm:$0xf]
        %v2993 = vld [vmem:[%s1181 + $0x10] sm:$0xf]
        %v2994 = vld [vmem:[%s1181 + $0x14] sm:$0xf]
        %v2995 = vld [vmem:[%s1181 + $0x18] sm:$0xf]
        %v2996 = vld [vmem:[%s1181 + $0x1c] sm:$0xf]
        %v2997 = vld [vmem:[%s1181 + $0x20] sm:$0xf]
        %v2998 = vld [vmem:[%s1181 + $0x24] sm:$0xf]
        %v2999 = vld [vmem:[%s1181 + $0x28] sm:$0xf]
        %v3000 = vld [vmem:[%s1181 + $0x2c] sm:$0xf]
        %v3001 = vld [vmem:[%s1181 + $0x30] sm:$0xf]
        %v3002 = vld [vmem:[%s1181 + $0x34] sm:$0xf]
        %v3003 = vld [vmem:[%s1181 + $0x38] sm:$0xf]
        %v3004 = vld [vmem:[%s1181 + $0x3c] sm:$0xf]
        %v3005 = vld [vmem:[%s1190] sm:$0xf]
        %v3006 = vld [vmem:[%s1190 + $0x4] sm:$0xf]
        %v3007 = vld [vmem:[%s1190 + $0x8] sm:$0xf]
        %v3008 = vld [vmem:[%s1190 + $0xc] sm:$0xf]
        %v3009 = vld [vmem:[%s1190 + $0x10] sm:$0xf]
        %v3010 = vld [vmem:[%s1190 + $0x14] sm:$0xf]
        %v3011 = vld [vmem:[%s1190 + $0x18] sm:$0xf]
        %v3012 = vld [vmem:[%s1190 + $0x1c] sm:$0xf]
        %v3013 = vld [vmem:[%s1190 + $0x20] sm:$0xf]
        %v3014 = vld [vmem:[%s1190 + $0x24] sm:$0xf]
        %v3015 = vld [vmem:[%s1190 + $0x28] sm:$0xf]
        %v3016 = vld [vmem:[%s1190 + $0x2c] sm:$0xf]
        %v3017 = vld [vmem:[%s1190 + $0x30] sm:$0xf]
        %v3018 = vld [vmem:[%s1190 + $0x34] sm:$0xf]
        %v3019 = vld [vmem:[%s1190 + $0x38] sm:$0xf]
        %v3020 = vld [vmem:[%s1190 + $0x3c] sm:$0xf]
        %v3021 = vld [vmem:[%s1199] sm:$0xf]
        %v3022 = vld [vmem:[%s1199 + $0x4] sm:$0xf]
        %v3023 = vld [vmem:[%s1199 + $0x8] sm:$0xf]
        %v3024 = vld [vmem:[%s1199 + $0xc] sm:$0xf]
        %v3025 = vld [vmem:[%s1199 + $0x10] sm:$0xf]
        %v3026 = vld [vmem:[%s1199 + $0x14] sm:$0xf]
        %v3027 = vld [vmem:[%s1199 + $0x18] sm:$0xf]
        %v3028 = vld [vmem:[%s1199 + $0x1c] sm:$0xf]
        %v3029 = vld [vmem:[%s1199 + $0x20] sm:$0xf]
        %v3030 = vld [vmem:[%s1199 + $0x24] sm:$0xf]
        %v3031 = vld [vmem:[%s1199 + $0x28] sm:$0xf]
        %v3032 = vld [vmem:[%s1199 + $0x2c] sm:$0xf]
        %v3033 = vld [vmem:[%s1199 + $0x30] sm:$0xf]
        %v3034 = vld [vmem:[%s1199 + $0x34] sm:$0xf]
        %v3035 = vld [vmem:[%s1199 + $0x38] sm:$0xf]
        %v3036 = vld [vmem:[%s1199 + $0x3c] sm:$0xf]
        %v3037 = vld [vmem:[%s1208] sm:$0xf]
        %v3038 = vld [vmem:[%s1208 + $0x4] sm:$0xf]
        %v3039 = vld [vmem:[%s1208 + $0x8] sm:$0xf]
        %v3040 = vld [vmem:[%s1208 + $0xc] sm:$0xf]
        %v3041 = vld [vmem:[%s1208 + $0x10] sm:$0xf]
        %v3042 = vld [vmem:[%s1208 + $0x14] sm:$0xf]
        %v3043 = vld [vmem:[%s1208 + $0x18] sm:$0xf]
        %v3044 = vld [vmem:[%s1208 + $0x1c] sm:$0xf]
        %v3045 = vld [vmem:[%s1208 + $0x20] sm:$0xf]
        %v3046 = vld [vmem:[%s1208 + $0x24] sm:$0xf]
        %v3047 = vld [vmem:[%s1208 + $0x28] sm:$0xf]
        %v3048 = vld [vmem:[%s1208 + $0x2c] sm:$0xf]
        %v3049 = vld [vmem:[%s1208 + $0x30] sm:$0xf]
        %v3050 = vld [vmem:[%s1208 + $0x34] sm:$0xf]
        %v3051 = vld [vmem:[%s1208 + $0x38] sm:$0xf]
        %v3052 = vld [vmem:[%s1208 + $0x3c] sm:$0xf]
        %v3053 = vld [vmem:[%s1402] sm:$0x1]
        %v3054 = vld [vmem:[%s1405] sm:$0x1]
        %v3055 = vld [vmem:[%s1408] sm:$0x1]
        %v3056 = vld [vmem:[%s1411] sm:$0x1]
        %v3057 = vpack.c.bf16 %v2988, %v2987
        %v3059 = vlaneseq
        %v3060 = vshrl.u32 %v3059, 7
        %v3061 = vsub.s32 0, %v3060
        %v3062 = vrot.slane %v3053, %v3061
        %v3080 = vunpack.c.l.b16 %v2989
        %v3081 = vunpack.c.l.b16 %v2990
        %v3082 = vunpack.c.l.b16 %v2991
        %v3083 = vunpack.c.l.b16 %v2992
        %v3084 = vunpack.c.l.b16 %v2993
        %v3085 = vunpack.c.l.b16 %v2994
        %v3086 = vunpack.c.l.b16 %v2995
        %v3087 = vunpack.c.l.b16 %v2996
        %v3088 = vunpack.c.l.b16 %v2997
        %v3089 = vunpack.c.l.b16 %v2998
        %v3090 = vunpack.c.l.b16 %v2999
        %v3091 = vunpack.c.l.b16 %v3000
        %v3092 = vunpack.c.l.b16 %v3001
        %v3093 = vunpack.c.l.b16 %v3002
        %v3094 = vunpack.c.l.b16 %v3003
        %v3095 = vunpack.c.l.b16 %v3004
        %v3096 = vpack.c.b16 %v3081, %v3080
        %v3097 = vpack.c.b16 %v3083, %v3082
        %v3098 = vpack.c.b16 %v3085, %v3084
        %v3099 = vpack.c.b16 %v3087, %v3086
        %v3100 = vpack.c.b16 %v3089, %v3088
        %v3101 = vpack.c.b16 %v3091, %v3090
        %v3102 = vpack.c.b16 %v3093, %v3092
        %v3103 = vpack.c.b16 %v3095, %v3094
        %3112 = vmatprep.subr.bf16.mxu0 0
        %3113 = vmatpush1.bf16.msra.mxu0 %v3096
        %3114 = vmatprep.subr.bf16.mxu0 0
        %3115 = vmatpush1.bf16.msra.mxu0 %v3097
        %3116 = vmatprep.subr.bf16.mxu0 0
        %3117 = vmatpush1.bf16.msra.mxu0 %v3098
        %3118 = vmatprep.subr.bf16.mxu0 0
        %3119 = vmatpush1.bf16.msra.mxu0 %v3099
        %3120 = vmatprep.subr.bf16.mxu0 0
        %3121 = vmatpush1.bf16.msra.mxu0 %v3100
        %3122 = vmatprep.subr.bf16.mxu0 0
        %3123 = vmatpush1.bf16.msra.mxu0 %v3101
        %3124 = vmatprep.subr.bf16.mxu0 0
        %3125 = vmatpush1.bf16.msra.mxu0 %v3102
        %3126 = vmatprep.subr.bf16.mxu0 0
        %3127 = vmatpush1.bf16.msra.mxu0 %v3103
        %3128 = vmatprep.subr.bf16.mxu0 0
        %3129 = vmatpush1.bf16.msra.mxu0 0
        %3130 = vmatprep.subr.bf16.mxu0 0
        %3131 = vmatpush1.bf16.msra.mxu0 0
        %3132 = vmatprep.subr.bf16.mxu0 0
        %3133 = vmatpush1.bf16.msra.mxu0 0
        %3134 = vmatprep.subr.bf16.mxu0 0
        %3135 = vmatpush1.bf16.msra.mxu0 0
        %3136 = vmatprep.subr.bf16.mxu0 0
        %3137 = vmatpush1.bf16.msra.mxu0 0
        %3138 = vmatprep.subr.bf16.mxu0 0
        %3139 = vmatpush1.bf16.msra.mxu0 0
        %3140 = vmatprep.subr.bf16.mxu0 0
        %3141 = vmatpush1.bf16.msra.mxu0 0
        %3142 = vmatprep.subr.bf16.mxu0 0
        %3143 = vmatpush1.bf16.msra.mxu0 0
        %3144 = vmatprep.mubr.bf16.mxu0 0
        %3145 = vmatmul.mubr.bf16.gmra.mrb[0].mxu0 %v3057
        %v3146 = vpop.f32.mrb[0].mxu0
        %v3147 = vadd.f32 %v3062, %v3146
        %v3148 = vpop.f32.mrb[0].mxu0
        %v3149 = vpop.f32.mrb[0].mxu0
        %v3150 = vadd.f32 %v3062, %v3149
        %v3151 = vpop.f32.mrb[0].mxu0
        %3152 = vdwg.mxu0
        %v3153 = vpack.c.bf16 %v1449, %v1448
        %v3155 = vlaneseq
        %v3156 = vshrl.u32 %v3155, 7
        %v3157 = vsub.s32 0, %v3156
        %v3158 = vrot.slane %v3054, %v3157
        %v3176 = vunpack.c.l.b16 %v3005
        %v3177 = vunpack.c.l.b16 %v3006
        %v3178 = vunpack.c.l.b16 %v3007
        %v3179 = vunpack.c.l.b16 %v3008
        %v3180 = vunpack.c.l.b16 %v3009
        %v3181 = vunpack.c.l.b16 %v3010
        %v3182 = vunpack.c.l.b16 %v3011
        %v3183 = vunpack.c.l.b16 %v3012
        %v3184 = vunpack.c.l.b16 %v3013
        %v3185 = vunpack.c.l.b16 %v3014
        %v3186 = vunpack.c.l.b16 %v3015
        %v3187 = vunpack.c.l.b16 %v3016
        %v3188 = vunpack.c.l.b16 %v3017
        %v3189 = vunpack.c.l.b16 %v3018
        %v3190 = vunpack.c.l.b16 %v3019
        %v3191 = vunpack.c.l.b16 %v3020
        %v3192 = vpack.c.b16 %v3177, %v3176
        %v3193 = vpack.c.b16 %v3179, %v3178
        %v3194 = vpack.c.b16 %v3181, %v3180
        %v3195 = vpack.c.b16 %v3183, %v3182
        %v3196 = vpack.c.b16 %v3185, %v3184
        %v3197 = vpack.c.b16 %v3187, %v3186
        %v3198 = vpack.c.b16 %v3189, %v3188
        %v3199 = vpack.c.b16 %v3191, %v3190
        %3208 = vmatprep.subr.bf16.mxu0 0
        %3209 = vmatpush1.bf16.msra.mxu0 %v3192
        %3210 = vmatprep.subr.bf16.mxu0 0
        %3211 = vmatpush1.bf16.msra.mxu0 %v3193
        %3212 = vmatprep.subr.bf16.mxu0 0
        %3213 = vmatpush1.bf16.msra.mxu0 %v3194
        %3214 = vmatprep.subr.bf16.mxu0 0
        %3215 = vmatpush1.bf16.msra.mxu0 %v3195
        %3216 = vmatprep.subr.bf16.mxu0 0
        %3217 = vmatpush1.bf16.msra.mxu0 %v3196
        %3218 = vmatprep.subr.bf16.mxu0 0
        %3219 = vmatpush1.bf16.msra.mxu0 %v3197
        %3220 = vmatprep.subr.bf16.mxu0 0
        %3221 = vmatpush1.bf16.msra.mxu0 %v3198
        %3222 = vmatprep.subr.bf16.mxu0 0
        %3223 = vmatpush1.bf16.msra.mxu0 %v3199
        %3224 = vmatprep.subr.bf16.mxu0 0
        %3225 = vmatpush1.bf16.msra.mxu0 0
        %3226 = vmatprep.subr.bf16.mxu0 0
        %3227 = vmatpush1.bf16.msra.mxu0 0
        %3228 = vmatprep.subr.bf16.mxu0 0
        %3229 = vmatpush1.bf16.msra.mxu0 0
        %3230 = vmatprep.subr.bf16.mxu0 0
        %3231 = vmatpush1.bf16.msra.mxu0 0
        %3232 = vmatprep.subr.bf16.mxu0 0
        %3233 = vmatpush1.bf16.msra.mxu0 0
        %3234 = vmatprep.subr.bf16.mxu0 0
        %3235 = vmatpush1.bf16.msra.mxu0 0
        %3236 = vmatprep.subr.bf16.mxu0 0
        %3237 = vmatpush1.bf16.msra.mxu0 0
        %3238 = vmatprep.subr.bf16.mxu0 0
        %3239 = vmatpush1.bf16.msra.mxu0 0
        %3240 = vmatprep.mubr.bf16.mxu0 0
        %3241 = vmatmul.mubr.bf16.gmra.mrb[0].mxu0 %v3153
        %v3242 = vpop.f32.mrb[0].mxu0
        %v3243 = vadd.f32 %v3158, %v3242
        %v3244 = vpop.f32.mrb[0].mxu0
        %v3245 = vpop.f32.mrb[0].mxu0
        %v3246 = vadd.f32 %v3158, %v3245
        %v3247 = vpop.f32.mrb[0].mxu0
        %3248 = vdwg.mxu0
        %v3250 = vlaneseq
        %v3251 = vshrl.u32 %v3250, 7
        %v3252 = vsub.s32 0, %v3251
        %v3253 = vrot.slane %v3055, %v3252
        %v3271 = vunpack.c.l.b16 %v3021
        %v3272 = vunpack.c.l.b16 %v3022
        %v3273 = vunpack.c.l.b16 %v3023
        %v3274 = vunpack.c.l.b16 %v3024
        %v3275 = vunpack.c.l.b16 %v3025
        %v3276 = vunpack.c.l.b16 %v3026
        %v3277 = vunpack.c.l.b16 %v3027
        %v3278 = vunpack.c.l.b16 %v3028
        %v3279 = vunpack.c.l.b16 %v3029
        %v3280 = vunpack.c.l.b16 %v3030
        %v3281 = vunpack.c.l.b16 %v3031
        %v3282 = vunpack.c.l.b16 %v3032
        %v3283 = vunpack.c.l.b16 %v3033
        %v3284 = vunpack.c.l.b16 %v3034
        %v3285 = vunpack.c.l.b16 %v3035
        %v3286 = vunpack.c.l.b16 %v3036
        %v3287 = vpack.c.b16 %v3272, %v3271
        %v3288 = vpack.c.b16 %v3274, %v3273
        %v3289 = vpack.c.b16 %v3276, %v3275
        %v3290 = vpack.c.b16 %v3278, %v3277
        %v3291 = vpack.c.b16 %v3280, %v3279
        %v3292 = vpack.c.b16 %v3282, %v3281
        %v3293 = vpack.c.b16 %v3284, %v3283
        %v3294 = vpack.c.b16 %v3286, %v3285
        %3303 = vmatprep.subr.bf16.mxu0 0
        %3304 = vmatpush1.bf16.msra.mxu0 %v3287
        %3305 = vmatprep.subr.bf16.mxu0 0
        %3306 = vmatpush1.bf16.msra.mxu0 %v3288
        %3307 = vmatprep.subr.bf16.mxu0 0
        %3308 = vmatpush1.bf16.msra.mxu0 %v3289
        %3309 = vmatprep.subr.bf16.mxu0 0
        %3310 = vmatpush1.bf16.msra.mxu0 %v3290
        %3311 = vmatprep.subr.bf16.mxu0 0
        %3312 = vmatpush1.bf16.msra.mxu0 %v3291
        %3313 = vmatprep.subr.bf16.mxu0 0
        %3314 = vmatpush1.bf16.msra.mxu0 %v3292
        %3315 = vmatprep.subr.bf16.mxu0 0
        %3316 = vmatpush1.bf16.msra.mxu0 %v3293
        %3317 = vmatprep.subr.bf16.mxu0 0
        %3318 = vmatpush1.bf16.msra.mxu0 %v3294
        %3319 = vmatprep.subr.bf16.mxu0 0
        %3320 = vmatpush1.bf16.msra.mxu0 0
        %3321 = vmatprep.subr.bf16.mxu0 0
        %3322 = vmatpush1.bf16.msra.mxu0 0
        %3323 = vmatprep.subr.bf16.mxu0 0
        %3324 = vmatpush1.bf16.msra.mxu0 0
        %3325 = vmatprep.subr.bf16.mxu0 0
        %3326 = vmatpush1.bf16.msra.mxu0 0
        %3327 = vmatprep.subr.bf16.mxu0 0
        %3328 = vmatpush1.bf16.msra.mxu0 0
        %3329 = vmatprep.subr.bf16.mxu0 0
        %3330 = vmatpush1.bf16.msra.mxu0 0
        %3331 = vmatprep.subr.bf16.mxu0 0
        %3332 = vmatpush1.bf16.msra.mxu0 0
        %3333 = vmatprep.subr.bf16.mxu0 0
        %3334 = vmatpush1.bf16.msra.mxu0 0
        %3335 = vmatprep.mubr.bf16.mxu0 0
        %3336 = vmatmul.mubr.bf16.gmra.mrb[0].mxu0 %v3153
        %v3337 = vpop.f32.mrb[0].mxu0
        %v3338 = vadd.f32 %v3253, %v3337
        %v3339 = vpop.f32.mrb[0].mxu0
        %v3340 = vpop.f32.mrb[0].mxu0
        %v3341 = vadd.f32 %v3253, %v3340
        %v3342 = vpop.f32.mrb[0].mxu0
        %3343 = vdwg.mxu0
        %v3344 = vpack.c.bf16 %v3147, %v3147
        %v3345 = vpack.c.bf16 %v3150, %v3150
        %v3346 = vpack.c.bf16 %v3243, %v3243
        %v3347 = vpack.c.bf16 %v3246, %v3246
        %v3348 = vpack.c.bf16 %v3338, %v3338
        %v3349 = vpack.c.bf16 %v3341, %v3341
        %v3351 = vsel %vm1811, %v3344, 0
        %v3354 = vsel %vm1811, %v3346, 0
        %3356 = vmatprep.subr.bf16.mxu0 0
        %3357 = vmatpush1.bf16.xpose.msra.mxu0 %v3354
        %3358 = vmatprep.subr.bf16.mxu0 0
        %3359 = vmatpush1.bf16.xpose.msra.mxu0 0
        %3360 = vmatprep.subr.bf16.mxu0 0
        %3361 = vmatpush1.bf16.xpose.msra.mxu0 0
        %3362 = vmatprep.subr.bf16.mxu0 0
        %3363 = vmatpush1.bf16.xpose.msra.mxu0 0
        %3364 = vmatprep.subr.bf16.mxu0 0
        %3365 = vmatpush1.bf16.xpose.msra.mxu0 0
        %3366 = vmatprep.subr.bf16.mxu0 0
        %3367 = vmatpush1.bf16.xpose.msra.mxu0 0
        %3368 = vmatprep.subr.bf16.mxu0 0
        %3369 = vmatpush1.bf16.xpose.msra.mxu0 0
        %3370 = vmatprep.subr.bf16.mxu0 0
        %3371 = vmatpush1.bf16.xpose.msra.mxu0 0
        %3372 = vmatprep.subr.bf16.mxu0 0
        %3373 = vmatpush1.bf16.xpose.msra.mxu0 0
        %3374 = vmatprep.subr.bf16.mxu0 0
        %3375 = vmatpush1.bf16.xpose.msra.mxu0 0
        %3376 = vmatprep.subr.bf16.mxu0 0
        %3377 = vmatpush1.bf16.xpose.msra.mxu0 0
        %3378 = vmatprep.subr.bf16.mxu0 0
        %3379 = vmatpush1.bf16.xpose.msra.mxu0 0
        %3380 = vmatprep.subr.bf16.mxu0 0
        %3381 = vmatpush1.bf16.xpose.msra.mxu0 0
        %3382 = vmatprep.subr.bf16.mxu0 0
        %3383 = vmatpush1.bf16.xpose.msra.mxu0 0
        %3384 = vmatprep.subr.bf16.mxu0 0
        %3385 = vmatpush1.bf16.xpose.msra.mxu0 0
        %3386 = vmatprep.subr.bf16.mxu0 0
        %3387 = vmatpush1.bf16.xpose.msra.mxu0 0
        %3388 = vmatprep.mubr.bf16.mxu0 0
        %3389 = vmatmul.mubr.bf16.gmra.mrb[0].mxu0 %v3351
        %v3390 = vpop.f32.mrb[0].mxu0
        %v3391 = vadd.f32 0.0, %v3390
        %v3392 = vpop.f32.mrb[0].mxu0
        %v3393 = vpop.f32.mrb[0].mxu0
        %v3394 = vpop.f32.mrb[0].mxu0
        %3395 = vdwg.mxu0
        %v3397 = vsel %vm1811, %v3345, 0
        %v3400 = vsel %vm1811, %v3347, 0
        %3402 = vmatprep.subr.bf16.mxu0 0
        %3403 = vmatpush1.bf16.xpose.msra.mxu0 %v3400
        %3404 = vmatprep.subr.bf16.mxu0 0
        %3405 = vmatpush1.bf16.xpose.msra.mxu0 0
        %3406 = vmatprep.subr.bf16.mxu0 0
        %3407 = vmatpush1.bf16.xpose.msra.mxu0 0
        %3408 = vmatprep.subr.bf16.mxu0 0
        %3409 = vmatpush1.bf16.xpose.msra.mxu0 0
        %3410 = vmatprep.subr.bf16.mxu0 0
        %3411 = vmatpush1.bf16.xpose.msra.mxu0 0
        %3412 = vmatprep.subr.bf16.mxu0 0
        %3413 = vmatpush1.bf16.xpose.msra.mxu0 0
        %3414 = vmatprep.subr.bf16.mxu0 0
        %3415 = vmatpush1.bf16.xpose.msra.mxu0 0
        %3416 = vmatprep.subr.bf16.mxu0 0
        %3417 = vmatpush1.bf16.xpose.msra.mxu0 0
        %3418 = vmatprep.subr.bf16.mxu0 0
        %3419 = vmatpush1.bf16.xpose.msra.mxu0 0
        %3420 = vmatprep.subr.bf16.mxu0 0
        %3421 = vmatpush1.bf16.xpose.msra.mxu0 0
        %3422 = vmatprep.subr.bf16.mxu0 0
        %3423 = vmatpush1.bf16.xpose.msra.mxu0 0
        %3424 = vmatprep.subr.bf16.mxu0 0
        %3425 = vmatpush1.bf16.xpose.msra.mxu0 0
        %3426 = vmatprep.subr.bf16.mxu0 0
        %3427 = vmatpush1.bf16.xpose.msra.mxu0 0
        %3428 = vmatprep.subr.bf16.mxu0 0
        %3429 = vmatpush1.bf16.xpose.msra.mxu0 0
        %3430 = vmatprep.subr.bf16.mxu0 0
        %3431 = vmatpush1.bf16.xpose.msra.mxu0 0
        %3432 = vmatprep.subr.bf16.mxu0 0
        %3433 = vmatpush1.bf16.xpose.msra.mxu0 0
        %3434 = vmatprep.mubr.bf16.mxu0 0
        %3435 = vmatmul.mubr.bf16.gmra.mrb[0].mxu0 %v3397
        %v3436 = vpop.f32.mrb[0].mxu0
        %v3437 = vadd.f32 0.0, %v3436
        %v3438 = vpop.f32.mrb[0].mxu0
        %v3439 = vpop.f32.mrb[0].mxu0
        %v3440 = vpop.f32.mrb[0].mxu0
        %3441 = vdwg.mxu0
        %v3442 = vmul.f32 %v3391, 0.17677669
        %v3443 = vmul.f32 %v3437, 0.17677669
        %v3444 = vsel %vm1908, %v3442, -inf
        %3445 = vmax.xlane.f32.xlu0 %v3444
        %v3446 = vpop.xlane.xlu0 %3445
        %v3447 = vsel %vm1908, %v3443, -inf
        %3448 = vmax.xlane.f32.xlu0 %v3447
        %v3449 = vpop.xlane.xlu0 %3448
        %v3450 = vsub.f32 %v3442, %v3446
        %v3451 = vsub.f32 %v3443, %v3449
        %v3452 = vmul.f32 %v3450, 1.442695
        %v3453 = vpow.pop %v3452
        %v3454 = vmul.f32 %v3451, 1.442695
        %v3455 = vpow.pop %v3454
        %v3456 = vsel %vm1908, %v3453, 0.0
        %3457 = vadd.xlane.f32.xlu0 %v3456
        %v3458 = vpop.xlane.xlu0 %3457
        %v3459 = vsel %vm1908, %v3455, 0.0
        %3460 = vadd.xlane.f32.xlu0 %v3459
        %v3461 = vpop.xlane.xlu0 %3460
        %v3462 = vrcp.pop %v3458
        %v3463 = vrcp.pop %v3461
        %v3464 = vmul.f32 %v3453, %v3462
        %v3465 = vmul.f32 %v3455, %v3463
        %v3466 = vpack.c.bf16 %v3464, %v3464
        %v3467 = vpack.c.bf16 %v3465, %v3465
        %v3469 = vsel %vm1908, %v3466, 0
        %v3472 = vsel %vm1936, %v3348, 0
        %3474 = vmatprep.subr.bf16.mxu0 0
        %3475 = vmatpush1.bf16.msra.mxu0 %v3472
        %3476 = vmatprep.subr.bf16.mxu0 0
        %3477 = vmatpush1.bf16.msra.mxu0 0
        %3478 = vmatprep.subr.bf16.mxu0 0
        %3479 = vmatpush1.bf16.msra.mxu0 0
        %3480 = vmatprep.subr.bf16.mxu0 0
        %3481 = vmatpush1.bf16.msra.mxu0 0
        %3482 = vmatprep.subr.bf16.mxu0 0
        %3483 = vmatpush1.bf16.msra.mxu0 0
        %3484 = vmatprep.subr.bf16.mxu0 0
        %3485 = vmatpush1.bf16.msra.mxu0 0
        %3486 = vmatprep.subr.bf16.mxu0 0
        %3487 = vmatpush1.bf16.msra.mxu0 0
        %3488 = vmatprep.subr.bf16.mxu0 0
        %3489 = vmatpush1.bf16.msra.mxu0 0
        %3490 = vmatprep.subr.bf16.mxu0 0
        %3491 = vmatpush1.bf16.msra.mxu0 0
        %3492 = vmatprep.subr.bf16.mxu0 0
        %3493 = vmatpush1.bf16.msra.mxu0 0
        %3494 = vmatprep.subr.bf16.mxu0 0
        %3495 = vmatpush1.bf16.msra.mxu0 0
        %3496 = vmatprep.subr.bf16.mxu0 0
        %3497 = vmatpush1.bf16.msra.mxu0 0
        %3498 = vmatprep.subr.bf16.mxu0 0
        %3499 = vmatpush1.bf16.msra.mxu0 0
        %3500 = vmatprep.subr.bf16.mxu0 0
        %3501 = vmatpush1.bf16.msra.mxu0 0
        %3502 = vmatprep.subr.bf16.mxu0 0
        %3503 = vmatpush1.bf16.msra.mxu0 0
        %3504 = vmatprep.subr.bf16.mxu0 0
        %3505 = vmatpush1.bf16.msra.mxu0 0
        %3506 = vmatprep.mubr.bf16.mxu0 0
        %3507 = vmatmul.mubr.bf16.gmra.mrb[0].mxu0 %v3469
        %v3508 = vpop.f32.mrb[0].mxu0
        %v3509 = vadd.f32 0.0, %v3508
        %v3510 = vpop.f32.mrb[0].mxu0
        %v3511 = vpop.f32.mrb[0].mxu0
        %v3512 = vpop.f32.mrb[0].mxu0
        %3513 = vdwg.mxu0
        %v3515 = vsel %vm1908, %v3467, 0
        %v3518 = vsel %vm1936, %v3349, 0
        %3520 = vmatprep.subr.bf16.mxu0 0
        %3521 = vmatpush1.bf16.msra.mxu0 %v3518
        %3522 = vmatprep.subr.bf16.mxu0 0
        %3523 = vmatpush1.bf16.msra.mxu0 0
        %3524 = vmatprep.subr.bf16.mxu0 0
        %3525 = vmatpush1.bf16.msra.mxu0 0
        %3526 = vmatprep.subr.bf16.mxu0 0
        %3527 = vmatpush1.bf16.msra.mxu0 0
        %3528 = vmatprep.subr.bf16.mxu0 0
        %3529 = vmatpush1.bf16.msra.mxu0 0
        %3530 = vmatprep.subr.bf16.mxu0 0
        %3531 = vmatpush1.bf16.msra.mxu0 0
        %3532 = vmatprep.subr.bf16.mxu0 0
        %3533 = vmatpush1.bf16.msra.mxu0 0
        %3534 = vmatprep.subr.bf16.mxu0 0
        %3535 = vmatpush1.bf16.msra.mxu0 0
        %3536 = vmatprep.subr.bf16.mxu0 0
        %3537 = vmatpush1.bf16.msra.mxu0 0
        %3538 = vmatprep.subr.bf16.mxu0 0
        %3539 = vmatpush1.bf16.msra.mxu0 0
        %3540 = vmatprep.subr.bf16.mxu0 0
        %3541 = vmatpush1.bf16.msra.mxu0 0
        %3542 = vmatprep.subr.bf16.mxu0 0
        %3543 = vmatpush1.bf16.msra.mxu0 0
        %3544 = vmatprep.subr.bf16.mxu0 0
        %3545 = vmatpush1.bf16.msra.mxu0 0
        %3546 = vmatprep.subr.bf16.mxu0 0
        %3547 = vmatpush1.bf16.msra.mxu0 0
        %3548 = vmatprep.subr.bf16.mxu0 0
        %3549 = vmatpush1.bf16.msra.mxu0 0
        %3550 = vmatprep.subr.bf16.mxu0 0
        %3551 = vmatpush1.bf16.msra.mxu0 0
        %3552 = vmatprep.mubr.bf16.mxu0 0
        %3553 = vmatmul.mubr.bf16.gmra.mrb[0].mxu0 %v3515
        %v3554 = vpop.f32.mrb[0].mxu0
        %v3555 = vadd.f32 0.0, %v3554
        %v3556 = vpop.f32.mrb[0].mxu0
        %v3557 = vpop.f32.mrb[0].mxu0
        %v3558 = vpop.f32.mrb[0].mxu0
        %3559 = vdwg.mxu0
        %v3560 = vpack.c.bf16 %v3555, %v3509
        %v3565 = vunpack.c.l.b16 %v3037
        %v3566 = vunpack.c.l.b16 %v3038
        %v3567 = vunpack.c.l.b16 %v3039
        %v3568 = vunpack.c.l.b16 %v3040
        %v3569 = vpack.c.b16 %v3566, %v3565
        %v3570 = vpack.c.b16 %v3568, %v3567
        %v3574 = vsel %vm1811, %v3560, 0
        %3576 = vmatprep.subr.bf16.mxu0 0
        %3577 = vmatpush1.bf16.msra.mxu0 %v3569
        %3578 = vmatprep.subr.bf16.mxu0 0
        %3579 = vmatpush1.bf16.msra.mxu0 %v3570
        %3580 = vmatprep.subr.bf16.mxu0 0
        %3581 = vmatpush1.bf16.msra.mxu0 0
        %3582 = vmatprep.subr.bf16.mxu0 0
        %3583 = vmatpush1.bf16.msra.mxu0 0
        %3584 = vmatprep.subr.bf16.mxu0 0
        %3585 = vmatpush1.bf16.msra.mxu0 0
        %3586 = vmatprep.subr.bf16.mxu0 0
        %3587 = vmatpush1.bf16.msra.mxu0 0
        %3588 = vmatprep.subr.bf16.mxu0 0
        %3589 = vmatpush1.bf16.msra.mxu0 0
        %3590 = vmatprep.subr.bf16.mxu0 0
        %3591 = vmatpush1.bf16.msra.mxu0 0
        %3592 = vmatprep.subr.bf16.mxu0 0
        %3593 = vmatpush1.bf16.msra.mxu0 0
        %3594 = vmatprep.subr.bf16.mxu0 0
        %3595 = vmatpush1.bf16.msra.mxu0 0
        %3596 = vmatprep.subr.bf16.mxu0 0
        %3597 = vmatpush1.bf16.msra.mxu0 0
        %3598 = vmatprep.subr.bf16.mxu0 0
        %3599 = vmatpush1.bf16.msra.mxu0 0
        %3600 = vmatprep.subr.bf16.mxu0 0
        %3601 = vmatpush1.bf16.msra.mxu0 0
        %3602 = vmatprep.subr.bf16.mxu0 0
        %3603 = vmatpush1.bf16.msra.mxu0 0
        %3604 = vmatprep.subr.bf16.mxu0 0
        %3605 = vmatpush1.bf16.msra.mxu0 0
        %3606 = vmatprep.subr.bf16.mxu0 0
        %3607 = vmatpush1.bf16.msra.mxu0 0
        %3608 = vmatprep.mubr.bf16.mxu0 0
        %3609 = vmatmul.mubr.bf16.gmra.mrb[0].mxu0 %v3574
        %v3610 = vpop.f32.mrb[0].mxu0
        %v3611 = vadd.f32 0.0, %v3610
        %v3612 = vpop.f32.mrb[0].mxu0
        %v3613 = vpop.f32.mrb[0].mxu0
        %v3614 = vadd.f32 0.0, %v3613
        %v3615 = vpop.f32.mrb[0].mxu0
        %3616 = vdwg.mxu0
        %v3618 = vlaneseq
        %v3619 = vshrl.u32 %v3618, 7
        %v3620 = vsub.s32 0, %v3619
        %v3621 = vrot.slane %v3056, %v3620
        %v3623 = vadd.f32 %v3621, %v3611
        %v3624 = vadd.f32 %v3621, %v3614
        %3626 = vrot.lane.b32.xlu0 %v3344, 96
        %v3627 = vpop.permute.xlu0 %3626
        %3629 = vrot.lane.b32.xlu0 %v3346, 96
        %v3630 = vpop.permute.xlu0 %3629
        %v3632 = vsel %vm1811, %v3627, 0
        %v3635 = vsel %vm1811, %v3630, 0
        %3637 = vmatprep.subr.bf16.mxu0 0
        %3638 = vmatpush1.bf16.xpose.msra.mxu0 %v3635
        %3639 = vmatprep.subr.bf16.mxu0 0
        %3640 = vmatpush1.bf16.xpose.msra.mxu0 0
        %3641 = vmatprep.subr.bf16.mxu0 0
        %3642 = vmatpush1.bf16.xpose.msra.mxu0 0
        %3643 = vmatprep.subr.bf16.mxu0 0
        %3644 = vmatpush1.bf16.xpose.msra.mxu0 0
        %3645 = vmatprep.subr.bf16.mxu0 0
        %3646 = vmatpush1.bf16.xpose.msra.mxu0 0
        %3647 = vmatprep.subr.bf16.mxu0 0
        %3648 = vmatpush1.bf16.xpose.msra.mxu0 0
        %3649 = vmatprep.subr.bf16.mxu0 0
        %3650 = vmatpush1.bf16.xpose.msra.mxu0 0
        %3651 = vmatprep.subr.bf16.mxu0 0
        %3652 = vmatpush1.bf16.xpose.msra.mxu0 0
        %3653 = vmatprep.subr.bf16.mxu0 0
        %3654 = vmatpush1.bf16.xpose.msra.mxu0 0
        %3655 = vmatprep.subr.bf16.mxu0 0
        %3656 = vmatpush1.bf16.xpose.msra.mxu0 0
        %3657 = vmatprep.subr.bf16.mxu0 0
        %3658 = vmatpush1.bf16.xpose.msra.mxu0 0
        %3659 = vmatprep.subr.bf16.mxu0 0
        %3660 = vmatpush1.bf16.xpose.msra.mxu0 0
        %3661 = vmatprep.subr.bf16.mxu0 0
        %3662 = vmatpush1.bf16.xpose.msra.mxu0 0
        %3663 = vmatprep.subr.bf16.mxu0 0
        %3664 = vmatpush1.bf16.xpose.msra.mxu0 0
        %3665 = vmatprep.subr.bf16.mxu0 0
        %3666 = vmatpush1.bf16.xpose.msra.mxu0 0
        %3667 = vmatprep.subr.bf16.mxu0 0
        %3668 = vmatpush1.bf16.xpose.msra.mxu0 0
        %3669 = vmatprep.mubr.bf16.mxu0 0
        %3670 = vmatmul.mubr.bf16.gmra.mrb[0].mxu0 %v3632
        %v3671 = vpop.f32.mrb[0].mxu0
        %v3672 = vadd.f32 0.0, %v3671
        %v3673 = vpop.f32.mrb[0].mxu0
        %v3674 = vpop.f32.mrb[0].mxu0
        %v3675 = vpop.f32.mrb[0].mxu0
        %3676 = vdwg.mxu0
        %3678 = vrot.lane.b32.xlu0 %v3345, 96
        %v3679 = vpop.permute.xlu0 %3678
        %3681 = vrot.lane.b32.xlu0 %v3347, 96
        %v3682 = vpop.permute.xlu0 %3681
        %v3684 = vsel %vm1811, %v3679, 0
        %v3687 = vsel %vm1811, %v3682, 0
        %3689 = vmatprep.subr.bf16.mxu0 0
        %3690 = vmatpush1.bf16.xpose.msra.mxu0 %v3687
        %3691 = vmatprep.subr.bf16.mxu0 0
        %3692 = vmatpush1.bf16.xpose.msra.mxu0 0
        %3693 = vmatprep.subr.bf16.mxu0 0
        %3694 = vmatpush1.bf16.xpose.msra.mxu0 0
        %3695 = vmatprep.subr.bf16.mxu0 0
        %3696 = vmatpush1.bf16.xpose.msra.mxu0 0
        %3697 = vmatprep.subr.bf16.mxu0 0
        %3698 = vmatpush1.bf16.xpose.msra.mxu0 0
        %3699 = vmatprep.subr.bf16.mxu0 0
        %3700 = vmatpush1.bf16.xpose.msra.mxu0 0
        %3701 = vmatprep.subr.bf16.mxu0 0
        %3702 = vmatpush1.bf16.xpose.msra.mxu0 0
        %3703 = vmatprep.subr.bf16.mxu0 0
        %3704 = vmatpush1.bf16.xpose.msra.mxu0 0
        %3705 = vmatprep.subr.bf16.mxu0 0
        %3706 = vmatpush1.bf16.xpose.msra.mxu0 0
        %3707 = vmatprep.subr.bf16.mxu0 0
        %3708 = vmatpush1.bf16.xpose.msra.mxu0 0
        %3709 = vmatprep.subr.bf16.mxu0 0
        %3710 = vmatpush1.bf16.xpose.msra.mxu0 0
        %3711 = vmatprep.subr.bf16.mxu0 0
        %3712 = vmatpush1.bf16.xpose.msra.mxu0 0
        %3713 = vmatprep.subr.bf16.mxu0 0
        %3714 = vmatpush1.bf16.xpose.msra.mxu0 0
        %3715 = vmatprep.subr.bf16.mxu0 0
        %3716 = vmatpush1.bf16.xpose.msra.mxu0 0
        %3717 = vmatprep.subr.bf16.mxu0 0
        %3718 = vmatpush1.bf16.xpose.msra.mxu0 0
        %3719 = vmatprep.subr.bf16.mxu0 0
        %3720 = vmatpush1.bf16.xpose.msra.mxu0 0
        %3721 = vmatprep.mubr.bf16.mxu0 0
        %3722 = vmatmul.mubr.bf16.gmra.mrb[0].mxu0 %v3684
        %v3723 = vpop.f32.mrb[0].mxu0
        %v3724 = vadd.f32 0.0, %v3723
        %v3725 = vpop.f32.mrb[0].mxu0
        %v3726 = vpop.f32.mrb[0].mxu0
        %v3727 = vpop.f32.mrb[0].mxu0
        %3728 = vdwg.mxu0
        %v3729 = vmul.f32 %v3672, 0.17677669
        %v3730 = vmul.f32 %v3724, 0.17677669
        %v3731 = vsel %vm1908, %v3729, -inf
        %3732 = vmax.xlane.f32.xlu0 %v3731
        %v3733 = vpop.xlane.xlu0 %3732
        %v3734 = vsel %vm1908, %v3730, -inf
        %3735 = vmax.xlane.f32.xlu0 %v3734
        %v3736 = vpop.xlane.xlu0 %3735
        %v3737 = vsub.f32 %v3729, %v3733
        %v3738 = vsub.f32 %v3730, %v3736
        %v3739 = vmul.f32 %v3737, 1.442695
        %v3740 = vpow.pop %v3739
        %v3741 = vmul.f32 %v3738, 1.442695
        %v3742 = vpow.pop %v3741
        %v3743 = vsel %vm1908, %v3740, 0.0
        %3744 = vadd.xlane.f32.xlu0 %v3743
        %v3745 = vpop.xlane.xlu0 %3744
        %v3746 = vsel %vm1908, %v3742, 0.0
        %3747 = vadd.xlane.f32.xlu0 %v3746
        %v3748 = vpop.xlane.xlu0 %3747
        %v3749 = vrcp.pop %v3745
        %v3750 = vrcp.pop %v3748
        %v3751 = vmul.f32 %v3740, %v3749
        %v3752 = vmul.f32 %v3742, %v3750
        %v3753 = vpack.c.bf16 %v3751, %v3751
        %v3754 = vpack.c.bf16 %v3752, %v3752
        %3756 = vrot.lane.b32.xlu0 %v3348, 96
        %v3757 = vpop.permute.xlu0 %3756
        %v3759 = vsel %vm1908, %v3753, 0
        %v3762 = vsel %vm1936, %v3757, 0
        %3764 = vmatprep.subr.bf16.mxu0 0
        %3765 = vmatpush1.bf16.msra.mxu0 %v3762
        %3766 = vmatprep.subr.bf16.mxu0 0
        %3767 = vmatpush1.bf16.msra.mxu0 0
        %3768 = vmatprep.subr.bf16.mxu0 0
        %3769 = vmatpush1.bf16.msra.mxu0 0
        %3770 = vmatprep.subr.bf16.mxu0 0
        %3771 = vmatpush1.bf16.msra.mxu0 0
        %3772 = vmatprep.subr.bf16.mxu0 0
        %3773 = vmatpush1.bf16.msra.mxu0 0
        %3774 = vmatprep.subr.bf16.mxu0 0
        %3775 = vmatpush1.bf16.msra.mxu0 0
        %3776 = vmatprep.subr.bf16.mxu0 0
        %3777 = vmatpush1.bf16.msra.mxu0 0
        %3778 = vmatprep.subr.bf16.mxu0 0
        %3779 = vmatpush1.bf16.msra.mxu0 0
        %3780 = vmatprep.subr.bf16.mxu0 0
        %3781 = vmatpush1.bf16.msra.mxu0 0
        %3782 = vmatprep.subr.bf16.mxu0 0
        %3783 = vmatpush1.bf16.msra.mxu0 0
        %3784 = vmatprep.subr.bf16.mxu0 0
        %3785 = vmatpush1.bf16.msra.mxu0 0
        %3786 = vmatprep.subr.bf16.mxu0 0
        %3787 = vmatpush1.bf16.msra.mxu0 0
        %3788 = vmatprep.subr.bf16.mxu0 0
        %3789 = vmatpush1.bf16.msra.mxu0 0
        %3790 = vmatprep.subr.bf16.mxu0 0
        %3791 = vmatpush1.bf16.msra.mxu0 0
        %3792 = vmatprep.subr.bf16.mxu0 0
        %3793 = vmatpush1.bf16.msra.mxu0 0
        %3794 = vmatprep.subr.bf16.mxu0 0
        %3795 = vmatpush1.bf16.msra.mxu0 0
        %3796 = vmatprep.mubr.bf16.mxu0 0
        %3797 = vmatmul.mubr.bf16.gmra.mrb[0].mxu0 %v3759
        %v3798 = vpop.f32.mrb[0].mxu0
        %v3799 = vadd.f32 0.0, %v3798
        %v3800 = vpop.f32.mrb[0].mxu0
        %v3801 = vpop.f32.mrb[0].mxu0
        %v3802 = vpop.f32.mrb[0].mxu0
        %3803 = vdwg.mxu0
        %3805 = vrot.lane.b32.xlu0 %v3349, 96
        %v3806 = vpop.permute.xlu0 %3805
        %v3808 = vsel %vm1908, %v3754, 0
        %v3811 = vsel %vm1936, %v3806, 0
        %3813 = vmatprep.subr.bf16.mxu0 0
        %3814 = vmatpush1.bf16.msra.mxu0 %v3811
        %3815 = vmatprep.subr.bf16.mxu0 0
        %3816 = vmatpush1.bf16.msra.mxu0 0
        %3817 = vmatprep.subr.bf16.mxu0 0
        %3818 = vmatpush1.bf16.msra.mxu0 0
        %3819 = vmatprep.subr.bf16.mxu0 0
        %3820 = vmatpush1.bf16.msra.mxu0 0
        %3821 = vmatprep.subr.bf16.mxu0 0
        %3822 = vmatpush1.bf16.msra.mxu0 0
        %3823 = vmatprep.subr.bf16.mxu0 0
        %3824 = vmatpush1.bf16.msra.mxu0 0
        %3825 = vmatprep.subr.bf16.mxu0 0
        %3826 = vmatpush1.bf16.msra.mxu0 0
        %3827 = vmatprep.subr.bf16.mxu0 0
        %3828 = vmatpush1.bf16.msra.mxu0 0
        %3829 = vmatprep.subr.bf16.mxu0 0
        %3830 = vmatpush1.bf16.msra.mxu0 0
        %3831 = vmatprep.subr.bf16.mxu0 0
        %3832 = vmatpush1.bf16.msra.mxu0 0
        %3833 = vmatprep.subr.bf16.mxu0 0
        %3834 = vmatpush1.bf16.msra.mxu0 0
        %3835 = vmatprep.subr.bf16.mxu0 0
        %3836 = vmatpush1.bf16.msra.mxu0 0
        %3837 = vmatprep.subr.bf16.mxu0 0
        %3838 = vmatpush1.bf16.msra.mxu0 0
        %3839 = vmatprep.subr.bf16.mxu0 0
        %3840 = vmatpush1.bf16.msra.mxu0 0
        %3841 = vmatprep.subr.bf16.mxu0 0
        %3842 = vmatpush1.bf16.msra.mxu0 0
        %3843 = vmatprep.subr.bf16.mxu0 0
        %3844 = vmatpush1.bf16.msra.mxu0 0
        %3845 = vmatprep.mubr.bf16.mxu0 0
        %3846 = vmatmul.mubr.bf16.gmra.mrb[0].mxu0 %v3808
        %v3847 = vpop.f32.mrb[0].mxu0
        %v3848 = vadd.f32 0.0, %v3847
        %v3849 = vpop.f32.mrb[0].mxu0
        %v3850 = vpop.f32.mrb[0].mxu0
        %v3851 = vpop.f32.mrb[0].mxu0
        %3852 = vdwg.mxu0
        %v3853 = vpack.c.bf16 %v3848, %v3799
        %v3858 = vunpack.c.l.b16 %v3041
        %v3859 = vunpack.c.l.b16 %v3042
        %v3860 = vunpack.c.l.b16 %v3043
        %v3861 = vunpack.c.l.b16 %v3044
        %v3862 = vpack.c.b16 %v3859, %v3858
        %v3863 = vpack.c.b16 %v3861, %v3860
        %v3867 = vsel %vm1811, %v3853, 0
        %3869 = vmatprep.subr.bf16.mxu0 0
        %3870 = vmatpush1.bf16.msra.mxu0 %v3862
        %3871 = vmatprep.subr.bf16.mxu0 0
        %3872 = vmatpush1.bf16.msra.mxu0 %v3863
        %3873 = vmatprep.subr.bf16.mxu0 0
        %3874 = vmatpush1.bf16.msra.mxu0 0
        %3875 = vmatprep.subr.bf16.mxu0 0
        %3876 = vmatpush1.bf16.msra.mxu0 0
        %3877 = vmatprep.subr.bf16.mxu0 0
        %3878 = vmatpush1.bf16.msra.mxu0 0
        %3879 = vmatprep.subr.bf16.mxu0 0
        %3880 = vmatpush1.bf16.msra.mxu0 0
        %3881 = vmatprep.subr.bf16.mxu0 0
        %3882 = vmatpush1.bf16.msra.mxu0 0
        %3883 = vmatprep.subr.bf16.mxu0 0
        %3884 = vmatpush1.bf16.msra.mxu0 0
        %3885 = vmatprep.subr.bf16.mxu0 0
        %3886 = vmatpush1.bf16.msra.mxu0 0
        %3887 = vmatprep.subr.bf16.mxu0 0
        %3888 = vmatpush1.bf16.msra.mxu0 0
        %3889 = vmatprep.subr.bf16.mxu0 0
        %3890 = vmatpush1.bf16.msra.mxu0 0
        %3891 = vmatprep.subr.bf16.mxu0 0
        %3892 = vmatpush1.bf16.msra.mxu0 0
        %3893 = vmatprep.subr.bf16.mxu0 0
        %3894 = vmatpush1.bf16.msra.mxu0 0
        %3895 = vmatprep.subr.bf16.mxu0 0
        %3896 = vmatpush1.bf16.msra.mxu0 0
        %3897 = vmatprep.subr.bf16.mxu0 0
        %3898 = vmatpush1.bf16.msra.mxu0 0
        %3899 = vmatprep.subr.bf16.mxu0 0
        %3900 = vmatpush1.bf16.msra.mxu0 0
        %3901 = vmatprep.mubr.bf16.mxu0 0
        %3902 = vmatmul.mubr.bf16.gmra.mrb[0].mxu0 %v3867
        %v3903 = vpop.f32.mrb[0].mxu0
        %v3904 = vadd.f32 0.0, %v3903
        %v3905 = vpop.f32.mrb[0].mxu0
        %v3906 = vpop.f32.mrb[0].mxu0
        %v3907 = vadd.f32 0.0, %v3906
        %v3908 = vpop.f32.mrb[0].mxu0
        %3909 = vdwg.mxu0
        %v3910 = vadd.f32 %v3623, %v3904
        %v3911 = vadd.f32 %v3624, %v3907
        %3912 = vrot.lane.b32.xlu0 %v3344, 64
        %v3913 = vpop.permute.xlu0 %3912
        %3914 = vrot.lane.b32.xlu0 %v3346, 64
        %v3915 = vpop.permute.xlu0 %3914
        %v3917 = vsel %vm1811, %v3913, 0
        %v3920 = vsel %vm1811, %v3915, 0
        %3922 = vmatprep.subr.bf16.mxu0 0
        %3923 = vmatpush1.bf16.xpose.msra.mxu0 %v3920
        %3924 = vmatprep.subr.bf16.mxu0 0
        %3925 = vmatpush1.bf16.xpose.msra.mxu0 0
        %3926 = vmatprep.subr.bf16.mxu0 0
        %3927 = vmatpush1.bf16.xpose.msra.mxu0 0
        %3928 = vmatprep.subr.bf16.mxu0 0
        %3929 = vmatpush1.bf16.xpose.msra.mxu0 0
        %3930 = vmatprep.subr.bf16.mxu0 0
        %3931 = vmatpush1.bf16.xpose.msra.mxu0 0
        %3932 = vmatprep.subr.bf16.mxu0 0
        %3933 = vmatpush1.bf16.xpose.msra.mxu0 0
        %3934 = vmatprep.subr.bf16.mxu0 0
        %3935 = vmatpush1.bf16.xpose.msra.mxu0 0
        %3936 = vmatprep.subr.bf16.mxu0 0
        %3937 = vmatpush1.bf16.xpose.msra.mxu0 0
        %3938 = vmatprep.subr.bf16.mxu0 0
        %3939 = vmatpush1.bf16.xpose.msra.mxu0 0
        %3940 = vmatprep.subr.bf16.mxu0 0
        %3941 = vmatpush1.bf16.xpose.msra.mxu0 0
        %3942 = vmatprep.subr.bf16.mxu0 0
        %3943 = vmatpush1.bf16.xpose.msra.mxu0 0
        %3944 = vmatprep.subr.bf16.mxu0 0
        %3945 = vmatpush1.bf16.xpose.msra.mxu0 0
        %3946 = vmatprep.subr.bf16.mxu0 0
        %3947 = vmatpush1.bf16.xpose.msra.mxu0 0
        %3948 = vmatprep.subr.bf16.mxu0 0
        %3949 = vmatpush1.bf16.xpose.msra.mxu0 0
        %3950 = vmatprep.subr.bf16.mxu0 0
        %3951 = vmatpush1.bf16.xpose.msra.mxu0 0
        %3952 = vmatprep.subr.bf16.mxu0 0
        %3953 = vmatpush1.bf16.xpose.msra.mxu0 0
        %3954 = vmatprep.mubr.bf16.mxu0 0
        %3955 = vmatmul.mubr.bf16.gmra.mrb[0].mxu0 %v3917
        %v3956 = vpop.f32.mrb[0].mxu0
        %v3957 = vadd.f32 0.0, %v3956
        %v3958 = vpop.f32.mrb[0].mxu0
        %v3959 = vpop.f32.mrb[0].mxu0
        %v3960 = vpop.f32.mrb[0].mxu0
        %3961 = vdwg.mxu0
        %3962 = vrot.lane.b32.xlu0 %v3345, 64
        %v3963 = vpop.permute.xlu0 %3962
        %3964 = vrot.lane.b32.xlu0 %v3347, 64
        %v3965 = vpop.permute.xlu0 %3964
        %v3967 = vsel %vm1811, %v3963, 0
        %v3970 = vsel %vm1811, %v3965, 0
        %3972 = vmatprep.subr.bf16.mxu0 0
        %3973 = vmatpush1.bf16.xpose.msra.mxu0 %v3970
        %3974 = vmatprep.subr.bf16.mxu0 0
        %3975 = vmatpush1.bf16.xpose.msra.mxu0 0
        %3976 = vmatprep.subr.bf16.mxu0 0
        %3977 = vmatpush1.bf16.xpose.msra.mxu0 0
        %3978 = vmatprep.subr.bf16.mxu0 0
        %3979 = vmatpush1.bf16.xpose.msra.mxu0 0
        %3980 = vmatprep.subr.bf16.mxu0 0
        %3981 = vmatpush1.bf16.xpose.msra.mxu0 0
        %3982 = vmatprep.subr.bf16.mxu0 0
        %3983 = vmatpush1.bf16.xpose.msra.mxu0 0
        %3984 = vmatprep.subr.bf16.mxu0 0
        %3985 = vmatpush1.bf16.xpose.msra.mxu0 0
        %3986 = vmatprep.subr.bf16.mxu0 0
        %3987 = vmatpush1.bf16.xpose.msra.mxu0 0
        %3988 = vmatprep.subr.bf16.mxu0 0
        %3989 = vmatpush1.bf16.xpose.msra.mxu0 0
        %3990 = vmatprep.subr.bf16.mxu0 0
        %3991 = vmatpush1.bf16.xpose.msra.mxu0 0
        %3992 = vmatprep.subr.bf16.mxu0 0
        %3993 = vmatpush1.bf16.xpose.msra.mxu0 0
        %3994 = vmatprep.subr.bf16.mxu0 0
        %3995 = vmatpush1.bf16.xpose.msra.mxu0 0
        %3996 = vmatprep.subr.bf16.mxu0 0
        %3997 = vmatpush1.bf16.xpose.msra.mxu0 0
        %3998 = vmatprep.subr.bf16.mxu0 0
        %3999 = vmatpush1.bf16.xpose.msra.mxu0 0
        %4000 = vmatprep.subr.bf16.mxu0 0
        %4001 = vmatpush1.bf16.xpose.msra.mxu0 0
        %4002 = vmatprep.subr.bf16.mxu0 0
        %4003 = vmatpush1.bf16.xpose.msra.mxu0 0
        %4004 = vmatprep.mubr.bf16.mxu0 0
        %4005 = vmatmul.mubr.bf16.gmra.mrb[0].mxu0 %v3967
        %v4006 = vpop.f32.mrb[0].mxu0
        %v4007 = vadd.f32 0.0, %v4006
        %v4008 = vpop.f32.mrb[0].mxu0
        %v4009 = vpop.f32.mrb[0].mxu0
        %v4010 = vpop.f32.mrb[0].mxu0
        %4011 = vdwg.mxu0
        %v4012 = vmul.f32 %v3957, 0.17677669
        %v4013 = vmul.f32 %v4007, 0.17677669
        %v4014 = vsel %vm1908, %v4012, -inf
        %4015 = vmax.xlane.f32.xlu0 %v4014
        %v4016 = vpop.xlane.xlu0 %4015
        %v4017 = vsel %vm1908, %v4013, -inf
        %4018 = vmax.xlane.f32.xlu0 %v4017
        %v4019 = vpop.xlane.xlu0 %4018
        %v4020 = vsub.f32 %v4012, %v4016
        %v4021 = vsub.f32 %v4013, %v4019
        %v4022 = vmul.f32 %v4020, 1.442695
        %v4023 = vpow.pop %v4022
        %v4024 = vmul.f32 %v4021, 1.442695
        %v4025 = vpow.pop %v4024
        %v4026 = vsel %vm1908, %v4023, 0.0
        %4027 = vadd.xlane.f32.xlu0 %v4026
        %v4028 = vpop.xlane.xlu0 %4027
        %v4029 = vsel %vm1908, %v4025, 0.0
        %4030 = vadd.xlane.f32.xlu0 %v4029
        %v4031 = vpop.xlane.xlu0 %4030
        %v4032 = vrcp.pop %v4028
        %v4033 = vrcp.pop %v4031
        %v4034 = vmul.f32 %v4023, %v4032
        %v4035 = vmul.f32 %v4025, %v4033
        %v4036 = vpack.c.bf16 %v4034, %v4034
        %v4037 = vpack.c.bf16 %v4035, %v4035
        %4038 = vrot.lane.b32.xlu0 %v3348, 64
        %v4039 = vpop.permute.xlu0 %4038
        %v4041 = vsel %vm1908, %v4036, 0
        %v4044 = vsel %vm1936, %v4039, 0
        %4046 = vmatprep.subr.bf16.mxu0 0
        %4047 = vmatpush1.bf16.msra.mxu0 %v4044
        %4048 = vmatprep.subr.bf16.mxu0 0
        %4049 = vmatpush1.bf16.msra.mxu0 0
        %4050 = vmatprep.subr.bf16.mxu0 0
        %4051 = vmatpush1.bf16.msra.mxu0 0
        %4052 = vmatprep.subr.bf16.mxu0 0
        %4053 = vmatpush1.bf16.msra.mxu0 0
        %4054 = vmatprep.subr.bf16.mxu0 0
        %4055 = vmatpush1.bf16.msra.mxu0 0
        %4056 = vmatprep.subr.bf16.mxu0 0
        %4057 = vmatpush1.bf16.msra.mxu0 0
        %4058 = vmatprep.subr.bf16.mxu0 0
        %4059 = vmatpush1.bf16.msra.mxu0 0
        %4060 = vmatprep.subr.bf16.mxu0 0
        %4061 = vmatpush1.bf16.msra.mxu0 0
        %4062 = vmatprep.subr.bf16.mxu0 0
        %4063 = vmatpush1.bf16.msra.mxu0 0
        %4064 = vmatprep.subr.bf16.mxu0 0
        %4065 = vmatpush1.bf16.msra.mxu0 0
        %4066 = vmatprep.subr.bf16.mxu0 0
        %4067 = vmatpush1.bf16.msra.mxu0 0
        %4068 = vmatprep.subr.bf16.mxu0 0
        %4069 = vmatpush1.bf16.msra.mxu0 0
        %4070 = vmatprep.subr.bf16.mxu0 0
        %4071 = vmatpush1.bf16.msra.mxu0 0
        %4072 = vmatprep.subr.bf16.mxu0 0
        %4073 = vmatpush1.bf16.msra.mxu0 0
        %4074 = vmatprep.subr.bf16.mxu0 0
        %4075 = vmatpush1.bf16.msra.mxu0 0
        %4076 = vmatprep.subr.bf16.mxu0 0
        %4077 = vmatpush1.bf16.msra.mxu0 0
        %4078 = vmatprep.mubr.bf16.mxu0 0
        %4079 = vmatmul.mubr.bf16.gmra.mrb[0].mxu0 %v4041
        %v4080 = vpop.f32.mrb[0].mxu0
        %v4081 = vadd.f32 0.0, %v4080
        %v4082 = vpop.f32.mrb[0].mxu0
        %v4083 = vpop.f32.mrb[0].mxu0
        %v4084 = vpop.f32.mrb[0].mxu0
        %4085 = vdwg.mxu0
        %4086 = vrot.lane.b32.xlu0 %v3349, 64
        %v4087 = vpop.permute.xlu0 %4086
        %v4089 = vsel %vm1908, %v4037, 0
        %v4092 = vsel %vm1936, %v4087, 0
        %4094 = vmatprep.subr.bf16.mxu0 0
        %4095 = vmatpush1.bf16.msra.mxu0 %v4092
        %4096 = vmatprep.subr.bf16.mxu0 0
        %4097 = vmatpush1.bf16.msra.mxu0 0
        %4098 = vmatprep.subr.bf16.mxu0 0
        %4099 = vmatpush1.bf16.msra.mxu0 0
        %4100 = vmatprep.subr.bf16.mxu0 0
        %4101 = vmatpush1.bf16.msra.mxu0 0
        %4102 = vmatprep.subr.bf16.mxu0 0
        %4103 = vmatpush1.bf16.msra.mxu0 0
        %4104 = vmatprep.subr.bf16.mxu0 0
        %4105 = vmatpush1.bf16.msra.mxu0 0
        %4106 = vmatprep.subr.bf16.mxu0 0
        %4107 = vmatpush1.bf16.msra.mxu0 0
        %4108 = vmatprep.subr.bf16.mxu0 0
        %4109 = vmatpush1.bf16.msra.mxu0 0
        %4110 = vmatprep.subr.bf16.mxu0 0
        %4111 = vmatpush1.bf16.msra.mxu0 0
        %4112 = vmatprep.subr.bf16.mxu0 0
        %4113 = vmatpush1.bf16.msra.mxu0 0
        %4114 = vmatprep.subr.bf16.mxu0 0
        %4115 = vmatpush1.bf16.msra.mxu0 0
        %4116 = vmatprep.subr.bf16.mxu0 0
        %4117 = vmatpush1.bf16.msra.mxu0 0
        %4118 = vmatprep.subr.bf16.mxu0 0
        %4119 = vmatpush1.bf16.msra.mxu0 0
        %4120 = vmatprep.subr.bf16.mxu0 0
        %4121 = vmatpush1.bf16.msra.mxu0 0
        %4122 = vmatprep.subr.bf16.mxu0 0
        %4123 = vmatpush1.bf16.msra.mxu0 0
        %4124 = vmatprep.subr.bf16.mxu0 0
        %4125 = vmatpush1.bf16.msra.mxu0 0
        %4126 = vmatprep.mubr.bf16.mxu0 0
        %4127 = vmatmul.mubr.bf16.gmra.mrb[0].mxu0 %v4089
        %v4128 = vpop.f32.mrb[0].mxu0
        %v4129 = vadd.f32 0.0, %v4128
        %v4130 = vpop.f32.mrb[0].mxu0
        %v4131 = vpop.f32.mrb[0].mxu0
        %v4132 = vpop.f32.mrb[0].mxu0
        %4133 = vdwg.mxu0
        %v4134 = vpack.c.bf16 %v4129, %v4081
        %v4139 = vunpack.c.l.b16 %v3045
        %v4140 = vunpack.c.l.b16 %v3046
        %v4141 = vunpack.c.l.b16 %v3047
        %v4142 = vunpack.c.l.b16 %v3048
        %v4143 = vpack.c.b16 %v4140, %v4139
        %v4144 = vpack.c.b16 %v4142, %v4141
        %v4148 = vsel %vm1811, %v4134, 0
        %4150 = vmatprep.subr.bf16.mxu0 0
        %4151 = vmatpush1.bf16.msra.mxu0 %v4143
        %4152 = vmatprep.subr.bf16.mxu0 0
        %4153 = vmatpush1.bf16.msra.mxu0 %v4144
        %4154 = vmatprep.subr.bf16.mxu0 0
        %4155 = vmatpush1.bf16.msra.mxu0 0
        %4156 = vmatprep.subr.bf16.mxu0 0
        %4157 = vmatpush1.bf16.msra.mxu0 0
        %4158 = vmatprep.subr.bf16.mxu0 0
        %4159 = vmatpush1.bf16.msra.mxu0 0
        %4160 = vmatprep.subr.bf16.mxu0 0
        %4161 = vmatpush1.bf16.msra.mxu0 0
        %4162 = vmatprep.subr.bf16.mxu0 0
        %4163 = vmatpush1.bf16.msra.mxu0 0
        %4164 = vmatprep.subr.bf16.mxu0 0
        %4165 = vmatpush1.bf16.msra.mxu0 0
        %4166 = vmatprep.subr.bf16.mxu0 0
        %4167 = vmatpush1.bf16.msra.mxu0 0
        %4168 = vmatprep.subr.bf16.mxu0 0
        %4169 = vmatpush1.bf16.msra.mxu0 0
        %4170 = vmatprep.subr.bf16.mxu0 0
        %4171 = vmatpush1.bf16.msra.mxu0 0
        %4172 = vmatprep.subr.bf16.mxu0 0
        %4173 = vmatpush1.bf16.msra.mxu0 0
        %4174 = vmatprep.subr.bf16.mxu0 0
        %4175 = vmatpush1.bf16.msra.mxu0 0
        %4176 = vmatprep.subr.bf16.mxu0 0
        %4177 = vmatpush1.bf16.msra.mxu0 0
        %4178 = vmatprep.subr.bf16.mxu0 0
        %4179 = vmatpush1.bf16.msra.mxu0 0
        %4180 = vmatprep.subr.bf16.mxu0 0
        %4181 = vmatpush1.bf16.msra.mxu0 0
        %4182 = vmatprep.mubr.bf16.mxu0 0
        %4183 = vmatmul.mubr.bf16.gmra.mrb[0].mxu0 %v4148
        %v4184 = vpop.f32.mrb[0].mxu0
        %v4185 = vadd.f32 0.0, %v4184
        %v4186 = vpop.f32.mrb[0].mxu0
        %v4187 = vpop.f32.mrb[0].mxu0
        %v4188 = vadd.f32 0.0, %v4187
        %v4189 = vpop.f32.mrb[0].mxu0
        %4190 = vdwg.mxu0
        %v4191 = vadd.f32 %v3910, %v4185
        %v4192 = vadd.f32 %v3911, %v4188
        %4193 = vrot.lane.b32.xlu0 %v3344, 32
        %v4194 = vpop.permute.xlu0 %4193
        %4195 = vrot.lane.b32.xlu0 %v3346, 32
        %v4196 = vpop.permute.xlu0 %4195
        %v4198 = vsel %vm1811, %v4194, 0
        %v4201 = vsel %vm1811, %v4196, 0
        %4203 = vmatprep.subr.bf16.mxu0 0
        %4204 = vmatpush1.bf16.xpose.msra.mxu0 %v4201
        %4205 = vmatprep.subr.bf16.mxu0 0
        %4206 = vmatpush1.bf16.xpose.msra.mxu0 0
        %4207 = vmatprep.subr.bf16.mxu0 0
        %4208 = vmatpush1.bf16.xpose.msra.mxu0 0
        %4209 = vmatprep.subr.bf16.mxu0 0
        %4210 = vmatpush1.bf16.xpose.msra.mxu0 0
        %4211 = vmatprep.subr.bf16.mxu0 0
        %4212 = vmatpush1.bf16.xpose.msra.mxu0 0
        %4213 = vmatprep.subr.bf16.mxu0 0
        %4214 = vmatpush1.bf16.xpose.msra.mxu0 0
        %4215 = vmatprep.subr.bf16.mxu0 0
        %4216 = vmatpush1.bf16.xpose.msra.mxu0 0
        %4217 = vmatprep.subr.bf16.mxu0 0
        %4218 = vmatpush1.bf16.xpose.msra.mxu0 0
        %4219 = vmatprep.subr.bf16.mxu0 0
        %4220 = vmatpush1.bf16.xpose.msra.mxu0 0
        %4221 = vmatprep.subr.bf16.mxu0 0
        %4222 = vmatpush1.bf16.xpose.msra.mxu0 0
        %4223 = vmatprep.subr.bf16.mxu0 0
        %4224 = vmatpush1.bf16.xpose.msra.mxu0 0
        %4225 = vmatprep.subr.bf16.mxu0 0
        %4226 = vmatpush1.bf16.xpose.msra.mxu0 0
        %4227 = vmatprep.subr.bf16.mxu0 0
        %4228 = vmatpush1.bf16.xpose.msra.mxu0 0
        %4229 = vmatprep.subr.bf16.mxu0 0
        %4230 = vmatpush1.bf16.xpose.msra.mxu0 0
        %4231 = vmatprep.subr.bf16.mxu0 0
        %4232 = vmatpush1.bf16.xpose.msra.mxu0 0
        %4233 = vmatprep.subr.bf16.mxu0 0
        %4234 = vmatpush1.bf16.xpose.msra.mxu0 0
        %4235 = vmatprep.mubr.bf16.mxu0 0
        %4236 = vmatmul.mubr.bf16.gmra.mrb[0].mxu0 %v4198
        %v4237 = vpop.f32.mrb[0].mxu0
        %v4238 = vadd.f32 0.0, %v4237
        %v4239 = vpop.f32.mrb[0].mxu0
        %v4240 = vpop.f32.mrb[0].mxu0
        %v4241 = vpop.f32.mrb[0].mxu0
        %4242 = vdwg.mxu0
        %4243 = vrot.lane.b32.xlu0 %v3345, 32
        %v4244 = vpop.permute.xlu0 %4243
        %4245 = vrot.lane.b32.xlu0 %v3347, 32
        %v4246 = vpop.permute.xlu0 %4245
        %v4248 = vsel %vm1811, %v4244, 0
        %v4251 = vsel %vm1811, %v4246, 0
        %4253 = vmatprep.subr.bf16.mxu0 0
        %4254 = vmatpush1.bf16.xpose.msra.mxu0 %v4251
        %4255 = vmatprep.subr.bf16.mxu0 0
        %4256 = vmatpush1.bf16.xpose.msra.mxu0 0
        %4257 = vmatprep.subr.bf16.mxu0 0
        %4258 = vmatpush1.bf16.xpose.msra.mxu0 0
        %4259 = vmatprep.subr.bf16.mxu0 0
        %4260 = vmatpush1.bf16.xpose.msra.mxu0 0
        %4261 = vmatprep.subr.bf16.mxu0 0
        %4262 = vmatpush1.bf16.xpose.msra.mxu0 0
        %4263 = vmatprep.subr.bf16.mxu0 0
        %4264 = vmatpush1.bf16.xpose.msra.mxu0 0
        %4265 = vmatprep.subr.bf16.mxu0 0
        %4266 = vmatpush1.bf16.xpose.msra.mxu0 0
        %4267 = vmatprep.subr.bf16.mxu0 0
        %4268 = vmatpush1.bf16.xpose.msra.mxu0 0
        %4269 = vmatprep.subr.bf16.mxu0 0
        %4270 = vmatpush1.bf16.xpose.msra.mxu0 0
        %4271 = vmatprep.subr.bf16.mxu0 0
        %4272 = vmatpush1.bf16.xpose.msra.mxu0 0
        %4273 = vmatprep.subr.bf16.mxu0 0
        %4274 = vmatpush1.bf16.xpose.msra.mxu0 0
        %4275 = vmatprep.subr.bf16.mxu0 0
        %4276 = vmatpush1.bf16.xpose.msra.mxu0 0
        %4277 = vmatprep.subr.bf16.mxu0 0
        %4278 = vmatpush1.bf16.xpose.msra.mxu0 0
        %4279 = vmatprep.subr.bf16.mxu0 0
        %4280 = vmatpush1.bf16.xpose.msra.mxu0 0
        %4281 = vmatprep.subr.bf16.mxu0 0
        %4282 = vmatpush1.bf16.xpose.msra.mxu0 0
        %4283 = vmatprep.subr.bf16.mxu0 0
        %4284 = vmatpush1.bf16.xpose.msra.mxu0 0
        %4285 = vmatprep.mubr.bf16.mxu0 0
        %4286 = vmatmul.mubr.bf16.gmra.mrb[0].mxu0 %v4248
        %v4287 = vpop.f32.mrb[0].mxu0
        %v4288 = vadd.f32 0.0, %v4287
        %v4289 = vpop.f32.mrb[0].mxu0
        %v4290 = vpop.f32.mrb[0].mxu0
        %v4291 = vpop.f32.mrb[0].mxu0
        %4292 = vdwg.mxu0
        %v4293 = vmul.f32 %v4238, 0.17677669
        %v4294 = vmul.f32 %v4288, 0.17677669
        %v4295 = vsel %vm1908, %v4293, -inf
        %4296 = vmax.xlane.f32.xlu0 %v4295
        %v4297 = vpop.xlane.xlu0 %4296
        %v4298 = vsel %vm1908, %v4294, -inf
        %4299 = vmax.xlane.f32.xlu0 %v4298
        %v4300 = vpop.xlane.xlu0 %4299
        %v4301 = vsub.f32 %v4293, %v4297
        %v4302 = vsub.f32 %v4294, %v4300
        %v4303 = vmul.f32 %v4301, 1.442695
        %v4304 = vpow.pop %v4303
        %v4305 = vmul.f32 %v4302, 1.442695
        %v4306 = vpow.pop %v4305
        %v4307 = vsel %vm1908, %v4304, 0.0
        %4308 = vadd.xlane.f32.xlu0 %v4307
        %v4309 = vpop.xlane.xlu0 %4308
        %v4310 = vsel %vm1908, %v4306, 0.0
        %4311 = vadd.xlane.f32.xlu0 %v4310
        %v4312 = vpop.xlane.xlu0 %4311
        %v4313 = vrcp.pop %v4309
        %v4314 = vrcp.pop %v4312
        %v4315 = vmul.f32 %v4304, %v4313
        %v4316 = vmul.f32 %v4306, %v4314
        %v4317 = vpack.c.bf16 %v4315, %v4315
        %v4318 = vpack.c.bf16 %v4316, %v4316
        %4319 = vrot.lane.b32.xlu0 %v3348, 32
        %v4320 = vpop.permute.xlu0 %4319
        %v4322 = vsel %vm1908, %v4317, 0
        %v4325 = vsel %vm1936, %v4320, 0
        %4327 = vmatprep.subr.bf16.mxu0 0
        %4328 = vmatpush1.bf16.msra.mxu0 %v4325
        %4329 = vmatprep.subr.bf16.mxu0 0
        %4330 = vmatpush1.bf16.msra.mxu0 0
        %4331 = vmatprep.subr.bf16.mxu0 0
        %4332 = vmatpush1.bf16.msra.mxu0 0
        %4333 = vmatprep.subr.bf16.mxu0 0
        %4334 = vmatpush1.bf16.msra.mxu0 0
        %4335 = vmatprep.subr.bf16.mxu0 0
        %4336 = vmatpush1.bf16.msra.mxu0 0
        %4337 = vmatprep.subr.bf16.mxu0 0
        %4338 = vmatpush1.bf16.msra.mxu0 0
        %4339 = vmatprep.subr.bf16.mxu0 0
        %4340 = vmatpush1.bf16.msra.mxu0 0
        %4341 = vmatprep.subr.bf16.mxu0 0
        %4342 = vmatpush1.bf16.msra.mxu0 0
        %4343 = vmatprep.subr.bf16.mxu0 0
        %4344 = vmatpush1.bf16.msra.mxu0 0
        %4345 = vmatprep.subr.bf16.mxu0 0
        %4346 = vmatpush1.bf16.msra.mxu0 0
        %4347 = vmatprep.subr.bf16.mxu0 0
        %4348 = vmatpush1.bf16.msra.mxu0 0
        %4349 = vmatprep.subr.bf16.mxu0 0
        %4350 = vmatpush1.bf16.msra.mxu0 0
        %4351 = vmatprep.subr.bf16.mxu0 0
        %4352 = vmatpush1.bf16.msra.mxu0 0
        %4353 = vmatprep.subr.bf16.mxu0 0
        %4354 = vmatpush1.bf16.msra.mxu0 0
        %4355 = vmatprep.subr.bf16.mxu0 0
        %4356 = vmatpush1.bf16.msra.mxu0 0
        %4357 = vmatprep.subr.bf16.mxu0 0
        %4358 = vmatpush1.bf16.msra.mxu0 0
        %4359 = vmatprep.mubr.bf16.mxu0 0
        %4360 = vmatmul.mubr.bf16.gmra.mrb[0].mxu0 %v4322
        %v4361 = vpop.f32.mrb[0].mxu0
        %v4362 = vadd.f32 0.0, %v4361
        %v4363 = vpop.f32.mrb[0].mxu0
        %v4364 = vpop.f32.mrb[0].mxu0
        %v4365 = vpop.f32.mrb[0].mxu0
        %4366 = vdwg.mxu0
        %4367 = vrot.lane.b32.xlu0 %v3349, 32
        %v4368 = vpop.permute.xlu0 %4367
        %v4370 = vsel %vm1908, %v4318, 0
        %v4373 = vsel %vm1936, %v4368, 0
        %4375 = vmatprep.subr.bf16.mxu0 0
        %4376 = vmatpush1.bf16.msra.mxu0 %v4373
        %4377 = vmatprep.subr.bf16.mxu0 0
        %4378 = vmatpush1.bf16.msra.mxu0 0
        %4379 = vmatprep.subr.bf16.mxu0 0
        %4380 = vmatpush1.bf16.msra.mxu0 0
        %4381 = vmatprep.subr.bf16.mxu0 0
        %4382 = vmatpush1.bf16.msra.mxu0 0
        %4383 = vmatprep.subr.bf16.mxu0 0
        %4384 = vmatpush1.bf16.msra.mxu0 0
        %4385 = vmatprep.subr.bf16.mxu0 0
        %4386 = vmatpush1.bf16.msra.mxu0 0
        %4387 = vmatprep.subr.bf16.mxu0 0
        %4388 = vmatpush1.bf16.msra.mxu0 0
        %4389 = vmatprep.subr.bf16.mxu0 0
        %4390 = vmatpush1.bf16.msra.mxu0 0
        %4391 = vmatprep.subr.bf16.mxu0 0
        %4392 = vmatpush1.bf16.msra.mxu0 0
        %4393 = vmatprep.subr.bf16.mxu0 0
        %4394 = vmatpush1.bf16.msra.mxu0 0
        %4395 = vmatprep.subr.bf16.mxu0 0
        %4396 = vmatpush1.bf16.msra.mxu0 0
        %4397 = vmatprep.subr.bf16.mxu0 0
        %4398 = vmatpush1.bf16.msra.mxu0 0
        %4399 = vmatprep.subr.bf16.mxu0 0
        %4400 = vmatpush1.bf16.msra.mxu0 0
        %4401 = vmatprep.subr.bf16.mxu0 0
        %4402 = vmatpush1.bf16.msra.mxu0 0
        %4403 = vmatprep.subr.bf16.mxu0 0
        %4404 = vmatpush1.bf16.msra.mxu0 0
        %4405 = vmatprep.subr.bf16.mxu0 0
        %4406 = vmatpush1.bf16.msra.mxu0 0
        %4407 = vmatprep.mubr.bf16.mxu0 0
        %4408 = vmatmul.mubr.bf16.gmra.mrb[0].mxu0 %v4370
        %v4409 = vpop.f32.mrb[0].mxu0
        %v4410 = vadd.f32 0.0, %v4409
        %v4411 = vpop.f32.mrb[0].mxu0
        %v4412 = vpop.f32.mrb[0].mxu0
        %v4413 = vpop.f32.mrb[0].mxu0
        %4414 = vdwg.mxu0
        %v4415 = vpack.c.bf16 %v4410, %v4362
        %v4420 = vunpack.c.l.b16 %v3049
        %v4421 = vunpack.c.l.b16 %v3050
        %v4422 = vunpack.c.l.b16 %v3051
        %v4423 = vunpack.c.l.b16 %v3052
        %v4424 = vpack.c.b16 %v4421, %v4420
        %v4425 = vpack.c.b16 %v4423, %v4422
        %v4429 = vsel %vm1811, %v4415, 0
        %4431 = vmatprep.subr.bf16.mxu0 0
        %4432 = vmatpush1.bf16.msra.mxu0 %v4424
        %4433 = vmatprep.subr.bf16.mxu0 0
        %4434 = vmatpush1.bf16.msra.mxu0 %v4425
        %4435 = vmatprep.subr.bf16.mxu0 0
        %4436 = vmatpush1.bf16.msra.mxu0 0
        %4437 = vmatprep.subr.bf16.mxu0 0
        %4438 = vmatpush1.bf16.msra.mxu0 0
        %4439 = vmatprep.subr.bf16.mxu0 0
        %4440 = vmatpush1.bf16.msra.mxu0 0
        %4441 = vmatprep.subr.bf16.mxu0 0
        %4442 = vmatpush1.bf16.msra.mxu0 0
        %4443 = vmatprep.subr.bf16.mxu0 0
        %4444 = vmatpush1.bf16.msra.mxu0 0
        %4445 = vmatprep.subr.bf16.mxu0 0
        %4446 = vmatpush1.bf16.msra.mxu0 0
        %4447 = vmatprep.subr.bf16.mxu0 0
        %4448 = vmatpush1.bf16.msra.mxu0 0
        %4449 = vmatprep.subr.bf16.mxu0 0
        %4450 = vmatpush1.bf16.msra.mxu0 0
        %4451 = vmatprep.subr.bf16.mxu0 0
        %4452 = vmatpush1.bf16.msra.mxu0 0
        %4453 = vmatprep.subr.bf16.mxu0 0
        %4454 = vmatpush1.bf16.msra.mxu0 0
        %4455 = vmatprep.subr.bf16.mxu0 0
        %4456 = vmatpush1.bf16.msra.mxu0 0
        %4457 = vmatprep.subr.bf16.mxu0 0
        %4458 = vmatpush1.bf16.msra.mxu0 0
        %4459 = vmatprep.subr.bf16.mxu0 0
        %4460 = vmatpush1.bf16.msra.mxu0 0
        %4461 = vmatprep.subr.bf16.mxu0 0
        %4462 = vmatpush1.bf16.msra.mxu0 0
        %4463 = vmatprep.mubr.bf16.mxu0 0
        %4464 = vmatmul.mubr.bf16.gmra.mrb[0].mxu0 %v4429
        %v4465 = vpop.f32.mrb[0].mxu0
        %v4466 = vadd.f32 0.0, %v4465
        %v4467 = vpop.f32.mrb[0].mxu0
        %v4468 = vpop.f32.mrb[0].mxu0
        %v4469 = vadd.f32 0.0, %v4468
        %v4470 = vpop.f32.mrb[0].mxu0
        %4471 = vdwg.mxu0
        %v4472 = vadd.f32 %v4191, %v4466
        %v4473 = vadd.f32 %v4192, %v4469
        %v4474 = vadd.f32 %v2987, %v4472
        %v4475 = vadd.f32 %v2988, %v4473
        %v4476 = vld [vmem:[%s1420] sm:$0x1]
        %v4477 = vld [vmem:[%s1423] sm:$0x1]
        %4478 = vadd.xlane.f32.xlu0 %v4474
        %v4479 = vpop.xlane.xlu0 %4478
        %4480 = vadd.xlane.f32.xlu0 %v4475
        %v4481 = vpop.xlane.xlu0 %4480
        %v4482 = vmul.f32 %v4479, %v2954
        %v4483 = vmul.f32 %v4481, %v2954
        %v4484 = vsub.f32 %v4474, %v4482
        %v4485 = vsub.f32 %v4475, %v4483
        %v4486 = vmul.f32 %v4484, %v4484
        %v4487 = vmul.f32 %v4485, %v4485
        %4488 = vadd.xlane.f32.xlu0 %v4486
        %v4489 = vpop.xlane.xlu0 %4488
        %4490 = vadd.xlane.f32.xlu0 %v4487
        %v4491 = vpop.xlane.xlu0 %4490
        %v4492 = vmul.f32 %v4489, %v2954
        %v4493 = vmul.f32 %v4491, %v2954
        %v4494 = vadd.f32 %v4492, 1e-05
        %v4495 = vadd.f32 %v4493, 1e-05
        %v4496 = vrsqrt.pop %v4494
        %v4497 = vrsqrt.pop %v4495
        %v4498 = vmul.f32 %v4484, %v4496
        %v4499 = vmul.f32 %v4485, %v4497
        %v4501 = vlaneseq
        %v4502 = vshrl.u32 %v4501, 7
        %v4503 = vsub.s32 0, %v4502
        %v4504 = vrot.slane %v4476, %v4503
        %v4506 = vmul.f32 %v4498, %v4504
        %v4507 = vmul.f32 %v4499, %v4504
        %v4509 = vlaneseq
        %v4510 = vshrl.u32 %v4509, 7
        %v4511 = vsub.s32 0, %v4510
        %v4512 = vrot.slane %v4477, %v4511
        %v4514 = vadd.f32 %v4506, %v4512
        %v4515 = vadd.f32 %v4507, %v4512
        %v4516 = vpack.c.bf16 %v4515, %v4514
        %v4517 = vld [vmem:[%s1217] sm:$0xff]
        %v4518 = vld [vmem:[%s1217 + $0x8] sm:$0xff]
        %v4519 = vld [vmem:[%s1217 + $0x10] sm:$0xff]
        %v4520 = vld [vmem:[%s1217 + $0x18] sm:$0xff]
        %v4521 = vld [vmem:[%s1217 + $0x20] sm:$0xff]
        %v4522 = vld [vmem:[%s1217 + $0x28] sm:$0xff]
        %v4523 = vld [vmem:[%s1217 + $0x30] sm:$0xff]
        %v4524 = vld [vmem:[%s1217 + $0x38] sm:$0xff]
        %v4525 = vld [vmem:[%s1217 + $0x40] sm:$0xff]
        %v4526 = vld [vmem:[%s1217 + $0x48] sm:$0xff]
        %v4527 = vld [vmem:[%s1217 + $0x50] sm:$0xff]
        %v4528 = vld [vmem:[%s1217 + $0x58] sm:$0xff]
        %v4529 = vld [vmem:[%s1217 + $0x60] sm:$0xff]
        %v4530 = vld [vmem:[%s1217 + $0x68] sm:$0xff]
        %v4531 = vld [vmem:[%s1217 + $0x70] sm:$0xff]
        %v4532 = vld [vmem:[%s1217 + $0x78] sm:$0xff]
        %v4533 = vld [vmem:[%s1433] sm:$0x3]
        %v4535 = vlaneseq
        %v4536 = vshrl.u32 %v4535, 7
        %v4537 = vsub.s32 0, %v4536
        %v4538 = vrot.slane %v4533, %v4537
        %v4539 = vlaneseq
        %v4540 = vshrl.u32 %v4539, 7
        %v4541 = vsub.s32 1, %v4540
        %v4542 = vrot.slane %v4533, %v4541
        %v4561 = vunpack.c.l.b16 %v4517
        %v4562 = vunpack.c.h.b16 %v4517
        %v4563 = vunpack.c.l.b16 %v4518
        %v4564 = vunpack.c.h.b16 %v4518
        %v4565 = vunpack.c.l.b16 %v4519
        %v4566 = vunpack.c.h.b16 %v4519
        %v4567 = vunpack.c.l.b16 %v4520
        %v4568 = vunpack.c.h.b16 %v4520
        %v4569 = vunpack.c.l.b16 %v4521
        %v4570 = vunpack.c.h.b16 %v4521
        %v4571 = vunpack.c.l.b16 %v4522
        %v4572 = vunpack.c.h.b16 %v4522
        %v4573 = vunpack.c.l.b16 %v4523
        %v4574 = vunpack.c.h.b16 %v4523
        %v4575 = vunpack.c.l.b16 %v4524
        %v4576 = vunpack.c.h.b16 %v4524
        %v4577 = vunpack.c.l.b16 %v4525
        %v4578 = vunpack.c.h.b16 %v4525
        %v4579 = vunpack.c.l.b16 %v4526
        %v4580 = vunpack.c.h.b16 %v4526
        %v4581 = vunpack.c.l.b16 %v4527
        %v4582 = vunpack.c.h.b16 %v4527
        %v4583 = vunpack.c.l.b16 %v4528
        %v4584 = vunpack.c.h.b16 %v4528
        %v4585 = vunpack.c.l.b16 %v4529
        %v4586 = vunpack.c.h.b16 %v4529
        %v4587 = vunpack.c.l.b16 %v4530
        %v4588 = vunpack.c.h.b16 %v4530
        %v4589 = vunpack.c.l.b16 %v4531
        %v4590 = vunpack.c.h.b16 %v4531
        %v4591 = vunpack.c.l.b16 %v4532
        %v4592 = vunpack.c.h.b16 %v4532
        %v4593 = vpack.c.b16 %v4563, %v4561
        %v4594 = vpack.c.b16 %v4564, %v4562
        %v4595 = vpack.c.b16 %v4567, %v4565
        %v4596 = vpack.c.b16 %v4568, %v4566
        %v4597 = vpack.c.b16 %v4571, %v4569
        %v4598 = vpack.c.b16 %v4572, %v4570
        %v4599 = vpack.c.b16 %v4575, %v4573
        %v4600 = vpack.c.b16 %v4576, %v4574
        %v4601 = vpack.c.b16 %v4579, %v4577
        %v4602 = vpack.c.b16 %v4580, %v4578
        %v4603 = vpack.c.b16 %v4583, %v4581
        %v4604 = vpack.c.b16 %v4584, %v4582
        %v4605 = vpack.c.b16 %v4587, %v4585
        %v4606 = vpack.c.b16 %v4588, %v4586
        %v4607 = vpack.c.b16 %v4591, %v4589
        %v4608 = vpack.c.b16 %v4592, %v4590
        %4625 = vmatprep.subr.bf16.mxu0 %v4594
        %4626 = vmatpush1.bf16.msra.mxu0 %v4593
        %4627 = vmatprep.subr.bf16.mxu0 %v4596
        %4628 = vmatpush1.bf16.msra.mxu0 %v4595
        %4629 = vmatprep.subr.bf16.mxu0 %v4598
        %4630 = vmatpush1.bf16.msra.mxu0 %v4597
        %4631 = vmatprep.subr.bf16.mxu0 %v4600
        %4632 = vmatpush1.bf16.msra.mxu0 %v4599
        %4633 = vmatprep.subr.bf16.mxu0 %v4602
        %4634 = vmatpush1.bf16.msra.mxu0 %v4601
        %4635 = vmatprep.subr.bf16.mxu0 %v4604
        %4636 = vmatpush1.bf16.msra.mxu0 %v4603
        %4637 = vmatprep.subr.bf16.mxu0 %v4606
        %4638 = vmatpush1.bf16.msra.mxu0 %v4605
        %4639 = vmatprep.subr.bf16.mxu0 %v4608
        %4640 = vmatpush1.bf16.msra.mxu0 %v4607
        %4641 = vmatprep.subr.bf16.mxu0 0
        %4642 = vmatpush1.bf16.msra.mxu0 0
        %4643 = vmatprep.subr.bf16.mxu0 0
        %4644 = vmatpush1.bf16.msra.mxu0 0
        %4645 = vmatprep.subr.bf16.mxu0 0
        %4646 = vmatpush1.bf16.msra.mxu0 0
        %4647 = vmatprep.subr.bf16.mxu0 0
        %4648 = vmatpush1.bf16.msra.mxu0 0
        %4649 = vmatprep.subr.bf16.mxu0 0
        %4650 = vmatpush1.bf16.msra.mxu0 0
        %4651 = vmatprep.subr.bf16.mxu0 0
        %4652 = vmatpush1.bf16.msra.mxu0 0
        %4653 = vmatprep.subr.bf16.mxu0 0
        %4654 = vmatpush1.bf16.msra.mxu0 0
        %4655 = vmatprep.subr.bf16.mxu0 0
        %4656 = vmatpush1.bf16.msra.mxu0 0
        %4657 = vmatprep.mubr.bf16.mxu0 0
        %4658 = vmatmul.mubr.bf16.gmra.mrb[0].mxu0 %v4516
        %v4659 = vpop.f32.mrb[0].mxu0
        %v4660 = vadd.f32 %v4538, %v4659
        %v4661 = vpop.f32.mrb[0].mxu0
        %v4662 = vadd.f32 %v4542, %v4661
        %v4663 = vpop.f32.mrb[0].mxu0
        %v4664 = vadd.f32 %v4538, %v4663
        %v4665 = vpop.f32.mrb[0].mxu0
        %v4666 = vadd.f32 %v4542, %v4665
        %4667 = vdwg.mxu0
        %v4668 = vmax.f32 %v4660, 0.0
        %v4669 = vmax.f32 %v4662, 0.0
        %v4670 = vmax.f32 %v4664, 0.0
        %v4671 = vmax.f32 %v4666, 0.0
        %v4672 = vpack.c.bf16 %v4670, %v4668
        %v4673 = vpack.c.bf16 %v4671, %v4669
        %v4674 = vld [vmem:[%s1226] sm:$0xf]
        %v4675 = vld [vmem:[%s1226 + $0x4] sm:$0xf]
        %v4676 = vld [vmem:[%s1226 + $0x8] sm:$0xf]
        %v4677 = vld [vmem:[%s1226 + $0xc] sm:$0xf]
        %v4678 = vld [vmem:[%s1226 + $0x10] sm:$0xf]
        %v4679 = vld [vmem:[%s1226 + $0x14] sm:$0xf]
        %v4680 = vld [vmem:[%s1226 + $0x18] sm:$0xf]
        %v4681 = vld [vmem:[%s1226 + $0x1c] sm:$0xf]
        %v4682 = vld [vmem:[%s1226 + $0x20] sm:$0xf]
        %v4683 = vld [vmem:[%s1226 + $0x24] sm:$0xf]
        %v4684 = vld [vmem:[%s1226 + $0x28] sm:$0xf]
        %v4685 = vld [vmem:[%s1226 + $0x2c] sm:$0xf]
        %v4686 = vld [vmem:[%s1226 + $0x30] sm:$0xf]
        %v4687 = vld [vmem:[%s1226 + $0x34] sm:$0xf]
        %v4688 = vld [vmem:[%s1226 + $0x38] sm:$0xf]
        %v4689 = vld [vmem:[%s1226 + $0x3c] sm:$0xf]
        %v4690 = vld [vmem:[%s1226 + $0x40] sm:$0xf]
        %v4691 = vld [vmem:[%s1226 + $0x44] sm:$0xf]
        %v4692 = vld [vmem:[%s1226 + $0x48] sm:$0xf]
        %v4693 = vld [vmem:[%s1226 + $0x4c] sm:$0xf]
        %v4694 = vld [vmem:[%s1226 + $0x50] sm:$0xf]
        %v4695 = vld [vmem:[%s1226 + $0x54] sm:$0xf]
        %v4696 = vld [vmem:[%s1226 + $0x58] sm:$0xf]
        %v4697 = vld [vmem:[%s1226 + $0x5c] sm:$0xf]
        %v4698 = vld [vmem:[%s1226 + $0x60] sm:$0xf]
        %v4699 = vld [vmem:[%s1226 + $0x64] sm:$0xf]
        %v4700 = vld [vmem:[%s1226 + $0x68] sm:$0xf]
        %v4701 = vld [vmem:[%s1226 + $0x6c] sm:$0xf]
        %v4702 = vld [vmem:[%s1226 + $0x70] sm:$0xf]
        %v4703 = vld [vmem:[%s1226 + $0x74] sm:$0xf]
        %v4704 = vld [vmem:[%s1226 + $0x78] sm:$0xf]
        %v4705 = vld [vmem:[%s1226 + $0x7c] sm:$0xf]
        %v4706 = vld [vmem:[%s1436] sm:$0x1]
        %v4708 = vlaneseq
        %v4709 = vshrl.u32 %v4708, 7
        %v4710 = vsub.s32 0, %v4709
        %v4711 = vrot.slane %v4706, %v4710
        %v4745 = vunpack.c.l.b16 %v4674
        %v4746 = vunpack.c.l.b16 %v4675
        %v4747 = vunpack.c.l.b16 %v4676
        %v4748 = vunpack.c.l.b16 %v4677
        %v4749 = vunpack.c.l.b16 %v4678
        %v4750 = vunpack.c.l.b16 %v4679
        %v4751 = vunpack.c.l.b16 %v4680
        %v4752 = vunpack.c.l.b16 %v4681
        %v4753 = vunpack.c.l.b16 %v4682
        %v4754 = vunpack.c.l.b16 %v4683
        %v4755 = vunpack.c.l.b16 %v4684
        %v4756 = vunpack.c.l.b16 %v4685
        %v4757 = vunpack.c.l.b16 %v4686
        %v4758 = vunpack.c.l.b16 %v4687
        %v4759 = vunpack.c.l.b16 %v4688
        %v4760 = vunpack.c.l.b16 %v4689
        %v4761 = vunpack.c.l.b16 %v4690
        %v4762 = vunpack.c.l.b16 %v4691
        %v4763 = vunpack.c.l.b16 %v4692
        %v4764 = vunpack.c.l.b16 %v4693
        %v4765 = vunpack.c.l.b16 %v4694
        %v4766 = vunpack.c.l.b16 %v4695
        %v4767 = vunpack.c.l.b16 %v4696
        %v4768 = vunpack.c.l.b16 %v4697
        %v4769 = vunpack.c.l.b16 %v4698
        %v4770 = vunpack.c.l.b16 %v4699
        %v4771 = vunpack.c.l.b16 %v4700
        %v4772 = vunpack.c.l.b16 %v4701
        %v4773 = vunpack.c.l.b16 %v4702
        %v4774 = vunpack.c.l.b16 %v4703
        %v4775 = vunpack.c.l.b16 %v4704
        %v4776 = vunpack.c.l.b16 %v4705
        %v4777 = vpack.c.b16 %v4746, %v4745
        %v4778 = vpack.c.b16 %v4748, %v4747
        %v4779 = vpack.c.b16 %v4750, %v4749
        %v4780 = vpack.c.b16 %v4752, %v4751
        %v4781 = vpack.c.b16 %v4754, %v4753
        %v4782 = vpack.c.b16 %v4756, %v4755
        %v4783 = vpack.c.b16 %v4758, %v4757
        %v4784 = vpack.c.b16 %v4760, %v4759
        %v4785 = vpack.c.b16 %v4762, %v4761
        %v4786 = vpack.c.b16 %v4764, %v4763
        %v4787 = vpack.c.b16 %v4766, %v4765
        %v4788 = vpack.c.b16 %v4768, %v4767
        %v4789 = vpack.c.b16 %v4770, %v4769
        %v4790 = vpack.c.b16 %v4772, %v4771
        %v4791 = vpack.c.b16 %v4774, %v4773
        %v4792 = vpack.c.b16 %v4776, %v4775
        %4809 = vmatprep.subr.bf16.mxu0 0
        %4810 = vmatpush1.bf16.msra.mxu0 %v4777
        %4811 = vmatprep.subr.bf16.mxu0 0
        %4812 = vmatpush1.bf16.msra.mxu0 %v4778
        %4813 = vmatprep.subr.bf16.mxu0 0
        %4814 = vmatpush1.bf16.msra.mxu0 %v4779
        %4815 = vmatprep.subr.bf16.mxu0 0
        %4816 = vmatpush1.bf16.msra.mxu0 %v4780
        %4817 = vmatprep.subr.bf16.mxu0 0
        %4818 = vmatpush1.bf16.msra.mxu0 %v4781
        %4819 = vmatprep.subr.bf16.mxu0 0
        %4820 = vmatpush1.bf16.msra.mxu0 %v4782
        %4821 = vmatprep.subr.bf16.mxu0 0
        %4822 = vmatpush1.bf16.msra.mxu0 %v4783
        %4823 = vmatprep.subr.bf16.mxu0 0
        %4824 = vmatpush1.bf16.msra.mxu0 %v4784
        %4825 = vmatprep.subr.bf16.mxu0 0
        %4826 = vmatpush1.bf16.msra.mxu0 %v4785
        %4827 = vmatprep.subr.bf16.mxu0 0
        %4828 = vmatpush1.bf16.msra.mxu0 %v4786
        %4829 = vmatprep.subr.bf16.mxu0 0
        %4830 = vmatpush1.bf16.msra.mxu0 %v4787
        %4831 = vmatprep.subr.bf16.mxu0 0
        %4832 = vmatpush1.bf16.msra.mxu0 %v4788
        %4833 = vmatprep.subr.bf16.mxu0 0
        %4834 = vmatpush1.bf16.msra.mxu0 %v4789
        %4835 = vmatprep.subr.bf16.mxu0 0
        %4836 = vmatpush1.bf16.msra.mxu0 %v4790
        %4837 = vmatprep.subr.bf16.mxu0 0
        %4838 = vmatpush1.bf16.msra.mxu0 %v4791
        %4839 = vmatprep.subr.bf16.mxu0 0
        %4840 = vmatpush1.bf16.msra.mxu0 %v4792
        %4841 = vmatprep.mubr.bf16.mxu0 %v4673
        %4842 = vmatmul.mubr.bf16.gmra.mrb[0].mxu0 %v4672
        %v4843 = vpop.f32.mrb[0].mxu0
        %v4844 = vadd.f32 %v4711, %v4843
        %v4845 = vpop.f32.mrb[0].mxu0
        %v4846 = vpop.f32.mrb[0].mxu0
        %v4847 = vadd.f32 %v4711, %v4846
        %v4848 = vpop.f32.mrb[0].mxu0
        %4849 = vdwg.mxu0
        %v4850 = vadd.f32 %v4514, %v4844
        %v4851 = vadd.f32 %v4515, %v4847
        %v4852 = vld [vmem:[%s1426] sm:$0x1]
        %v4853 = vld [vmem:[%s1429] sm:$0x1]
        %4854 = vadd.xlane.f32.xlu0 %v4850
        %v4855 = vpop.xlane.xlu0 %4854
        %4856 = vadd.xlane.f32.xlu0 %v4851
        %v4857 = vpop.xlane.xlu0 %4856
        %v4858 = vmul.f32 %v4855, %v2954
        %v4859 = vmul.f32 %v4857, %v2954
        %v4860 = vsub.f32 %v4850, %v4858
        %v4861 = vsub.f32 %v4851, %v4859
        %v4862 = vmul.f32 %v4860, %v4860
        %v4863 = vmul.f32 %v4861, %v4861
        %4864 = vadd.xlane.f32.xlu0 %v4862
        %v4865 = vpop.xlane.xlu0 %4864
        %4866 = vadd.xlane.f32.xlu0 %v4863
        %v4867 = vpop.xlane.xlu0 %4866
        %v4868 = vmul.f32 %v4865, %v2954
        %v4869 = vmul.f32 %v4867, %v2954
        %v4870 = vadd.f32 %v4868, 1e-05
        %v4871 = vadd.f32 %v4869, 1e-05
        %v4872 = vrsqrt.pop %v4870
        %v4873 = vrsqrt.pop %v4871
        %v4874 = vmul.f32 %v4860, %v4872
        %v4875 = vmul.f32 %v4861, %v4873
        %v4877 = vlaneseq
        %v4878 = vshrl.u32 %v4877, 7
        %v4879 = vsub.s32 0, %v4878
        %v4880 = vrot.slane %v4852, %v4879
        %v4882 = vmul.f32 %v4874, %v4880
        %v4883 = vmul.f32 %v4875, %v4880
        %v4885 = vlaneseq
        %v4886 = vshrl.u32 %v4885, 7
        %v4887 = vsub.s32 0, %v4886
        %v4888 = vrot.slane %v4853, %v4887
        %v4890 = vadd.f32 %v4882, %v4888
        %v4891 = vadd.f32 %v4883, %v4888
        %4892 = vst [vmem:[#allocation17] sm:$0xff] %v4890
        %4893 = vst [vmem:[#allocation17 + $0x8] sm:$0xff] %v4891
        // Predicated region
        $region185: #{tpu_custom_call.1} parent=131 // pred_check
          %p4894 = pneg %p773
        $region186: #{tpu_custom_call.1} parent=131 // pred_check_branch
          %4896 = sbr.rel (%p4894) target = $region188
        $region187: #{tpu_custom_call.1} parent=131 // pred_region
          %s4898 = ssub.s32 256, 256
          %4899 = vsyncadd [#allocation4], %s4898
          %s4900 = sshll.u32 [#allocation17], 4
          %s4901 = int_to_ptr.vmem [resolvable:$true] %s4900
          %4906 = dma.vmem_to_hbm [thread:$0]  %s4901, 256, %s28, [#allocation4], 128, 128, 8
        $region188: #{tpu_custom_call.1} parent=131 // pred_fallthru
          _
        // Predicated region
        $region189: #{tpu_custom_call.1} parent=131 // pred_check
          %p4907 = pneg %p773
        $region190: #{tpu_custom_call.1} parent=131 // pred_check_branch
          %4909 = sbr.rel (%p4907) target = $region192
        $region191: #{tpu_custom_call.1} parent=131 // pred_region
          %4910 = dma.done [#allocation4], 256
        $region192: #{tpu_custom_call.1} parent=131 // pred_fallthru
          _
      $region132: #{tpu_custom_call.1} parent=5 // pred_fallthru
        _
      %p4911 = scmp.le.s32.totalorder 2, %s37
      // Predicated region
      $region193: #{tpu_custom_call.1} parent=5 // pred_check
        %p4912 = pneg %p4911
      $region194: #{tpu_custom_call.1} parent=5 // pred_check_branch
        %4914 = sbr.rel (%p4912) target = $region196
      $region195: #{tpu_custom_call.1} parent=5 // pred_region
        %s4915 = ssub.s32 %s37, 2
      $region196: #{tpu_custom_call.1} parent=5 // pred_fallthru
        _
    $region6: #{tpu_custom_call.1} parent=1 // loop_footer
      %s41 = sadd.s32 1, %s37
    $region7: #{tpu_custom_call.1} parent=1 // loop_footer_branch
      %36 = sbr.rel target = $region3
    $region8: #{tpu_custom_call.1} parent=1 // loop_exit
      _
    %4916 = vsyncpa [#allocation3], 1
    %s4917 = scalar_lea.sflag [#allocation3], 1
    %4918 = vsyncpa %s4917, 1
    %4919 = vsyncpa [#allocation6], 1
    %4920 = vsyncpa [#allocation4], 1
    %s4921 = scalar_lea.sflag [#allocation4], 1
    %4922 = vsyncpa %s4921, 1

</llo_original>
